<compile_context>
chip_gen: v5e
topology: v5e:2x2
jax: 0.10.0
libtpu: 0.0.40
codegen_flags: <defaults>
</compile_context>

<pallas_src>
import functools

import jax
import jax.numpy as jnp
from jax import lax
from jax.experimental import pallas as pl
from jax.experimental.pallas import tpu as pltpu


def _round_up(x, m):
    return (x + m - 1) // m * m


# ------------------------- fused Pallas kernel -------------------------

def _bottleneck_kernel(x_ref, w1_ref, b1_ref, w2_ref, b2_ref, w3_ref, b3_ref,
                       o_ref, y1a_ref, y1b_ref, xres_ref, pwin_ref,
                       *, th, w, wp, cmid, d, n_h):
    j = pl.program_id(1)
    blk = th * w
    thd = th + 2 * d

    # ---- cbr_1 (1x1 conv, BN scale folded, shift + ReLU) for the current x block ----
    # (At the extra trailing step j == n_h the x block index repeats, so the block is
    #  already resident; this recompute is tiny and its result is unused.)
    xblk = x_ref[...]                                            # (blk, Cin) f32
    y1cur = jnp.maximum(
        jnp.dot(xblk.astype(jnp.bfloat16), w1_ref[...],
                preferred_element_type=jnp.float32) + b1_ref[...],
        0.0).astype(jnp.bfloat16).reshape(th, w, cmid)

    # ---- emit the finished output tile t = j-1 (delayed so its bottom halo exists) ----
    @pl.when(j > 0)
    def _emit():
        t = j - 1
        zrows = jnp.zeros((d, w, cmid), jnp.bfloat16)
        top = jnp.where(t > 0, y1b_ref[...], zrows)              # last d y1 rows of tile t-1
        bot = jnp.where(t < n_h - 1, y1cur[:d], zrows)           # first d y1 rows of tile t+1
        body = jnp.concatenate([top, y1a_ref[...], bot], axis=0)  # (thd, W, Cmid)

        # Zero-padded y1 window for the conv.  wp % 8 == 0, so the flattening reshape is
        # layout-free; the extra row-slab absorbs the wrapped (discarded) tap reads.
        pwin_ref[...] = jnp.zeros((thd + 1, wp, cmid), jnp.bfloat16)
        pwin_ref[:thd, d:d + w, :] = body
        p = pwin_ref[...].reshape((thd + 1) * wp, cmid)

        # 3x3 dilated conv as ONE K = 9*Cmid matmul: each tap is a plain row-offset
        # window of the flat padded window, concatenated along lanes (128-aligned).
        rows = th * wp
        lhs = jnp.concatenate(
            [p[(ky * d) * wp + kx * d:(ky * d) * wp + kx * d + rows, :]
             for ky in range(3) for kx in range(3)], axis=1)      # (rows, 9*Cmid) bf16
        y2f = jnp.dot(lhs, w2_ref[...], preferred_element_type=jnp.float32)
        # keep only the W valid columns of the padded-width result
        y2v = y2f.reshape(th, wp, cmid)[:, :w, :].reshape(blk, cmid)
        y2 = jnp.maximum(y2v + b2_ref[...], 0.0).astype(jnp.bfloat16)   # BN shift + ReLU

        # cbr_3 (1x1 conv + BN shift) + f32 residual + final ReLU
        y3 = jnp.dot(y2, w3_ref[...], preferred_element_type=jnp.float32) + b3_ref[...]
        o_ref[...] = jnp.maximum(y3 + xres_ref[...], 0.0).astype(o_ref.dtype)

    # ---- carry state to the next step ----
    y1b_ref[...] = y1a_ref[th - d:, :, :]    # last d y1 rows of tile j-1
    y1a_ref[...] = y1cur                     # y1 of tile j
    xres_ref[...] = xblk                     # f32 residual for tile j


# ------------------------- wrapper -------------------------

def _pick_th(h, w, d, min_rows=256, max_rows=2048, min_tiles=4):
    """Largest H tile giving >=min_tiles steps and a sublane-aligned row block."""
    cands = [t for t in range(1, h + 1)
             if h % t == 0 and t >= d and (t * w) % 8 == 0]
    if not cands:
        raise ValueError(f"no valid H tile for H={h}, W={w}, dilation={d}")
    good = [t for t in cands if h // t >= min_tiles and min_rows <= t * w <= max_rows]
    if good:
        return max(good)
    good = [t for t in cands if min_rows <= t * w <= max_rows]
    if good:
        return min(good)
    return min(cands, key=lambda t: abs(t * w - min_rows))


def bottleneck_identify_psp(x_nchw, params, dilation, out_dtype=jnp.bfloat16, h_tile=None):
    """Forward pass of bottleNeckIdentifyPSP.  Input/output are NCHW like PyTorch."""
    n_batch, cin, h, w = x_nchw.shape
    d = int(dilation)
    cmid = params["w1f"].shape[1]
    th = int(h_tile) if h_tile is not None else _pick_th(h, w, d)
    assert h % th == 0 and th >= d and (th * w) % 8 == 0, (h, w, th, d)
    n_h = h // th
    blk = th * w
    wp = _round_up(w + 2 * d, 8)

    # TODO(synk): the NCHW<->NHWC transposes at the boundary are standalone XLA ops;
    # in an end-to-end NHWC pipeline they disappear.
    x2d = jnp.transpose(x_nchw, (0, 2, 3, 1)).reshape(n_batch * h * w, cin)

    kernel = functools.partial(_bottleneck_kernel, th=th, w=w, wp=wp,
                               cmid=cmid, d=d, n_h=n_h)

    # At the extra step j == n_h the x index repeats (no refetch); the output index lags
    # by one step so a tile's block is only written back once it holds finished data.
    x_map = lambda nb, j: (nb * n_h + jnp.minimum(j, n_h - 1), 0)
    o_map = lambda nb, j: (nb * n_h + jnp.maximum(j - 1, 0), 0)

    def full(shape):
        return pl.BlockSpec(shape, lambda nb, j, _z=(0,) * len(shape): _z)

    # VMEM budget from the actual block/scratch/temporary sizes (cap for v7x's 64 MiB).
    out_bytes = jnp.dtype(out_dtype).itemsize
    weights_b = 2 * ((cin * cmid + 9 * cmid * cmid + cmid * cin) * 2 + (2 * cmid + cin) * 4)
    scratch_b = (blk * cin * 4 + (th + d) * w * cmid * 2
                 + (th + 2 * d + 1) * wp * cmid * 2)
    temps_b = th * wp * 9 * cmid * 2 + th * wp * cmid * 4 + 2 * blk * cin * 4
    est = 2 * blk * cin * 4 + 2 * blk * cin * out_bytes + weights_b + scratch_b + temps_b
    vmem_limit = int(min(48 * 1024 * 1024, max(32 * 1024 * 1024, 2 * est)))

    out2d = pl.pallas_call(
        kernel,
        out_shape=jax.ShapeDtypeStruct((n_batch * h * w, cin), out_dtype),
        grid_spec=pltpu.PrefetchScalarGridSpec(
            num_scalar_prefetch=0,
            grid=(n_batch, n_h + 1),
            in_specs=[pl.BlockSpec((blk, cin), x_map),
                      full(params["w1f"].shape),
                      full(params["b1"].shape),
                      full(params["w2f"].shape),
                      full(params["b2"].shape),
                      full(params["w3f"].shape),
                      full(params["b3"].shape)],
            out_specs=pl.BlockSpec((blk, cin), o_map),
            scratch_shapes=[
                pltpu.VMEM((th, w, cmid), jnp.bfloat16),            # y1 of tile j-1
                pltpu.VMEM((d, w, cmid), jnp.bfloat16),             # last d y1 rows of tile j-2
                pltpu.VMEM((blk, cin), jnp.float32),                # f32 residual carry
                pltpu.VMEM((th + 2 * d + 1, wp, cmid), jnp.bfloat16)  # padded y1 window
            ]),
        compiler_params=pltpu.CompilerParams(
            # H-tile axis carries VMEM state -> must stay in-order ("arbitrary");
            # batch axis "parallel" so both v7x TensorCores get work.
            dimension_semantics=("parallel", "arbitrary"),
            vmem_limit_bytes=vmem_limit),
    )(x2d, params["w1f"], params["b1"], params["w2f"], params["b2"],
      params["w3f"], params["b3"])

    return jnp.transpose(out2d.reshape(n_batch, h, w, cin), (0, 3, 1, 2))


# ------------------------- params & reference -------------------------

def init_params(key, in_channels, mid_channels, eps=1e-5):
    ks = jax.random.split(key, 15)

    def bn_fold(kg, kb, km, kv, c):
        gamma = jax.random.uniform(kg, (c,), jnp.float32, 0.5, 1.5)
        beta = jax.random.normal(kb, (c,), jnp.float32) * 0.1
        mean = jax.random.normal(km, (c,), jnp.float32) * 0.1
        var = jax.random.uniform(kv, (c,), jnp.float32, 0.5, 1.5)
        scale = gamma / jnp.sqrt(var + eps)
        shift = beta - mean * scale
        return scale.reshape(1, c), shift.reshape(1, c)

    w1 = jax.random.normal(ks[0], (in_channels, mid_channels), jnp.float32) / jnp.sqrt(1.0 * in_channels)
    w2 = jax.random.normal(ks[1], (3, 3, mid_channels, mid_channels), jnp.float32) / jnp.sqrt(9.0 * mid_channels)
    w3 = jax.random.normal(ks[2], (mid_channels, in_channels), jnp.float32) / jnp.sqrt(1.0 * mid_channels)
    s1, b1 = bn_fold(ks[3], ks[4], ks[5], ks[6], mid_channels)
    s2, b2 = bn_fold(ks[7], ks[8], ks[9], ks[10], mid_channels)
    s3, b3 = bn_fold(ks[11], ks[12], ks[13], ks[14], in_channels)

    # One-time offline fold of the BN scale into the conv weights; bf16 for the MXU.
    # Shifts stay f32 and are added in-kernel after the f32 accumulation.
    w1f = (w1 * s1).astype(jnp.bfloat16)                                        # (Cin, Cmid)
    w2f = (w2 * s2.reshape(1, 1, 1, mid_channels)).reshape(
        9 * mid_channels, mid_channels).astype(jnp.bfloat16)                    # (9*Cmid, Cmid)
    w3f = (w3 * s3).astype(jnp.bfloat16)                                        # (Cmid, Cin)

    return {"w1": w1, "w2": w2, "w3": w3,
            "s1": s1, "b1": b1, "s2": s2, "b2": b2, "s3": s3, "b3": b3,
            "w1f": w1f, "w2f": w2f, "w3f": w3f}


def reference(x_nchw, params, d):
    # Pure-JAX f32 reference (un-folded weights) of the same forward pass.
    x = jnp.transpose(x_nchw, (0, 2, 3, 1)).astype(jnp.float32)
    y1 = jnp.einsum("nhwc,co->nhwo", x, params["w1"],
                    precision=lax.Precision.HIGHEST)
    y1 = jax.nn.relu(y1 * params["s1"] + params["b1"])
    y2 = lax.conv_general_dilated(y1, params["w2"], (1, 1), [(d, d), (d, d)],
                                  rhs_dilation=(d, d),
                                  dimension_numbers=("NHWC", "HWIO", "NHWC"),
                                  precision=lax.Precision.HIGHEST)
    y2 = jax.nn.relu(y2 * params["s2"] + params["b2"])
    y3 = jnp.einsum("nhwc,co->nhwo", y2, params["w3"],
                    precision=lax.Precision.HIGHEST)
    y3 = y3 * params["s3"] + params["b3"]
    out = jax.nn.relu(y3 + x)
    return jnp.transpose(out, (0, 3, 1, 2))


# ------------------------- main -------------------------

if __name__ == "__main__":
    # bottleNeckIdentifyPSP(in_channels, mid_channels, stride, dilation):
    # mid = in/4 as in every PSPNet instantiation (512/128 keeps all last dims
    # lane-dense); H=W=32 gives 4 H-tiles per image -> 5 pipelined grid steps/core.
    n_batch, cin, cmid, h, wd = 2, 512, 128, 32, 32
    dilation = 2   # the module's stride argument is unused (all convs are stride 1)

    key = jax.random.PRNGKey(0)
    kx_, kp_ = jax.random.split(key)
    x = jax.random.uniform(kx_, (n_batch, cin, h, wd), jnp.float32)
    params = init_params(kp_, cin, cmid)

    # TODO(synk): BatchNorm is implemented in inference mode (running stats folded
    # into scale/shift); PyTorch training-mode batch statistics are not reproduced.

    out = jax.block_until_ready(bottleneck_identify_psp(x, params, dilation))
    ref = reference(x, params, dilation)

    assert out.shape == (n_batch, cin, h, wd)
    max_diff = float(jnp.max(jnp.abs(out.astype(jnp.float32) - ref)))
    tol = 3e-2 * max(1.0, float(jnp.max(jnp.abs(ref))))   # bf16 MXU path + bf16 output
    assert max_diff < tol, f"mismatch vs reference: max|diff|={max_diff} (tol={tol})"

    print("KERNEL_OK")
</pallas_src>

<mosaic_0001>
module attributes {stable_mosaic.version = 11 : i64} {
  func.func @_bottleneck_kernel(%arg0: i32, %arg1: i32, %arg2: memref<256x512xf32, #tpu.memory_space<vmem>>, %arg3: memref<512x128xbf16, #tpu.memory_space<vmem>>, %arg4: memref<1x128xf32, #tpu.memory_space<vmem>>, %arg5: memref<1152x128xbf16, #tpu.memory_space<vmem>>, %arg6: memref<1x128xf32, #tpu.memory_space<vmem>>, %arg7: memref<128x512xbf16, #tpu.memory_space<vmem>>, %arg8: memref<1x512xf32, #tpu.memory_space<vmem>>, %arg9: memref<256x512xbf16, #tpu.memory_space<vmem>>, %arg10: memref<8x32x128xbf16, #tpu.memory_space<vmem>>, %arg11: memref<2x32x128xbf16, #tpu.memory_space<vmem>>, %arg12: memref<256x512xf32, #tpu.memory_space<vmem>>, %arg13: memref<13x40x128xbf16, #tpu.memory_space<vmem>>) attributes {dimension_semantics = [#tpu.dimension_semantics<parallel>, #tpu.dimension_semantics<arbitrary>], iteration_bounds = array<i64: 2, 5>, scalar_prefetch = 0 : i64, scratch_operands = 4 : i64, tpu.core_type = #tpu.core_type<tc>, window_params = [{transform_indices = @transform_0, window_bounds = array<i64: 256, 512>}, {pipeline_mode = #tpu.pipeline_mode<synchronous>, transform_indices = @transform_1, window_bounds = array<i64: 512, 128>}, {pipeline_mode = #tpu.pipeline_mode<synchronous>, transform_indices = @transform_2, window_bounds = array<i64: 1, 128>}, {pipeline_mode = #tpu.pipeline_mode<synchronous>, transform_indices = @transform_3, window_bounds = array<i64: 1152, 128>}, {pipeline_mode = #tpu.pipeline_mode<synchronous>, transform_indices = @transform_4, window_bounds = array<i64: 1, 128>}, {pipeline_mode = #tpu.pipeline_mode<synchronous>, transform_indices = @transform_5, window_bounds = array<i64: 128, 512>}, {pipeline_mode = #tpu.pipeline_mode<synchronous>, transform_indices = @transform_6, window_bounds = array<i64: 1, 512>}, {transform_indices = @transform_7, window_bounds = array<i64: 256, 512>}]} {
    %c0 = arith.constant 0 : index
    %c0_0 = arith.constant 0 : index
    %0 = vector.load %arg2[%c0, %c0_0] : memref<256x512xf32, #tpu.memory_space<vmem>>, vector<256x512xf32>
    %1 = arith.truncf %0 : vector<256x512xf32> to vector<256x512xbf16>
    %c0_1 = arith.constant 0 : index
    %c0_2 = arith.constant 0 : index
    %2 = vector.load %arg3[%c0_1, %c0_2] : memref<512x128xbf16, #tpu.memory_space<vmem>>, vector<512x128xbf16>
    %cst = arith.constant dense<0.000000e+00> : vector<256x128xf32>
    %3 = tpu.matmul %1, %2, %cst {dimension_numbers = #tpu.dot_dimension_numbers<[1], [0], [0], [1], [0, 0, 1, 1], [], []>} : vector<256x512xbf16>, vector<512x128xbf16>, vector<256x128xf32> -> vector<256x128xf32>
    %c0_3 = arith.constant 0 : index
    %c0_4 = arith.constant 0 : index
    %4 = vector.load %arg4[%c0_3, %c0_4] : memref<1x128xf32, #tpu.memory_space<vmem>>, vector<1x128xf32>
    %5 = vector.broadcast %4 : vector<1x128xf32> to vector<256x128xf32>
    %6 = arith.addf %3, %5 : vector<256x128xf32>
    %cst_5 = arith.constant 0.000000e+00 : f32
    %7 = vector.broadcast %cst_5 : f32 to vector<256x128xf32>
    %8 = arith.maximumf %6, %7 : vector<256x128xf32>
    %9 = arith.truncf %8 : vector<256x128xf32> to vector<256x128xbf16>
    %10 = vector.shape_cast %9 : vector<256x128xbf16> to vector<8x32x128xbf16>
    %c0_i32 = arith.constant 0 : i32
    %11 = arith.cmpi sgt, %arg1, %c0_i32 : i32
    %12 = arith.extui %11 : i1 to i32
    %c0_i32_6 = arith.constant 0 : i32
    %13 = arith.cmpi ne, %12, %c0_i32_6 : i32
    scf.if %13 {
      %c1_i32 = arith.constant 1 : i32
      %18 = arith.subi %arg1, %c1_i32 : i32
      %cst_17 = arith.constant 0.000000e+00 : bf16
      %19 = vector.broadcast %cst_17 : bf16 to vector<2x32x128xbf16>
      %c0_i32_18 = arith.constant 0 : i32
      %20 = arith.cmpi sgt, %18, %c0_i32_18 : i32
      %c0_19 = arith.constant 0 : index
      %c0_20 = arith.constant 0 : index
      %c0_21 = arith.constant 0 : index
      %21 = vector.load %arg11[%c0_19, %c0_20, %c0_21] : memref<2x32x128xbf16, #tpu.memory_space<vmem>>, vector<2x32x128xbf16>
      %22 = arith.select %20, %21, %19 : vector<2x32x128xbf16>
      %c3_i32 = arith.constant 3 : i32
      %23 = arith.cmpi slt, %18, %c3_i32 : i32
      %24 = vector.extract_strided_slice %10 {offsets = [0, 0, 0], sizes = [2, 32, 128], strides = [1, 1, 1]} : vector<8x32x128xbf16> to vector<2x32x128xbf16>
      %25 = arith.select %23, %24, %19 : vector<2x32x128xbf16>
      %c0_22 = arith.constant 0 : index
      %c0_23 = arith.constant 0 : index
      %c0_24 = arith.constant 0 : index
      %26 = vector.load %arg10[%c0_22, %c0_23, %c0_24] : memref<8x32x128xbf16, #tpu.memory_space<vmem>>, vector<8x32x128xbf16>
      %27 = tpu.concatenate %22, %26, %25 in 0 : vector<2x32x128xbf16>, vector<8x32x128xbf16>, vector<2x32x128xbf16> -> vector<12x32x128xbf16>
      %cst_25 = arith.constant 0.000000e+00 : bf16
      %28 = vector.broadcast %cst_25 : bf16 to vector<13x40x128xbf16>
      %c0_26 = arith.constant 0 : index
      %c0_27 = arith.constant 0 : index
      %c0_28 = arith.constant 0 : index
      %29 = vector.load %arg13[%c0_26, %c0_27, %c0_28] : memref<13x40x128xbf16, #tpu.memory_space<vmem>>, vector<13x40x128xbf16>
      tpu.vector_store %arg13[%c0_26, %c0_27, %c0_28], %28 {strides = array<i32>} : memref<13x40x128xbf16, #tpu.memory_space<vmem>>, vector<13x40x128xbf16>,
      %c0_29 = arith.constant 0 : index
      %c2 = arith.constant 2 : index
      %c0_30 = arith.constant 0 : index
      %30 = vector.load %arg13[%c0_29, %c2, %c0_30] : memref<13x40x128xbf16, #tpu.memory_space<vmem>>, vector<12x32x128xbf16>
      tpu.vector_store %arg13[%c0_29, %c2, %c0_30], %27 {strides = array<i32>} : memref<13x40x128xbf16, #tpu.memory_space<vmem>>, vector<12x32x128xbf16>,
      %c0_31 = arith.constant 0 : index
      %c0_32 = arith.constant 0 : index
      %c0_33 = arith.constant 0 : index
      %31 = vector.load %arg13[%c0_31, %c0_32, %c0_33] : memref<13x40x128xbf16, #tpu.memory_space<vmem>>, vector<13x40x128xbf16>
      %32 = vector.shape_cast %31 : vector<13x40x128xbf16> to vector<520x128xbf16>
      %33 = vector.extract_strided_slice %32 {offsets = [0, 0], sizes = [320, 128], strides = [1, 1]} : vector<520x128xbf16> to vector<320x128xbf16>
      %34 = vector.extract_strided_slice %32 {offsets = [2, 0], sizes = [320, 128], strides = [1, 1]} : vector<520x128xbf16> to vector<320x128xbf16>
      %35 = vector.extract_strided_slice %32 {offsets = [4, 0], sizes = [320, 128], strides = [1, 1]} : vector<520x128xbf16> to vector<320x128xbf16>
      %36 = vector.extract_strided_slice %32 {offsets = [80, 0], sizes = [320, 128], strides = [1, 1]} : vector<520x128xbf16> to vector<320x128xbf16>
      %37 = vector.extract_strided_slice %32 {offsets = [82, 0], sizes = [320, 128], strides = [1, 1]} : vector<520x128xbf16> to vector<320x128xbf16>
      %38 = vector.extract_strided_slice %32 {offsets = [84, 0], sizes = [320, 128], strides = [1, 1]} : vector<520x128xbf16> to vector<320x128xbf16>
      %39 = vector.extract_strided_slice %32 {offsets = [160, 0], sizes = [320, 128], strides = [1, 1]} : vector<520x128xbf16> to vector<320x128xbf16>
      %40 = vector.extract_strided_slice %32 {offsets = [162, 0], sizes = [320, 128], strides = [1, 1]} : vector<520x128xbf16> to vector<320x128xbf16>
      %41 = vector.extract_strided_slice %32 {offsets = [164, 0], sizes = [320, 128], strides = [1, 1]} : vector<520x128xbf16> to vector<320x128xbf16>
      %42 = tpu.concatenate %33, %34, %35, %36, %37, %38, %39, %40, %41 in 1 : vector<320x128xbf16>, vector<320x128xbf16>, vector<320x128xbf16>, vector<320x128xbf16>, vector<320x128xbf16>, vector<320x128xbf16>, vector<320x128xbf16>, vector<320x128xbf16>, vector<320x128xbf16> -> vector<320x1152xbf16>
      %c0_34 = arith.constant 0 : index
      %c0_35 = arith.constant 0 : index
      %43 = vector.load %arg5[%c0_34, %c0_35] : memref<1152x128xbf16, #tpu.memory_space<vmem>>, vector<1152x128xbf16>
      %cst_36 = arith.constant dense<0.000000e+00> : vector<320x128xf32>
      %44 = tpu.matmul %42, %43, %cst_36 {dimension_numbers = #tpu.dot_dimension_numbers<[1], [0], [0], [1], [0, 0, 1, 1], [], []>} : vector<320x1152xbf16>, vector<1152x128xbf16>, vector<320x128xf32> -> vector<320x128xf32>
      %45 = vector.shape_cast %44 : vector<320x128xf32> to vector<8x40x128xf32>
      %46 = vector.extract_strided_slice %45 {offsets = [0, 0, 0], sizes = [8, 32, 128], strides = [1, 1, 1]} : vector<8x40x128xf32> to vector<8x32x128xf32>
      %47 = vector.shape_cast %46 : vector<8x32x128xf32> to vector<256x128xf32>
      %c0_37 = arith.constant 0 : index
      %c0_38 = arith.constant 0 : index
      %48 = vector.load %arg6[%c0_37, %c0_38] : memref<1x128xf32, #tpu.memory_space<vmem>>, vector<1x128xf32>
      %49 = vector.broadcast %48 : vector<1x128xf32> to vector<256x128xf32>
      %50 = arith.addf %47, %49 : vector<256x128xf32>
      %cst_39 = arith.constant 0.000000e+00 : f32
      %51 = vector.broadcast %cst_39 : f32 to vector<256x128xf32>
      %52 = arith.maximumf %50, %51 : vector<256x128xf32>
      %53 = arith.truncf %52 : vector<256x128xf32> to vector<256x128xbf16>
      %c0_40 = arith.constant 0 : index
      %c0_41 = arith.constant 0 : index
      %54 = vector.load %arg7[%c0_40, %c0_41] : memref<128x512xbf16, #tpu.memory_space<vmem>>, vector<128x512xbf16>
      %cst_42 = arith.constant dense<0.000000e+00> : vector<256x512xf32>
      %55 = tpu.matmul %53, %54, %cst_42 {dimension_numbers = #tpu.dot_dimension_numbers<[1], [0], [0], [1], [0, 0, 1, 1], [], []>} : vector<256x128xbf16>, vector<128x512xbf16>, vector<256x512xf32> -> vector<256x512xf32>
      %c0_43 = arith.constant 0 : index
      %c0_44 = arith.constant 0 : index
      %56 = vector.load %arg8[%c0_43, %c0_44] : memref<1x512xf32, #tpu.memory_space<vmem>>, vector<1x512xf32>
      %57 = vector.broadcast %56 : vector<1x512xf32> to vector<256x512xf32>
      %58 = arith.addf %55, %57 : vector<256x512xf32>
      %c0_45 = arith.constant 0 : index
      %c0_46 = arith.constant 0 : index
      %59 = vector.load %arg12[%c0_45, %c0_46] : memref<256x512xf32, #tpu.memory_space<vmem>>, vector<256x512xf32>
      %60 = arith.addf %58, %59 : vector<256x512xf32>
      %cst_47 = arith.constant 0.000000e+00 : f32
      %61 = vector.broadcast %cst_47 : f32 to vector<256x512xf32>
      %62 = arith.maximumf %60, %61 : vector<256x512xf32>
      %63 = arith.truncf %62 : vector<256x512xf32> to vector<256x512xbf16>
      %c0_48 = arith.constant 0 : index
      %c0_49 = arith.constant 0 : index
      %64 = vector.load %arg9[%c0_48, %c0_49] : memref<256x512xbf16, #tpu.memory_space<vmem>>, vector<256x512xbf16>
      tpu.vector_store %arg9[%c0_48, %c0_49], %63 {strides = array<i32>} : memref<256x512xbf16, #tpu.memory_space<vmem>>, vector<256x512xbf16>,
    } else {
    }
    %c6 = arith.constant 6 : index
    %c0_7 = arith.constant 0 : index
    %c0_8 = arith.constant 0 : index
    %14 = vector.load %arg10[%c6, %c0_7, %c0_8] : memref<8x32x128xbf16, #tpu.memory_space<vmem>>, vector<2x32x128xbf16>
    %c0_9 = arith.constant 0 : index
    %c0_10 = arith.constant 0 : index
    %c0_11 = arith.constant 0 : index
    %15 = vector.load %arg11[%c0_9, %c0_10, %c0_11] : memref<2x32x128xbf16, #tpu.memory_space<vmem>>, vector<2x32x128xbf16>
    tpu.vector_store %arg11[%c0_9, %c0_10, %c0_11], %14 {strides = array<i32>} : memref<2x32x128xbf16, #tpu.memory_space<vmem>>, vector<2x32x128xbf16>,
    %c0_12 = arith.constant 0 : index
    %c0_13 = arith.constant 0 : index
    %c0_14 = arith.constant 0 : index
    %16 = vector.load %arg10[%c0_12, %c0_13, %c0_14] : memref<8x32x128xbf16, #tpu.memory_space<vmem>>, vector<8x32x128xbf16>
    tpu.vector_store %arg10[%c0_12, %c0_13, %c0_14], %10 {strides = array<i32>} : memref<8x32x128xbf16, #tpu.memory_space<vmem>>, vector<8x32x128xbf16>,
    %c0_15 = arith.constant 0 : index
    %c0_16 = arith.constant 0 : index
    %17 = vector.load %arg12[%c0_15, %c0_16] : memref<256x512xf32, #tpu.memory_space<vmem>>, vector<256x512xf32>
    tpu.vector_store %arg12[%c0_15, %c0_16], %0 {strides = array<i32>} : memref<256x512xf32, #tpu.memory_space<vmem>>, vector<256x512xf32>,
    return
  }
  func.func @transform_0(%arg0: i32, %arg1: i32) -> (i32, i32) {
    %c4_i32 = arith.constant 4 : i32
    %0 = arith.muli %arg0, %c4_i32 : i32
    %c3_i32 = arith.constant 3 : i32
    %1 = arith.minsi %arg1, %c3_i32 : i32
    %2 = arith.addi %0, %1 : i32
    %c0_i32 = arith.constant 0 : i32
    %c0_i32_0 = arith.constant 0 : i32
    return %2, %c0_i32 : i32, i32
  }
  func.func @transform_1(%arg0: i32, %arg1: i32) -> (i32, i32) {
    %c0_i32 = arith.constant 0 : i32
    %c0_i32_0 = arith.constant 0 : i32
    %c0_i32_1 = arith.constant 0 : i32
    return %c0_i32, %c0_i32_0 : i32, i32
  }
  func.func @transform_2(%arg0: i32, %arg1: i32) -> (i32, i32) {
    %c0_i32 = arith.constant 0 : i32
    %c0_i32_0 = arith.constant 0 : i32
    %c0_i32_1 = arith.constant 0 : i32
    return %c0_i32, %c0_i32_0 : i32, i32
  }
  func.func @transform_3(%arg0: i32, %arg1: i32) -> (i32, i32) {
    %c0_i32 = arith.constant 0 : i32
    %c0_i32_0 = arith.constant 0 : i32
    %c0_i32_1 = arith.constant 0 : i32
    return %c0_i32, %c0_i32_0 : i32, i32
  }
  func.func @transform_4(%arg0: i32, %arg1: i32) -> (i32, i32) {
    %c0_i32 = arith.constant 0 : i32
    %c0_i32_0 = arith.constant 0 : i32
    %c0_i32_1 = arith.constant 0 : i32
    return %c0_i32, %c0_i32_0 : i32, i32
  }
  func.func @transform_5(%arg0: i32, %arg1: i32) -> (i32, i32) {
    %c0_i32 = arith.constant 0 : i32
    %c0_i32_0 = arith.constant 0 : i32
    %c0_i32_1 = arith.constant 0 : i32
    return %c0_i32, %c0_i32_0 : i32, i32
  }
  func.func @transform_6(%arg0: i32, %arg1: i32) -> (i32, i32) {
    %c0_i32 = arith.constant 0 : i32
    %c0_i32_0 = arith.constant 0 : i32
    %c0_i32_1 = arith.constant 0 : i32
    return %c0_i32, %c0_i32_0 : i32, i32
  }
  func.func @transform_7(%arg0: i32, %arg1: i32) -> (i32, i32) {
    %c4_i32 = arith.constant 4 : i32
    %0 = arith.muli %arg0, %c4_i32 : i32
    %c1_i32 = arith.constant 1 : i32
    %1 = arith.subi %arg1, %c1_i32 : i32
    %c0_i32 = arith.constant 0 : i32
    %2 = arith.maxsi %1, %c0_i32 : i32
    %3 = arith.addi %0, %2 : i32
    %c0_i32_0 = arith.constant 0 : i32
    %c0_i32_1 = arith.constant 0 : i32
    return %3, %c0_i32_0 : i32, i32
  }
}

</mosaic_0001>

<llo_original>
// kernel: tpu_custom_call.1
$region0: #{tpu_custom_call.1}
  #allocation0 [shape = 'u32[]', space=smem, size = 0x4, offset = 0x4, fixed_abs, tag = 'smem constant byte address 0x4 - core index']
  #allocation1 [shape = 'u32[72,128]{1,0:T(1,128)}', space=vmem, size = 0x9000, scoped, tag = 'internal scratch']
  #allocation2 [shape = 'bf16[8,32,128]{2,1,0:T(8,128)(2,1)}', space=vmem, size = 0x10000, scoped, tag = 'scratch operand']
  #allocation3 [shape = 'bf16[2,32,128]{2,1,0:T(8,128)(2,1)}', space=vmem, size = 0x4000, scoped, tag = 'scratch operand']
  #allocation4 [shape = 'f32[256,512]{1,0:T(8,128)}', space=vmem, size = 0x80000, scoped, tag = 'scratch operand']
  #allocation5 [shape = 'bf16[13,40,128]{2,1,0:T(8,128)(2,1)}', space=vmem, size = 0x20800, scoped, tag = 'scratch operand']
  %s0 = inlined_call_operand.hbm [shape: f32[2048,512], index: 0, kind: input, shape index: {}]
  %s1 = inlined_call_operand.hbm [shape: bf16[512,128], index: 1, kind: input, shape index: {}]
  %s2 = inlined_call_operand.hbm [shape: f32[1,128], index: 2, kind: input, shape index: {}]
  %s3 = inlined_call_operand.hbm [shape: bf16[1152,128], index: 3, kind: input, shape index: {}]
  %s4 = inlined_call_operand.hbm [shape: f32[1,128], index: 4, kind: input, shape index: {}]
  %s5 = inlined_call_operand.hbm [shape: bf16[128,512], index: 5, kind: input, shape index: {}]
  %s6 = inlined_call_operand.hbm [shape: f32[1,512], index: 6, kind: input, shape index: {}]
  %s7 = inlined_call_operand.hbm [shape: bf16[2048,512], index: 7, kind: output, shape index: {}]
  %s8 = sld [smem:[#allocation0]]
  $region93: #{tpu_custom_call.1} parent=0
    _
  %s10 = ssub.s32 1, %s8
  %s11 = scalar_select 0, %s10, %s8
  $region1: #{tpu_custom_call.1} parent=0
    #allocation6 [shape = 'u8[1048576]{0}', space=vmem, size = 0x100000, scoped, tag = 'input window, operand 0']
    #allocation7 [shape = 's32[2]{0}', space=sflag, size = 0x8, scoped, tag = 'scoped memory for tpu_custom_call.1']
    #allocation8 [shape = 's32[2]{0}', space=sflag, size = 0x8, scoped, tag = 'scoped memory for tpu_custom_call.1']
    #allocation9 [shape = 'u8[131072]{0}', space=vmem, size = 0x20000, scoped, tag = 'input window, operand 1, single buffered']
    #allocation10 [shape = 's32[1]{0}', space=sflag, size = 0x4, scoped, tag = 'scoped memory for tpu_custom_call.1']
    #allocation11 [shape = 'u8[512]{0}', space=vmem, size = 0x400, scoped, tag = 'input window, operand 2, single buffered']
    #allocation12 [shape = 'u8[294912]{0}', space=vmem, size = 0x48000, scoped, tag = 'input window, operand 3, single buffered']
    #allocation13 [shape = 's32[1]{0}', space=sflag, size = 0x4, scoped, tag = 'scoped memory for tpu_custom_call.1']
    #allocation14 [shape = 'u8[512]{0}', space=vmem, size = 0x400, scoped, tag = 'input window, operand 4, single buffered']
    #allocation15 [shape = 'u8[131072]{0}', space=vmem, size = 0x20000, scoped, tag = 'input window, operand 5, single buffered']
    #allocation16 [shape = 's32[1]{0}', space=sflag, size = 0x4, scoped, tag = 'scoped memory for tpu_custom_call.1']
    #allocation17 [shape = 'u8[2048]{0}', space=vmem, size = 0x800, scoped, tag = 'input window, operand 6, single buffered']
    #allocation18 [shape = 'u8[524288]{0}', space=vmem, size = 0x80000, scoped, tag = 'output window, operand 0']
    %12 = vsyncpa [#allocation7], 0
    %s13 = scalar_lea.sflag [#allocation7], 1
    %14 = vsyncpa %s13, 0
    %15 = vsyncpa [#allocation10], 0
    %16 = vsyncpa [#allocation13], 0
    %17 = vsyncpa [#allocation16], 0
    %18 = vsyncpa [#allocation8], 0
    %s19 = scalar_lea.sflag [#allocation8], 1
    %20 = vsyncpa %s19, 0
    loop: start=0, step=1, limit=12
    $region2: #{tpu_custom_call.1} parent=1 // loop_pre_header
      _
    $region3: #{tpu_custom_call.1} parent=1 // loop_header
      %s22 = sphi 0, %s26
      %p23 = scmp.ge.s32.totalorder %s22, 12
      %s29 = sphi 0, %s41
      %s30 = sphi 0, %s37
      %s31 = sphi 0, %s29
      %s32 = sphi 0, %s30
      %s33 = sphi 0, %s31
      %s34 = sphi 0, %s32
      %s52 = sphi 0, %s54
      %s55 = sphi 0, %s52
      %s56 = sphi 0, %s55
      %s72 = sphi 0, %s56
      %s76 = sphi 0, %s76
      %s78 = sphi 0, %s76
      %s79 = sphi 0, %s78
      %s93 = sphi 0, %s79
      %s97 = sphi 0, %s97
      %s99 = sphi 0, %s97
      %s100 = sphi 0, %s99
      %s114 = sphi 0, %s100
      %s118 = sphi 0, %s118
      %s120 = sphi 0, %s118
      %s121 = sphi 0, %s120
      %s135 = sphi 0, %s121
      %s139 = sphi 0, %s139
      %s141 = sphi 0, %s139
      %s142 = sphi 0, %s141
      %s156 = sphi 0, %s142
      %s160 = sphi 0, %s160
      %s162 = sphi 0, %s160
      %s163 = sphi 0, %s162
      %s177 = sphi 0, %s163
      %s181 = sphi 0, %s181
      %s183 = sphi 0, %s181
      %s184 = sphi 0, %s183
      %s198 = sphi 0, %s184
      %s214 = sphi 0, %s216
      %s217 = sphi 0, %s214
      %s218 = sphi 0, %s217
      %s234 = sphi 0, %s218
    $region4: #{tpu_custom_call.1} parent=1 // loop_header_branch
      %25 = sbr.rel (%p23) target = $region8
    $region5: #{tpu_custom_call.1} parent=1 // loop_body
      %s27 = ssub.s32 %s22, 1
      %s28 = ssub.s32 %s22, 2
      %s35 = sadd.s32 1, %s30
      %p36 = scmp.ge.s32.totalorder %s35, 5
      %s37 = scalar_select %p36, 0, %s35
      %s38 = sadd.s32 1, %s29
      %s39 = scalar_select %p36, %s38, %s29
      %p40 = scmp.ge.s32.totalorder %s39, 2
      %s41 = scalar_select %p40, 0, %s39
      %s42 = smul.u32 %s29, 4
      %p43 = scmp.lt.s32.totalorder %s30, 3
      %s44 = scalar_select %p43, %s30, 3
      %s45 = sadd.s32 %s42, %s44
      %s46 = smul.u32 %s41, 4
      %p47 = scmp.lt.s32.totalorder %s37, 3
      %s48 = scalar_select %p47, %s37, 3
      %s49 = sadd.s32 %s46, %s48
      %s50 = ssub.s32 %s45, %s49
      %p51 = scmp.eq.s32.totalorder %s50, 0
      %s53 = sadd.s32 %s52, 1
      %s54 = scalar_select %p51, %s52, %s53
      %p57 = pneg %p51
      %p58 = scmp.eq.s32.totalorder %s22, 9
      %p59 = por %p57, %p58
      %p60 = scmp.ne.s32.totalorder %s52, %s55
      %p61 = scmp.eq.s32.totalorder %s22, 0
      %p62 = por %p60, %p61
      %p63 = scmp.ne.s32.totalorder %s52, %s55
      %p64 = scmp.eq.s32.totalorder %s27, 9
      %p65 = por %p63, %p64
      %p66 = scmp.ne.s32.totalorder %s55, %s56
      %p67 = scmp.eq.s32.totalorder %s27, 0
      %p68 = por %p66, %p67
      %p69 = scmp.ne.s32.totalorder %s55, %s56
      %p70 = scmp.eq.s32.totalorder %s28, 9
      %p71 = por %p69, %p70
      %p73 = scmp.ne.s32.totalorder %s56, %s72
      %p74 = scmp.eq.s32.totalorder %s28, 0
      %p75 = por %p73, %p74
      %s77 = sadd.s32 %s76, 1
      %p80 = scmp.eq.s32.totalorder %s22, 9
      %p81 = scmp.ne.s32.totalorder %s76, %s78
      %p82 = scmp.eq.s32.totalorder %s22, 0
      %p83 = por %p81, %p82
      %p84 = scmp.ne.s32.totalorder %s76, %s78
      %p85 = scmp.eq.s32.totalorder %s27, 9
      %p86 = por %p84, %p85
      %p87 = scmp.ne.s32.totalorder %s78, %s79
      %p88 = scmp.eq.s32.totalorder %s27, 0
      %p89 = por %p87, %p88
      %p90 = scmp.ne.s32.totalorder %s78, %s79
      %p91 = scmp.eq.s32.totalorder %s28, 9
      %p92 = por %p90, %p91
      %p94 = scmp.ne.s32.totalorder %s79, %s93
      %p95 = scmp.eq.s32.totalorder %s28, 0
      %p96 = por %p94, %p95
      %s98 = sadd.s32 %s97, 1
      %p101 = scmp.eq.s32.totalorder %s22, 9
      %p102 = scmp.ne.s32.totalorder %s97, %s99
      %p103 = scmp.eq.s32.totalorder %s22, 0
      %p104 = por %p102, %p103
      %p105 = scmp.ne.s32.totalorder %s97, %s99
      %p106 = scmp.eq.s32.totalorder %s27, 9
      %p107 = por %p105, %p106
      %p108 = scmp.ne.s32.totalorder %s99, %s100
      %p109 = scmp.eq.s32.totalorder %s27, 0
      %p110 = por %p108, %p109
      %p111 = scmp.ne.s32.totalorder %s99, %s100
      %p112 = scmp.eq.s32.totalorder %s28, 9
      %p113 = por %p111, %p112
      %p115 = scmp.ne.s32.totalorder %s100, %s114
      %p116 = scmp.eq.s32.totalorder %s28, 0
      %p117 = por %p115, %p116
      %s119 = sadd.s32 %s118, 1
      %p122 = scmp.eq.s32.totalorder %s22, 9
      %p123 = scmp.ne.s32.totalorder %s118, %s120
      %p124 = scmp.eq.s32.totalorder %s22, 0
      %p125 = por %p123, %p124
      %p126 = scmp.ne.s32.totalorder %s118, %s120
      %p127 = scmp.eq.s32.totalorder %s27, 9
      %p128 = por %p126, %p127
      %p129 = scmp.ne.s32.totalorder %s120, %s121
      %p130 = scmp.eq.s32.totalorder %s27, 0
      %p131 = por %p129, %p130
      %p132 = scmp.ne.s32.totalorder %s120, %s121
      %p133 = scmp.eq.s32.totalorder %s28, 9
      %p134 = por %p132, %p133
      %p136 = scmp.ne.s32.totalorder %s121, %s135
      %p137 = scmp.eq.s32.totalorder %s28, 0
      %p138 = por %p136, %p137
      %s140 = sadd.s32 %s139, 1
      %p143 = scmp.eq.s32.totalorder %s22, 9
      %p144 = scmp.ne.s32.totalorder %s139, %s141
      %p145 = scmp.eq.s32.totalorder %s22, 0
      %p146 = por %p144, %p145
      %p147 = scmp.ne.s32.totalorder %s139, %s141
      %p148 = scmp.eq.s32.totalorder %s27, 9
      %p149 = por %p147, %p148
      %p150 = scmp.ne.s32.totalorder %s141, %s142
      %p151 = scmp.eq.s32.totalorder %s27, 0
      %p152 = por %p150, %p151
      %p153 = scmp.ne.s32.totalorder %s141, %s142
      %p154 = scmp.eq.s32.totalorder %s28, 9
      %p155 = por %p153, %p154
      %p157 = scmp.ne.s32.totalorder %s142, %s156
      %p158 = scmp.eq.s32.totalorder %s28, 0
      %p159 = por %p157, %p158
      %s161 = sadd.s32 %s160, 1
      %p164 = scmp.eq.s32.totalorder %s22, 9
      %p165 = scmp.ne.s32.totalorder %s160, %s162
      %p166 = scmp.eq.s32.totalorder %s22, 0
      %p167 = por %p165, %p166
      %p168 = scmp.ne.s32.totalorder %s160, %s162
      %p169 = scmp.eq.s32.totalorder %s27, 9
      %p170 = por %p168, %p169
      %p171 = scmp.ne.s32.totalorder %s162, %s163
      %p172 = scmp.eq.s32.totalorder %s27, 0
      %p173 = por %p171, %p172
      %p174 = scmp.ne.s32.totalorder %s162, %s163
      %p175 = scmp.eq.s32.totalorder %s28, 9
      %p176 = por %p174, %p175
      %p178 = scmp.ne.s32.totalorder %s163, %s177
      %p179 = scmp.eq.s32.totalorder %s28, 0
      %p180 = por %p178, %p179
      %s182 = sadd.s32 %s181, 1
      %p185 = scmp.eq.s32.totalorder %s22, 9
      %p186 = scmp.ne.s32.totalorder %s181, %s183
      %p187 = scmp.eq.s32.totalorder %s22, 0
      %p188 = por %p186, %p187
      %p189 = scmp.ne.s32.totalorder %s181, %s183
      %p190 = scmp.eq.s32.totalorder %s27, 9
      %p191 = por %p189, %p190
      %p192 = scmp.ne.s32.totalorder %s183, %s184
      %p193 = scmp.eq.s32.totalorder %s27, 0
      %p194 = por %p192, %p193
      %p195 = scmp.ne.s32.totalorder %s183, %s184
      %p196 = scmp.eq.s32.totalorder %s28, 9
      %p197 = por %p195, %p196
      %p199 = scmp.ne.s32.totalorder %s184, %s198
      %p200 = scmp.eq.s32.totalorder %s28, 0
      %p201 = por %p199, %p200
      %s202 = smul.u32 %s29, 4
      %s203 = ssub.s32 %s30, 1
      %p204 = scmp.gt.s32.totalorder %s203, 0
      %s205 = scalar_select %p204, %s203, 0
      %s206 = sadd.s32 %s202, %s205
      %s207 = smul.u32 %s41, 4
      %s208 = ssub.s32 %s37, 1
      %p209 = scmp.gt.s32.totalorder %s208, 0
      %s210 = scalar_select %p209, %s208, 0
      %s211 = sadd.s32 %s207, %s210
      %s212 = ssub.s32 %s206, %s211
      %p213 = scmp.eq.s32.totalorder %s212, 0
      %s215 = sadd.s32 %s214, 1
      %s216 = scalar_select %p213, %s214, %s215
      %p219 = pneg %p213
      %p220 = scmp.eq.s32.totalorder %s22, 9
      %p221 = por %p219, %p220
      %p222 = scmp.ne.s32.totalorder %s214, %s217
      %p223 = scmp.eq.s32.totalorder %s22, 0
      %p224 = por %p222, %p223
      %p225 = scmp.ne.s32.totalorder %s214, %s217
      %p226 = scmp.eq.s32.totalorder %s27, 9
      %p227 = por %p225, %p226
      %p228 = scmp.ne.s32.totalorder %s217, %s218
      %p229 = scmp.eq.s32.totalorder %s27, 0
      %p230 = por %p228, %p229
      %p231 = scmp.ne.s32.totalorder %s217, %s218
      %p232 = scmp.eq.s32.totalorder %s28, 9
      %p233 = por %p231, %p232
      %p235 = scmp.ne.s32.totalorder %s218, %s234
      %p236 = scmp.eq.s32.totalorder %s28, 0
      %p237 = por %p235, %p236
      %p238 = scmp.le.s32.totalorder 1, %s22
      %p239 = scmp.lt.s32.totalorder %s22, 11
      %p240 = pnand %p238, %p239
      %p241 = pneg %p240
      // Predicated region
      $region9: #{tpu_custom_call.1} parent=5 // pred_check
        _
      $region10: #{tpu_custom_call.1} parent=5 // pred_check_branch
        %243 = sbr.rel (%p240) target = $region12
      $region11: #{tpu_custom_call.1} parent=5 // pred_region
        %s244 = ssub.s32 %s22, 1
        // Predicated region
        $region13: #{tpu_custom_call.1} parent=11 // pred_check
          %p245 = pneg %p89
        $region14: #{tpu_custom_call.1} parent=11 // pred_check_branch
          %247 = sbr.rel (%p245) target = $region16
        $region15: #{tpu_custom_call.1} parent=11 // pred_region
          %249 = vsyncadd [#allocation10], 0
          %s250 = sshll.u32 %s1, 4
          %s251 = int_to_ptr.hbm [resolvable:$true] %s250
          %s252 = sshll.u32 [#allocation9], 4
          %s253 = int_to_ptr.vmem [resolvable:$true] %s252
          %258 = dma.hbm_to_vmem [thread:$0]  %s251, 4096, %s253, [#allocation10], 64, 64, 4
        $region16: #{tpu_custom_call.1} parent=11 // pred_fallthru
          _
        // Predicated region
        $region17: #{tpu_custom_call.1} parent=11 // pred_check
          %p259 = pneg %p110
        $region18: #{tpu_custom_call.1} parent=11 // pred_check_branch
          %261 = sbr.rel (%p259) target = $region20
        $region19: #{tpu_custom_call.1} parent=11 // pred_region
          %263 = vsyncadd [#allocation10], 0
          %s265 = sshll.u32 %s2, 4
          %s266 = int_to_ptr.hbm [resolvable:$true] %s265
          %s267 = sshll.u32 [#allocation11], 4
          %s268 = int_to_ptr.vmem [resolvable:$true] %s267
          %270 = dma.hbm_to_vmem [thread:$0]  %s266, 16, %s268, [#allocation10]
        $region20: #{tpu_custom_call.1} parent=11 // pred_fallthru
          _
        // Predicated region
        $region21: #{tpu_custom_call.1} parent=11 // pred_check
          %p271 = pneg %p131
        $region22: #{tpu_custom_call.1} parent=11 // pred_check_branch
          %273 = sbr.rel (%p271) target = $region24
        $region23: #{tpu_custom_call.1} parent=11 // pred_region
          %275 = vsyncadd [#allocation13], 0
          %s276 = sshll.u32 %s3, 4
          %s277 = int_to_ptr.hbm [resolvable:$true] %s276
          %s278 = sshll.u32 [#allocation12], 4
          %s279 = int_to_ptr.vmem [resolvable:$true] %s278
          %284 = dma.hbm_to_vmem [thread:$0]  %s277, 9216, %s279, [#allocation13], 64, 64, 4
        $region24: #{tpu_custom_call.1} parent=11 // pred_fallthru
          _
        // Predicated region
        $region25: #{tpu_custom_call.1} parent=11 // pred_check
          %p285 = pneg %p152
        $region26: #{tpu_custom_call.1} parent=11 // pred_check_branch
          %287 = sbr.rel (%p285) target = $region28
        $region27: #{tpu_custom_call.1} parent=11 // pred_region
          %289 = vsyncadd [#allocation13], 0
          %s291 = sshll.u32 %s4, 4
          %s292 = int_to_ptr.hbm [resolvable:$true] %s291
          %s293 = sshll.u32 [#allocation14], 4
          %s294 = int_to_ptr.vmem [resolvable:$true] %s293
          %296 = dma.hbm_to_vmem [thread:$0]  %s292, 16, %s294, [#allocation13]
        $region28: #{tpu_custom_call.1} parent=11 // pred_fallthru
          _
        // Predicated region
        $region29: #{tpu_custom_call.1} parent=11 // pred_check
          %p297 = pneg %p173
        $region30: #{tpu_custom_call.1} parent=11 // pred_check_branch
          %299 = sbr.rel (%p297) target = $region32
        $region31: #{tpu_custom_call.1} parent=11 // pred_region
          %301 = vsyncadd [#allocation16], 0
          %s302 = sshll.u32 %s5, 4
          %s303 = int_to_ptr.hbm [resolvable:$true] %s302
          %s304 = sshll.u32 [#allocation15], 4
          %s305 = int_to_ptr.vmem [resolvable:$true] %s304
          %310 = dma.hbm_to_vmem [thread:$0]  %s303, 4096, %s305, [#allocation16], 256, 256, 16
        $region32: #{tpu_custom_call.1} parent=11 // pred_fallthru
          _
        // Predicated region
        $region33: #{tpu_custom_call.1} parent=11 // pred_check
          %p311 = pneg %p194
        $region34: #{tpu_custom_call.1} parent=11 // pred_check_branch
          %313 = sbr.rel (%p311) target = $region36
        $region35: #{tpu_custom_call.1} parent=11 // pred_region
          %315 = vsyncadd [#allocation16], 0
          %s317 = sshll.u32 %s6, 4
          %s318 = int_to_ptr.hbm [resolvable:$true] %s317
          %s319 = sshll.u32 [#allocation17], 4
          %s320 = int_to_ptr.vmem [resolvable:$true] %s319
          %322 = dma.hbm_to_vmem [thread:$0]  %s318, 64, %s320, [#allocation16]
        $region36: #{tpu_custom_call.1} parent=11 // pred_fallthru
          _
      $region12: #{tpu_custom_call.1} parent=5 // pred_fallthru
        _
      %p323 = scmp.lt.s32.totalorder %s22, 10
      // Predicated region
      $region37: #{tpu_custom_call.1} parent=5 // pred_check
        %p324 = pneg %p323
      $region38: #{tpu_custom_call.1} parent=5 // pred_check_branch
        %326 = sbr.rel (%p324) target = $region40
      $region39: #{tpu_custom_call.1} parent=5 // pred_region
        // Predicated region
        $region41: #{tpu_custom_call.1} parent=39 // pred_check
          %p327 = pneg %p62
        $region42: #{tpu_custom_call.1} parent=39 // pred_check_branch
          %329 = sbr.rel (%p327) target = $region44
        $region43: #{tpu_custom_call.1} parent=39 // pred_region
          %s330 = sand.u32 %s52, 1
          %s331 = scalar_lea.sflag [#allocation7], %s330
          %s332 = sand.u32 %s52, 1
          %s333 = smul.addr %s332, 1024
          %s334 = scalar_lea.vmem [#allocation6], %s333
          %s335 = smul.u32 %s29, 4
          %p336 = scmp.lt.s32.totalorder %s30, 3
          %s337 = scalar_select %p336, %s30, 3
          %s338 = sadd.s32 %s335, %s337
          %s339 = smul.u32 32, %s338
          %341 = vsyncadd %s331, 0
          %s342 = smul.addr %s339, 4
          %s343 = smul.addr %s342, 8
          %s344 = scalar_lea.hbm %s0, %s343
          %s345 = sshll.u32 %s344, 4
          %s346 = int_to_ptr.hbm [resolvable:$true] %s345
          %s347 = sshll.u32 %s334, 4
          %s348 = int_to_ptr.vmem [resolvable:$true] %s347
          %353 = dma.hbm_to_vmem [thread:$0]  %s346, 16384, %s348, %s331, 512, 512, 32
        $region44: #{tpu_custom_call.1} parent=39 // pred_fallthru
          _
      $region40: #{tpu_custom_call.1} parent=5 // pred_fallthru
        _
      %p354 = scmp.le.s32.totalorder 1, %s22
      %p355 = scmp.lt.s32.totalorder %s22, 11
      %p356 = pnand %p354, %p355
      %p357 = pneg %p356
      // Predicated region
      $region45: #{tpu_custom_call.1} parent=5 // pred_check
        _
      $region46: #{tpu_custom_call.1} parent=5 // pred_check_branch
        %359 = sbr.rel (%p356) target = $region48
      $region47: #{tpu_custom_call.1} parent=5 // pred_region
        %s360 = ssub.s32 %s22, 1
        %s361 = sand.u32 %s55, 1
        %s362 = scalar_lea.sflag [#allocation7], %s361
        %s363 = sand.u32 %s55, 1
        %s364 = smul.addr %s363, 1024
        %s365 = scalar_lea.vmem [#allocation6], %s364
        // Predicated region
        $region49: #{tpu_custom_call.1} parent=47 // pred_check
          %p366 = pneg %p68
        $region50: #{tpu_custom_call.1} parent=47 // pred_check_branch
          %368 = sbr.rel (%p366) target = $region52
        $region51: #{tpu_custom_call.1} parent=47 // pred_region
          %370 = dma.done %s362, 16384
        $region52: #{tpu_custom_call.1} parent=47 // pred_fallthru
          _
        // Predicated region
        $region53: #{tpu_custom_call.1} parent=47 // pred_check
          %p371 = pneg %p89
        $region54: #{tpu_custom_call.1} parent=47 // pred_check_branch
          %373 = sbr.rel (%p371) target = $region56
        $region55: #{tpu_custom_call.1} parent=47 // pred_region
          %375 = dma.done [#allocation10], 4096
        $region56: #{tpu_custom_call.1} parent=47 // pred_fallthru
          _
        // Predicated region
        $region57: #{tpu_custom_call.1} parent=47 // pred_check
          %p376 = pneg %p110
        $region58: #{tpu_custom_call.1} parent=47 // pred_check_branch
          %378 = sbr.rel (%p376) target = $region60
        $region59: #{tpu_custom_call.1} parent=47 // pred_region
          %380 = dma.done [#allocation10], 16
        $region60: #{tpu_custom_call.1} parent=47 // pred_fallthru
          _
        // Predicated region
        $region61: #{tpu_custom_call.1} parent=47 // pred_check
          %p381 = pneg %p131
        $region62: #{tpu_custom_call.1} parent=47 // pred_check_branch
          %383 = sbr.rel (%p381) target = $region64
        $region63: #{tpu_custom_call.1} parent=47 // pred_region
          %385 = dma.done [#allocation13], 9216
        $region64: #{tpu_custom_call.1} parent=47 // pred_fallthru
          _
        // Predicated region
        $region65: #{tpu_custom_call.1} parent=47 // pred_check
          %p386 = pneg %p152
        $region66: #{tpu_custom_call.1} parent=47 // pred_check_branch
          %388 = sbr.rel (%p386) target = $region68
        $region67: #{tpu_custom_call.1} parent=47 // pred_region
          %390 = dma.done [#allocation13], 16
        $region68: #{tpu_custom_call.1} parent=47 // pred_fallthru
          _
        // Predicated region
        $region69: #{tpu_custom_call.1} parent=47 // pred_check
          %p391 = pneg %p173
        $region70: #{tpu_custom_call.1} parent=47 // pred_check_branch
          %393 = sbr.rel (%p391) target = $region72
        $region71: #{tpu_custom_call.1} parent=47 // pred_region
          %395 = dma.done [#allocation16], 4096
        $region72: #{tpu_custom_call.1} parent=47 // pred_fallthru
          _
        // Predicated region
        $region73: #{tpu_custom_call.1} parent=47 // pred_check
          %p396 = pneg %p194
        $region74: #{tpu_custom_call.1} parent=47 // pred_check_branch
          %398 = sbr.rel (%p396) target = $region76
        $region75: #{tpu_custom_call.1} parent=47 // pred_region
          %400 = dma.done [#allocation16], 64
        $region76: #{tpu_custom_call.1} parent=47 // pred_fallthru
          _
        %s401 = sand.u32 %s55, 1
        %s402 = scalar_lea.sflag [#allocation7], %s401
        %s403 = sand.u32 %s55, 1
        %s404 = smul.addr %s403, 1024
        %s405 = scalar_lea.vmem [#allocation6], %s404
        %p406 = pneg %p68
        %p407 = pneg %p65
        %p408 = pneg %p89
        %p409 = pneg %p86
        %p410 = pneg %p110
        %p411 = pneg %p107
        %p412 = pneg %p131
        %p413 = pneg %p128
        %p414 = pneg %p152
        %p415 = pneg %p149
        %p416 = pneg %p173
        %p417 = pneg %p170
        %p418 = pneg %p194
        %p419 = pneg %p191
        %p420 = pneg %p230
        %p421 = pneg %p227
        %s422 = sand.u32 %s217, 1
        %s423 = scalar_lea.sflag [#allocation8], %s422
        %s424 = sand.u32 %s217, 1
        %s425 = smul.addr %s424, 512
        %s426 = scalar_lea.vmem [#allocation18], %s425
        %s427 = smul.u32 %s31, 4
        %p428 = scmp.lt.s32.totalorder %s32, 3
        %s429 = scalar_select %p428, %s32, 3
        %s430 = sadd.s32 %s427, %s429
        %s431 = smul.u32 32, %s430
        %s432 = smul.u32 %s31, 4
        %s433 = ssub.s32 %s32, 1
        %p434 = scmp.gt.s32.totalorder %s433, 0
        %s435 = scalar_select %p434, %s433, 0
        %s436 = sadd.s32 %s432, %s435
        %s437 = smul.u32 32, %s436
        %v439 = vld [vmem:[%s365] sm:$0xff]
        %v440 = vld [vmem:[%s365 + $0x8] sm:$0xff]
        %v441 = vld [vmem:[%s365 + $0x10] sm:$0xff]
        %v442 = vld [vmem:[%s365 + $0x18] sm:$0xff]
        %v443 = vld [vmem:[%s365 + $0x20] sm:$0xff]
        %v444 = vld [vmem:[%s365 + $0x28] sm:$0xff]
        %v445 = vld [vmem:[%s365 + $0x30] sm:$0xff]
        %v446 = vld [vmem:[%s365 + $0x38] sm:$0xff]
        %v447 = vld [vmem:[%s365 + $0x40] sm:$0xff]
        %v448 = vld [vmem:[%s365 + $0x48] sm:$0xff]
        %v449 = vld [vmem:[%s365 + $0x50] sm:$0xff]
        %v450 = vld [vmem:[%s365 + $0x58] sm:$0xff]
        %v451 = vld [vmem:[%s365 + $0x60] sm:$0xff]
        %v452 = vld [vmem:[%s365 + $0x68] sm:$0xff]
        %v453 = vld [vmem:[%s365 + $0x70] sm:$0xff]
        %v454 = vld [vmem:[%s365 + $0x78] sm:$0xff]
        %v455 = vld [vmem:[%s365 + $0x80] sm:$0xff]
        %v456 = vld [vmem:[%s365 + $0x88] sm:$0xff]
        %v457 = vld [vmem:[%s365 + $0x90] sm:$0xff]
        %v458 = vld [vmem:[%s365 + $0x98] sm:$0xff]
        %v459 = vld [vmem:[%s365 + $0xa0] sm:$0xff]
        %v460 = vld [vmem:[%s365 + $0xa8] sm:$0xff]
        %v461 = vld [vmem:[%s365 + $0xb0] sm:$0xff]
        %v462 = vld [vmem:[%s365 + $0xb8] sm:$0xff]
        %v463 = vld [vmem:[%s365 + $0xc0] sm:$0xff]
        %v464 = vld [vmem:[%s365 + $0xc8] sm:$0xff]
        %v465 = vld [vmem:[%s365 + $0xd0] sm:$0xff]
        %v466 = vld [vmem:[%s365 + $0xd8] sm:$0xff]
        %v467 = vld [vmem:[%s365 + $0xe0] sm:$0xff]
        %v468 = vld [vmem:[%s365 + $0xe8] sm:$0xff]
        %v469 = vld [vmem:[%s365 + $0xf0] sm:$0xff]
        %v470 = vld [vmem:[%s365 + $0xf8] sm:$0xff]
        %v471 = vld [vmem:[%s365 + $0x100] sm:$0xff]
        %v472 = vld [vmem:[%s365 + $0x108] sm:$0xff]
        %v473 = vld [vmem:[%s365 + $0x110] sm:$0xff]
        %v474 = vld [vmem:[%s365 + $0x118] sm:$0xff]
        %v475 = vld [vmem:[%s365 + $0x120] sm:$0xff]
        %v476 = vld [vmem:[%s365 + $0x128] sm:$0xff]
        %v477 = vld [vmem:[%s365 + $0x130] sm:$0xff]
        %v478 = vld [vmem:[%s365 + $0x138] sm:$0xff]
        %v479 = vld [vmem:[%s365 + $0x140] sm:$0xff]
        %v480 = vld [vmem:[%s365 + $0x148] sm:$0xff]
        %v481 = vld [vmem:[%s365 + $0x150] sm:$0xff]
        %v482 = vld [vmem:[%s365 + $0x158] sm:$0xff]
        %v483 = vld [vmem:[%s365 + $0x160] sm:$0xff]
        %v484 = vld [vmem:[%s365 + $0x168] sm:$0xff]
        %v485 = vld [vmem:[%s365 + $0x170] sm:$0xff]
        %v486 = vld [vmem:[%s365 + $0x178] sm:$0xff]
        %v487 = vld [vmem:[%s365 + $0x180] sm:$0xff]
        %v488 = vld [vmem:[%s365 + $0x188] sm:$0xff]
        %v489 = vld [vmem:[%s365 + $0x190] sm:$0xff]
        %v490 = vld [vmem:[%s365 + $0x198] sm:$0xff]
        %v491 = vld [vmem:[%s365 + $0x1a0] sm:$0xff]
        %v492 = vld [vmem:[%s365 + $0x1a8] sm:$0xff]
        %v493 = vld [vmem:[%s365 + $0x1b0] sm:$0xff]
        %v494 = vld [vmem:[%s365 + $0x1b8] sm:$0xff]
        %v495 = vld [vmem:[%s365 + $0x1c0] sm:$0xff]
        %v496 = vld [vmem:[%s365 + $0x1c8] sm:$0xff]
        %v497 = vld [vmem:[%s365 + $0x1d0] sm:$0xff]
        %v498 = vld [vmem:[%s365 + $0x1d8] sm:$0xff]
        %v499 = vld [vmem:[%s365 + $0x1e0] sm:$0xff]
        %v500 = vld [vmem:[%s365 + $0x1e8] sm:$0xff]
        %v501 = vld [vmem:[%s365 + $0x1f0] sm:$0xff]
        %v502 = vld [vmem:[%s365 + $0x1f8] sm:$0xff]
        %v503 = vld [vmem:[%s365 + $0x200] sm:$0xff]
        %v504 = vld [vmem:[%s365 + $0x208] sm:$0xff]
        %v505 = vld [vmem:[%s365 + $0x210] sm:$0xff]
        %v506 = vld [vmem:[%s365 + $0x218] sm:$0xff]
        %v507 = vld [vmem:[%s365 + $0x220] sm:$0xff]
        %v508 = vld [vmem:[%s365 + $0x228] sm:$0xff]
        %v509 = vld [vmem:[%s365 + $0x230] sm:$0xff]
        %v510 = vld [vmem:[%s365 + $0x238] sm:$0xff]
        %v511 = vld [vmem:[%s365 + $0x240] sm:$0xff]
        %v512 = vld [vmem:[%s365 + $0x248] sm:$0xff]
        %v513 = vld [vmem:[%s365 + $0x250] sm:$0xff]
        %v514 = vld [vmem:[%s365 + $0x258] sm:$0xff]
        %v515 = vld [vmem:[%s365 + $0x260] sm:$0xff]
        %v516 = vld [vmem:[%s365 + $0x268] sm:$0xff]
        %v517 = vld [vmem:[%s365 + $0x270] sm:$0xff]
        %v518 = vld [vmem:[%s365 + $0x278] sm:$0xff]
        %v519 = vld [vmem:[%s365 + $0x280] sm:$0xff]
        %v520 = vld [vmem:[%s365 + $0x288] sm:$0xff]
        %v521 = vld [vmem:[%s365 + $0x290] sm:$0xff]
        %v522 = vld [vmem:[%s365 + $0x298] sm:$0xff]
        %v523 = vld [vmem:[%s365 + $0x2a0] sm:$0xff]
        %v524 = vld [vmem:[%s365 + $0x2a8] sm:$0xff]
        %v525 = vld [vmem:[%s365 + $0x2b0] sm:$0xff]
        %v526 = vld [vmem:[%s365 + $0x2b8] sm:$0xff]
        %v527 = vld [vmem:[%s365 + $0x2c0] sm:$0xff]
        %v528 = vld [vmem:[%s365 + $0x2c8] sm:$0xff]
        %v529 = vld [vmem:[%s365 + $0x2d0] sm:$0xff]
        %v530 = vld [vmem:[%s365 + $0x2d8] sm:$0xff]
        %v531 = vld [vmem:[%s365 + $0x2e0] sm:$0xff]
        %v532 = vld [vmem:[%s365 + $0x2e8] sm:$0xff]
        %v533 = vld [vmem:[%s365 + $0x2f0] sm:$0xff]
        %v534 = vld [vmem:[%s365 + $0x2f8] sm:$0xff]
        %v535 = vld [vmem:[%s365 + $0x300] sm:$0xff]
        %v536 = vld [vmem:[%s365 + $0x308] sm:$0xff]
        %v537 = vld [vmem:[%s365 + $0x310] sm:$0xff]
        %v538 = vld [vmem:[%s365 + $0x318] sm:$0xff]
        %v539 = vld [vmem:[%s365 + $0x320] sm:$0xff]
        %v540 = vld [vmem:[%s365 + $0x328] sm:$0xff]
        %v541 = vld [vmem:[%s365 + $0x330] sm:$0xff]
        %v542 = vld [vmem:[%s365 + $0x338] sm:$0xff]
        %v543 = vld [vmem:[%s365 + $0x340] sm:$0xff]
        %v544 = vld [vmem:[%s365 + $0x348] sm:$0xff]
        %v545 = vld [vmem:[%s365 + $0x350] sm:$0xff]
        %v546 = vld [vmem:[%s365 + $0x358] sm:$0xff]
        %v547 = vld [vmem:[%s365 + $0x360] sm:$0xff]
        %v548 = vld [vmem:[%s365 + $0x368] sm:$0xff]
        %v549 = vld [vmem:[%s365 + $0x370] sm:$0xff]
        %v550 = vld [vmem:[%s365 + $0x378] sm:$0xff]
        %v551 = vld [vmem:[%s365 + $0x380] sm:$0xff]
        %v552 = vld [vmem:[%s365 + $0x388] sm:$0xff]
        %v553 = vld [vmem:[%s365 + $0x390] sm:$0xff]
        %v554 = vld [vmem:[%s365 + $0x398] sm:$0xff]
        %v555 = vld [vmem:[%s365 + $0x3a0] sm:$0xff]
        %v556 = vld [vmem:[%s365 + $0x3a8] sm:$0xff]
        %v557 = vld [vmem:[%s365 + $0x3b0] sm:$0xff]
        %v558 = vld [vmem:[%s365 + $0x3b8] sm:$0xff]
        %v559 = vld [vmem:[%s365 + $0x3c0] sm:$0xff]
        %v560 = vld [vmem:[%s365 + $0x3c8] sm:$0xff]
        %v561 = vld [vmem:[%s365 + $0x3d0] sm:$0xff]
        %v562 = vld [vmem:[%s365 + $0x3d8] sm:$0xff]
        %v563 = vld [vmem:[%s365 + $0x3e0] sm:$0xff]
        %v564 = vld [vmem:[%s365 + $0x3e8] sm:$0xff]
        %v565 = vld [vmem:[%s365 + $0x3f0] sm:$0xff]
        %v566 = vld [vmem:[%s365 + $0x3f8] sm:$0xff]
        %v567 = vpack.c.bf16 %v443, %v439
        %v568 = vpack.c.bf16 %v444, %v440
        %v569 = vpack.c.bf16 %v445, %v441
        %v570 = vpack.c.bf16 %v446, %v442
        %v571 = vpack.c.bf16 %v451, %v447
        %v572 = vpack.c.bf16 %v452, %v448
        %v573 = vpack.c.bf16 %v453, %v449
        %v574 = vpack.c.bf16 %v454, %v450
        %v575 = vpack.c.bf16 %v459, %v455
        %v576 = vpack.c.bf16 %v460, %v456
        %v577 = vpack.c.bf16 %v461, %v457
        %v578 = vpack.c.bf16 %v462, %v458
        %v579 = vpack.c.bf16 %v467, %v463
        %v580 = vpack.c.bf16 %v468, %v464
        %v581 = vpack.c.bf16 %v469, %v465
        %v582 = vpack.c.bf16 %v470, %v466
        %v583 = vpack.c.bf16 %v475, %v471
        %v584 = vpack.c.bf16 %v476, %v472
        %v585 = vpack.c.bf16 %v477, %v473
        %v586 = vpack.c.bf16 %v478, %v474
        %v587 = vpack.c.bf16 %v483, %v479
        %v588 = vpack.c.bf16 %v484, %v480
        %v589 = vpack.c.bf16 %v485, %v481
        %v590 = vpack.c.bf16 %v486, %v482
        %v591 = vpack.c.bf16 %v491, %v487
        %v592 = vpack.c.bf16 %v492, %v488
        %v593 = vpack.c.bf16 %v493, %v489
        %v594 = vpack.c.bf16 %v494, %v490
        %v595 = vpack.c.bf16 %v499, %v495
        %v596 = vpack.c.bf16 %v500, %v496
        %v597 = vpack.c.bf16 %v501, %v497
        %v598 = vpack.c.bf16 %v502, %v498
        %v599 = vpack.c.bf16 %v507, %v503
        %v600 = vpack.c.bf16 %v508, %v504
        %v601 = vpack.c.bf16 %v509, %v505
        %v602 = vpack.c.bf16 %v510, %v506
        %v603 = vpack.c.bf16 %v515, %v511
        %v604 = vpack.c.bf16 %v516, %v512
        %v605 = vpack.c.bf16 %v517, %v513
        %v606 = vpack.c.bf16 %v518, %v514
        %v607 = vpack.c.bf16 %v523, %v519
        %v608 = vpack.c.bf16 %v524, %v520
        %v609 = vpack.c.bf16 %v525, %v521
        %v610 = vpack.c.bf16 %v526, %v522
        %v611 = vpack.c.bf16 %v531, %v527
        %v612 = vpack.c.bf16 %v532, %v528
        %v613 = vpack.c.bf16 %v533, %v529
        %v614 = vpack.c.bf16 %v534, %v530
        %v615 = vpack.c.bf16 %v539, %v535
        %v616 = vpack.c.bf16 %v540, %v536
        %v617 = vpack.c.bf16 %v541, %v537
        %v618 = vpack.c.bf16 %v542, %v538
        %v619 = vpack.c.bf16 %v547, %v543
        %v620 = vpack.c.bf16 %v548, %v544
        %v621 = vpack.c.bf16 %v549, %v545
        %v622 = vpack.c.bf16 %v550, %v546
        %v623 = vpack.c.bf16 %v555, %v551
        %v624 = vpack.c.bf16 %v556, %v552
        %v625 = vpack.c.bf16 %v557, %v553
        %v626 = vpack.c.bf16 %v558, %v554
        %v627 = vpack.c.bf16 %v563, %v559
        %v628 = vpack.c.bf16 %v564, %v560
        %v629 = vpack.c.bf16 %v565, %v561
        %v630 = vpack.c.bf16 %v566, %v562
        %v631 = vld [vmem:[#allocation9] sm:$0xf]
        %v632 = vld [vmem:[#allocation9 + $0x4] sm:$0xf]
        %v633 = vld [vmem:[#allocation9 + $0x8] sm:$0xf]
        %v634 = vld [vmem:[#allocation9 + $0xc] sm:$0xf]
        %v635 = vld [vmem:[#allocation9 + $0x10] sm:$0xf]
        %v636 = vld [vmem:[#allocation9 + $0x14] sm:$0xf]
        %v637 = vld [vmem:[#allocation9 + $0x18] sm:$0xf]
        %v638 = vld [vmem:[#allocation9 + $0x1c] sm:$0xf]
        %v639 = vld [vmem:[#allocation9 + $0x20] sm:$0xf]
        %v640 = vld [vmem:[#allocation9 + $0x24] sm:$0xf]
        %v641 = vld [vmem:[#allocation9 + $0x28] sm:$0xf]
        %v642 = vld [vmem:[#allocation9 + $0x2c] sm:$0xf]
        %v643 = vld [vmem:[#allocation9 + $0x30] sm:$0xf]
        %v644 = vld [vmem:[#allocation9 + $0x34] sm:$0xf]
        %v645 = vld [vmem:[#allocation9 + $0x38] sm:$0xf]
        %v646 = vld [vmem:[#allocation9 + $0x3c] sm:$0xf]
        %v647 = vld [vmem:[#allocation9 + $0x40] sm:$0xf]
        %v648 = vld [vmem:[#allocation9 + $0x44] sm:$0xf]
        %v649 = vld [vmem:[#allocation9 + $0x48] sm:$0xf]
        %v650 = vld [vmem:[#allocation9 + $0x4c] sm:$0xf]
        %v651 = vld [vmem:[#allocation9 + $0x50] sm:$0xf]
        %v652 = vld [vmem:[#allocation9 + $0x54] sm:$0xf]
        %v653 = vld [vmem:[#allocation9 + $0x58] sm:$0xf]
        %v654 = vld [vmem:[#allocation9 + $0x5c] sm:$0xf]
        %v655 = vld [vmem:[#allocation9 + $0x60] sm:$0xf]
        %v656 = vld [vmem:[#allocation9 + $0x64] sm:$0xf]
        %v657 = vld [vmem:[#allocation9 + $0x68] sm:$0xf]
        %v658 = vld [vmem:[#allocation9 + $0x6c] sm:$0xf]
        %v659 = vld [vmem:[#allocation9 + $0x70] sm:$0xf]
        %v660 = vld [vmem:[#allocation9 + $0x74] sm:$0xf]
        %v661 = vld [vmem:[#allocation9 + $0x78] sm:$0xf]
        %v662 = vld [vmem:[#allocation9 + $0x7c] sm:$0xf]
        %v663 = vld [vmem:[#allocation9 + $0x80] sm:$0xf]
        %v664 = vld [vmem:[#allocation9 + $0x84] sm:$0xf]
        %v665 = vld [vmem:[#allocation9 + $0x88] sm:$0xf]
        %v666 = vld [vmem:[#allocation9 + $0x8c] sm:$0xf]
        %v667 = vld [vmem:[#allocation9 + $0x90] sm:$0xf]
        %v668 = vld [vmem:[#allocation9 + $0x94] sm:$0xf]
        %v669 = vld [vmem:[#allocation9 + $0x98] sm:$0xf]
        %v670 = vld [vmem:[#allocation9 + $0x9c] sm:$0xf]
        %v671 = vld [vmem:[#allocation9 + $0xa0] sm:$0xf]
        %v672 = vld [vmem:[#allocation9 + $0xa4] sm:$0xf]
        %v673 = vld [vmem:[#allocation9 + $0xa8] sm:$0xf]
        %v674 = vld [vmem:[#allocation9 + $0xac] sm:$0xf]
        %v675 = vld [vmem:[#allocation9 + $0xb0] sm:$0xf]
        %v676 = vld [vmem:[#allocation9 + $0xb4] sm:$0xf]
        %v677 = vld [vmem:[#allocation9 + $0xb8] sm:$0xf]
        %v678 = vld [vmem:[#allocation9 + $0xbc] sm:$0xf]
        %v679 = vld [vmem:[#allocation9 + $0xc0] sm:$0xf]
        %v680 = vld [vmem:[#allocation9 + $0xc4] sm:$0xf]
        %v681 = vld [vmem:[#allocation9 + $0xc8] sm:$0xf]
        %v682 = vld [vmem:[#allocation9 + $0xcc] sm:$0xf]
        %v683 = vld [vmem:[#allocation9 + $0xd0] sm:$0xf]
        %v684 = vld [vmem:[#allocation9 + $0xd4] sm:$0xf]
        %v685 = vld [vmem:[#allocation9 + $0xd8] sm:$0xf]
        %v686 = vld [vmem:[#allocation9 + $0xdc] sm:$0xf]
        %v687 = vld [vmem:[#allocation9 + $0xe0] sm:$0xf]
        %v688 = vld [vmem:[#allocation9 + $0xe4] sm:$0xf]
        %v689 = vld [vmem:[#allocation9 + $0xe8] sm:$0xf]
        %v690 = vld [vmem:[#allocation9 + $0xec] sm:$0xf]
        %v691 = vld [vmem:[#allocation9 + $0xf0] sm:$0xf]
        %v692 = vld [vmem:[#allocation9 + $0xf4] sm:$0xf]
        %v693 = vld [vmem:[#allocation9 + $0xf8] sm:$0xf]
        %v694 = vld [vmem:[#allocation9 + $0xfc] sm:$0xf]
        %v695 = vld [vmem:[#allocation11] sm:$0x1]
        %v697 = vperm.slane %v695, 0
        %v763 = vunpack.c.l.b16 %v631
        %v764 = vunpack.c.l.b16 %v632
        %v765 = vunpack.c.l.b16 %v633
        %v766 = vunpack.c.l.b16 %v634
        %v767 = vunpack.c.l.b16 %v635
        %v768 = vunpack.c.l.b16 %v636
        %v769 = vunpack.c.l.b16 %v637
        %v770 = vunpack.c.l.b16 %v638
        %v771 = vunpack.c.l.b16 %v639
        %v772 = vunpack.c.l.b16 %v640
        %v773 = vunpack.c.l.b16 %v641
        %v774 = vunpack.c.l.b16 %v642
        %v775 = vunpack.c.l.b16 %v643
        %v776 = vunpack.c.l.b16 %v644
        %v777 = vunpack.c.l.b16 %v645
        %v778 = vunpack.c.l.b16 %v646
        %v779 = vunpack.c.l.b16 %v647
        %v780 = vunpack.c.l.b16 %v648
        %v781 = vunpack.c.l.b16 %v649
        %v782 = vunpack.c.l.b16 %v650
        %v783 = vunpack.c.l.b16 %v651
        %v784 = vunpack.c.l.b16 %v652
        %v785 = vunpack.c.l.b16 %v653
        %v786 = vunpack.c.l.b16 %v654
        %v787 = vunpack.c.l.b16 %v655
        %v788 = vunpack.c.l.b16 %v656
        %v789 = vunpack.c.l.b16 %v657
        %v790 = vunpack.c.l.b16 %v658
        %v791 = vunpack.c.l.b16 %v659
        %v792 = vunpack.c.l.b16 %v660
        %v793 = vunpack.c.l.b16 %v661
        %v794 = vunpack.c.l.b16 %v662
        %v795 = vunpack.c.l.b16 %v663
        %v796 = vunpack.c.l.b16 %v664
        %v797 = vunpack.c.l.b16 %v665
        %v798 = vunpack.c.l.b16 %v666
        %v799 = vunpack.c.l.b16 %v667
        %v800 = vunpack.c.l.b16 %v668
        %v801 = vunpack.c.l.b16 %v669
        %v802 = vunpack.c.l.b16 %v670
        %v803 = vunpack.c.l.b16 %v671
        %v804 = vunpack.c.l.b16 %v672
        %v805 = vunpack.c.l.b16 %v673
        %v806 = vunpack.c.l.b16 %v674
        %v807 = vunpack.c.l.b16 %v675
        %v808 = vunpack.c.l.b16 %v676
        %v809 = vunpack.c.l.b16 %v677
        %v810 = vunpack.c.l.b16 %v678
        %v811 = vunpack.c.l.b16 %v679
        %v812 = vunpack.c.l.b16 %v680
        %v813 = vunpack.c.l.b16 %v681
        %v814 = vunpack.c.l.b16 %v682
        %v815 = vunpack.c.l.b16 %v683
        %v816 = vunpack.c.l.b16 %v684
        %v817 = vunpack.c.l.b16 %v685
        %v818 = vunpack.c.l.b16 %v686
        %v819 = vunpack.c.l.b16 %v687
        %v820 = vunpack.c.l.b16 %v688
        %v821 = vunpack.c.l.b16 %v689
        %v822 = vunpack.c.l.b16 %v690
        %v823 = vunpack.c.l.b16 %v691
        %v824 = vunpack.c.l.b16 %v692
        %v825 = vunpack.c.l.b16 %v693
        %v826 = vunpack.c.l.b16 %v694
        %v827 = vpack.c.b16 %v764, %v763
        %v828 = vpack.c.b16 %v766, %v765
        %v829 = vpack.c.b16 %v768, %v767
        %v830 = vpack.c.b16 %v770, %v769
        %v831 = vpack.c.b16 %v772, %v771
        %v832 = vpack.c.b16 %v774, %v773
        %v833 = vpack.c.b16 %v776, %v775
        %v834 = vpack.c.b16 %v778, %v777
        %v835 = vpack.c.b16 %v780, %v779
        %v836 = vpack.c.b16 %v782, %v781
        %v837 = vpack.c.b16 %v784, %v783
        %v838 = vpack.c.b16 %v786, %v785
        %v839 = vpack.c.b16 %v788, %v787
        %v840 = vpack.c.b16 %v790, %v789
        %v841 = vpack.c.b16 %v792, %v791
        %v842 = vpack.c.b16 %v794, %v793
        %v843 = vpack.c.b16 %v796, %v795
        %v844 = vpack.c.b16 %v798, %v797
        %v845 = vpack.c.b16 %v800, %v799
        %v846 = vpack.c.b16 %v802, %v801
        %v847 = vpack.c.b16 %v804, %v803
        %v848 = vpack.c.b16 %v806, %v805
        %v849 = vpack.c.b16 %v808, %v807
        %v850 = vpack.c.b16 %v810, %v809
        %v851 = vpack.c.b16 %v812, %v811
        %v852 = vpack.c.b16 %v814, %v813
        %v853 = vpack.c.b16 %v816, %v815
        %v854 = vpack.c.b16 %v818, %v817
        %v855 = vpack.c.b16 %v820, %v819
        %v856 = vpack.c.b16 %v822, %v821
        %v857 = vpack.c.b16 %v824, %v823
        %v858 = vpack.c.b16 %v826, %v825
        %891 = vmatpush.bf16.msra.mxu0 %v834
        %892 = vmatpush.bf16.msra.mxu0 %v833
        %893 = vmatpush.bf16.msra.mxu0 %v832
        %894 = vmatpush.bf16.msra.mxu0 %v831
        %895 = vmatpush.bf16.msra.mxu0 %v830
        %896 = vmatpush.bf16.msra.mxu0 %v829
        %897 = vmatpush.bf16.msra.mxu0 %v828
        %898 = vmatpush.bf16.msra.mxu0 %v827
        %899 = vmatmul.bf16.gmra.mxu0 %v567
        %v900 = vpop.f32.mrf.mxu0
        %v901 = vadd.f32 %v697, %v900
        %v902 = vpop.f32.mrf.mxu0
        %v903 = vadd.f32 %v697, %v902
        %904 = vmatmul.bf16.gmra.mxu0 %v571
        %v905 = vpop.f32.mrf.mxu0
        %v906 = vadd.f32 %v697, %v905
        %v907 = vpop.f32.mrf.mxu0
        %v908 = vadd.f32 %v697, %v907
        %909 = vmatmul.bf16.gmra.mxu0 %v575
        %v910 = vpop.f32.mrf.mxu0
        %v911 = vadd.f32 %v697, %v910
        %v912 = vpop.f32.mrf.mxu0
        %v913 = vadd.f32 %v697, %v912
        %914 = vmatmul.bf16.gmra.mxu0 %v579
        %v915 = vpop.f32.mrf.mxu0
        %v916 = vadd.f32 %v697, %v915
        %v917 = vpop.f32.mrf.mxu0
        %v918 = vadd.f32 %v697, %v917
        %919 = vmatmul.bf16.gmra.mxu0 %v583
        %v920 = vpop.f32.mrf.mxu0
        %v921 = vadd.f32 %v697, %v920
        %v922 = vpop.f32.mrf.mxu0
        %v923 = vadd.f32 %v697, %v922
        %924 = vmatmul.bf16.gmra.mxu0 %v587
        %v925 = vpop.f32.mrf.mxu0
        %v926 = vadd.f32 %v697, %v925
        %v927 = vpop.f32.mrf.mxu0
        %v928 = vadd.f32 %v697, %v927
        %929 = vmatmul.bf16.gmra.mxu0 %v591
        %v930 = vpop.f32.mrf.mxu0
        %v931 = vadd.f32 %v697, %v930
        %v932 = vpop.f32.mrf.mxu0
        %v933 = vadd.f32 %v697, %v932
        %934 = vmatmul.bf16.gmra.mxu0 %v595
        %v935 = vpop.f32.mrf.mxu0
        %v936 = vadd.f32 %v697, %v935
        %v937 = vpop.f32.mrf.mxu0
        %v938 = vadd.f32 %v697, %v937
        %939 = vmatmul.bf16.gmra.mxu0 %v599
        %v940 = vpop.f32.mrf.mxu0
        %v941 = vadd.f32 %v697, %v940
        %v942 = vpop.f32.mrf.mxu0
        %v943 = vadd.f32 %v697, %v942
        %944 = vmatmul.bf16.gmra.mxu0 %v603
        %v945 = vpop.f32.mrf.mxu0
        %v946 = vadd.f32 %v697, %v945
        %v947 = vpop.f32.mrf.mxu0
        %v948 = vadd.f32 %v697, %v947
        %949 = vmatmul.bf16.gmra.mxu0 %v607
        %v950 = vpop.f32.mrf.mxu0
        %v951 = vadd.f32 %v697, %v950
        %v952 = vpop.f32.mrf.mxu0
        %v953 = vadd.f32 %v697, %v952
        %954 = vmatmul.bf16.gmra.mxu0 %v611
        %v955 = vpop.f32.mrf.mxu0
        %v956 = vadd.f32 %v697, %v955
        %v957 = vpop.f32.mrf.mxu0
        %v958 = vadd.f32 %v697, %v957
        %959 = vmatmul.bf16.gmra.mxu0 %v615
        %v960 = vpop.f32.mrf.mxu0
        %v961 = vadd.f32 %v697, %v960
        %v962 = vpop.f32.mrf.mxu0
        %v963 = vadd.f32 %v697, %v962
        %964 = vmatmul.bf16.gmra.mxu0 %v619
        %v965 = vpop.f32.mrf.mxu0
        %v966 = vadd.f32 %v697, %v965
        %v967 = vpop.f32.mrf.mxu0
        %v968 = vadd.f32 %v697, %v967
        %969 = vmatmul.bf16.gmra.mxu0 %v623
        %v970 = vpop.f32.mrf.mxu0
        %v971 = vadd.f32 %v697, %v970
        %v972 = vpop.f32.mrf.mxu0
        %v973 = vadd.f32 %v697, %v972
        %974 = vmatmul.bf16.gmra.mxu0 %v627
        %v975 = vpop.f32.mrf.mxu0
        %v976 = vadd.f32 %v697, %v975
        %v977 = vpop.f32.mrf.mxu0
        %v978 = vadd.f32 %v697, %v977
        %979 = vdwg.mxu0
        %980 = vmatpush.bf16.msra.mxu0 %v842
        %981 = vmatpush.bf16.msra.mxu0 %v841
        %982 = vmatpush.bf16.msra.mxu0 %v840
        %983 = vmatpush.bf16.msra.mxu0 %v839
        %984 = vmatpush.bf16.msra.mxu0 %v838
        %985 = vmatpush.bf16.msra.mxu0 %v837
        %986 = vmatpush.bf16.msra.mxu0 %v836
        %987 = vmatpush.bf16.msra.mxu0 %v835
        %988 = vmatmul.bf16.gmra.mxu0 %v568
        %v989 = vpop.f32.mrf.mxu0
        %v990 = vadd.f32 %v901, %v989
        %v991 = vpop.f32.mrf.mxu0
        %v992 = vadd.f32 %v903, %v991
        %993 = vmatmul.bf16.gmra.mxu0 %v572
        %v994 = vpop.f32.mrf.mxu0
        %v995 = vadd.f32 %v906, %v994
        %v996 = vpop.f32.mrf.mxu0
        %v997 = vadd.f32 %v908, %v996
        %998 = vmatmul.bf16.gmra.mxu0 %v576
        %v999 = vpop.f32.mrf.mxu0
        %v1000 = vadd.f32 %v911, %v999
        %v1001 = vpop.f32.mrf.mxu0
        %v1002 = vadd.f32 %v913, %v1001
        %1003 = vmatmul.bf16.gmra.mxu0 %v580
        %v1004 = vpop.f32.mrf.mxu0
        %v1005 = vadd.f32 %v916, %v1004
        %v1006 = vpop.f32.mrf.mxu0
        %v1007 = vadd.f32 %v918, %v1006
        %1008 = vmatmul.bf16.gmra.mxu0 %v584
        %v1009 = vpop.f32.mrf.mxu0
        %v1010 = vadd.f32 %v921, %v1009
        %v1011 = vpop.f32.mrf.mxu0
        %v1012 = vadd.f32 %v923, %v1011
        %1013 = vmatmul.bf16.gmra.mxu0 %v588
        %v1014 = vpop.f32.mrf.mxu0
        %v1015 = vadd.f32 %v926, %v1014
        %v1016 = vpop.f32.mrf.mxu0
        %v1017 = vadd.f32 %v928, %v1016
        %1018 = vmatmul.bf16.gmra.mxu0 %v592
        %v1019 = vpop.f32.mrf.mxu0
        %v1020 = vadd.f32 %v931, %v1019
        %v1021 = vpop.f32.mrf.mxu0
        %v1022 = vadd.f32 %v933, %v1021
        %1023 = vmatmul.bf16.gmra.mxu0 %v596
        %v1024 = vpop.f32.mrf.mxu0
        %v1025 = vadd.f32 %v936, %v1024
        %v1026 = vpop.f32.mrf.mxu0
        %v1027 = vadd.f32 %v938, %v1026
        %1028 = vmatmul.bf16.gmra.mxu0 %v600
        %v1029 = vpop.f32.mrf.mxu0
        %v1030 = vadd.f32 %v941, %v1029
        %v1031 = vpop.f32.mrf.mxu0
        %v1032 = vadd.f32 %v943, %v1031
        %1033 = vmatmul.bf16.gmra.mxu0 %v604
        %v1034 = vpop.f32.mrf.mxu0
        %v1035 = vadd.f32 %v946, %v1034
        %v1036 = vpop.f32.mrf.mxu0
        %v1037 = vadd.f32 %v948, %v1036
        %1038 = vmatmul.bf16.gmra.mxu0 %v608
        %v1039 = vpop.f32.mrf.mxu0
        %v1040 = vadd.f32 %v951, %v1039
        %v1041 = vpop.f32.mrf.mxu0
        %v1042 = vadd.f32 %v953, %v1041
        %1043 = vmatmul.bf16.gmra.mxu0 %v612
        %v1044 = vpop.f32.mrf.mxu0
        %v1045 = vadd.f32 %v956, %v1044
        %v1046 = vpop.f32.mrf.mxu0
        %v1047 = vadd.f32 %v958, %v1046
        %1048 = vmatmul.bf16.gmra.mxu0 %v616
        %v1049 = vpop.f32.mrf.mxu0
        %v1050 = vadd.f32 %v961, %v1049
        %v1051 = vpop.f32.mrf.mxu0
        %v1052 = vadd.f32 %v963, %v1051
        %1053 = vmatmul.bf16.gmra.mxu0 %v620
        %v1054 = vpop.f32.mrf.mxu0
        %v1055 = vadd.f32 %v966, %v1054
        %v1056 = vpop.f32.mrf.mxu0
        %v1057 = vadd.f32 %v968, %v1056
        %1058 = vmatmul.bf16.gmra.mxu0 %v624
        %v1059 = vpop.f32.mrf.mxu0
        %v1060 = vadd.f32 %v971, %v1059
        %v1061 = vpop.f32.mrf.mxu0
        %v1062 = vadd.f32 %v973, %v1061
        %1063 = vmatmul.bf16.gmra.mxu0 %v628
        %v1064 = vpop.f32.mrf.mxu0
        %v1065 = vadd.f32 %v976, %v1064
        %v1066 = vpop.f32.mrf.mxu0
        %v1067 = vadd.f32 %v978, %v1066
        %1068 = vdwg.mxu0
        %1069 = vmatpush.bf16.msra.mxu0 %v850
        %1070 = vmatpush.bf16.msra.mxu0 %v849
        %1071 = vmatpush.bf16.msra.mxu0 %v848
        %1072 = vmatpush.bf16.msra.mxu0 %v847
        %1073 = vmatpush.bf16.msra.mxu0 %v846
        %1074 = vmatpush.bf16.msra.mxu0 %v845
        %1075 = vmatpush.bf16.msra.mxu0 %v844
        %1076 = vmatpush.bf16.msra.mxu0 %v843
        %1077 = vmatmul.bf16.gmra.mxu0 %v569
        %v1078 = vpop.f32.mrf.mxu0
        %v1079 = vadd.f32 %v990, %v1078
        %v1080 = vpop.f32.mrf.mxu0
        %v1081 = vadd.f32 %v992, %v1080
        %1082 = vmatmul.bf16.gmra.mxu0 %v573
        %v1083 = vpop.f32.mrf.mxu0
        %v1084 = vadd.f32 %v995, %v1083
        %v1085 = vpop.f32.mrf.mxu0
        %v1086 = vadd.f32 %v997, %v1085
        %1087 = vmatmul.bf16.gmra.mxu0 %v577
        %v1088 = vpop.f32.mrf.mxu0
        %v1089 = vadd.f32 %v1000, %v1088
        %v1090 = vpop.f32.mrf.mxu0
        %v1091 = vadd.f32 %v1002, %v1090
        %1092 = vmatmul.bf16.gmra.mxu0 %v581
        %v1093 = vpop.f32.mrf.mxu0
        %v1094 = vadd.f32 %v1005, %v1093
        %v1095 = vpop.f32.mrf.mxu0
        %v1096 = vadd.f32 %v1007, %v1095
        %1097 = vmatmul.bf16.gmra.mxu0 %v585
        %v1098 = vpop.f32.mrf.mxu0
        %v1099 = vadd.f32 %v1010, %v1098
        %v1100 = vpop.f32.mrf.mxu0
        %v1101 = vadd.f32 %v1012, %v1100
        %1102 = vmatmul.bf16.gmra.mxu0 %v589
        %v1103 = vpop.f32.mrf.mxu0
        %v1104 = vadd.f32 %v1015, %v1103
        %v1105 = vpop.f32.mrf.mxu0
        %v1106 = vadd.f32 %v1017, %v1105
        %1107 = vmatmul.bf16.gmra.mxu0 %v593
        %v1108 = vpop.f32.mrf.mxu0
        %v1109 = vadd.f32 %v1020, %v1108
        %v1110 = vpop.f32.mrf.mxu0
        %v1111 = vadd.f32 %v1022, %v1110
        %1112 = vmatmul.bf16.gmra.mxu0 %v597
        %v1113 = vpop.f32.mrf.mxu0
        %v1114 = vadd.f32 %v1025, %v1113
        %v1115 = vpop.f32.mrf.mxu0
        %v1116 = vadd.f32 %v1027, %v1115
        %1117 = vmatmul.bf16.gmra.mxu0 %v601
        %v1118 = vpop.f32.mrf.mxu0
        %v1119 = vadd.f32 %v1030, %v1118
        %v1120 = vpop.f32.mrf.mxu0
        %v1121 = vadd.f32 %v1032, %v1120
        %1122 = vmatmul.bf16.gmra.mxu0 %v605
        %v1123 = vpop.f32.mrf.mxu0
        %v1124 = vadd.f32 %v1035, %v1123
        %v1125 = vpop.f32.mrf.mxu0
        %v1126 = vadd.f32 %v1037, %v1125
        %1127 = vmatmul.bf16.gmra.mxu0 %v609
        %v1128 = vpop.f32.mrf.mxu0
        %v1129 = vadd.f32 %v1040, %v1128
        %v1130 = vpop.f32.mrf.mxu0
        %v1131 = vadd.f32 %v1042, %v1130
        %1132 = vmatmul.bf16.gmra.mxu0 %v613
        %v1133 = vpop.f32.mrf.mxu0
        %v1134 = vadd.f32 %v1045, %v1133
        %v1135 = vpop.f32.mrf.mxu0
        %v1136 = vadd.f32 %v1047, %v1135
        %1137 = vmatmul.bf16.gmra.mxu0 %v617
        %v1138 = vpop.f32.mrf.mxu0
        %v1139 = vadd.f32 %v1050, %v1138
        %v1140 = vpop.f32.mrf.mxu0
        %v1141 = vadd.f32 %v1052, %v1140
        %1142 = vmatmul.bf16.gmra.mxu0 %v621
        %v1143 = vpop.f32.mrf.mxu0
        %v1144 = vadd.f32 %v1055, %v1143
        %v1145 = vpop.f32.mrf.mxu0
        %v1146 = vadd.f32 %v1057, %v1145
        %1147 = vmatmul.bf16.gmra.mxu0 %v625
        %v1148 = vpop.f32.mrf.mxu0
        %v1149 = vadd.f32 %v1060, %v1148
        %v1150 = vpop.f32.mrf.mxu0
        %v1151 = vadd.f32 %v1062, %v1150
        %1152 = vmatmul.bf16.gmra.mxu0 %v629
        %v1153 = vpop.f32.mrf.mxu0
        %v1154 = vadd.f32 %v1065, %v1153
        %v1155 = vpop.f32.mrf.mxu0
        %v1156 = vadd.f32 %v1067, %v1155
        %1157 = vdwg.mxu0
        %1158 = vmatpush.bf16.msra.mxu0 %v858
        %1159 = vmatpush.bf16.msra.mxu0 %v857
        %1160 = vmatpush.bf16.msra.mxu0 %v856
        %1161 = vmatpush.bf16.msra.mxu0 %v855
        %1162 = vmatpush.bf16.msra.mxu0 %v854
        %1163 = vmatpush.bf16.msra.mxu0 %v853
        %1164 = vmatpush.bf16.msra.mxu0 %v852
        %1165 = vmatpush.bf16.msra.mxu0 %v851
        %1166 = vmatmul.bf16.gmra.mxu0 %v570
        %v1167 = vpop.f32.mrf.mxu0
        %v1168 = vadd.f32 %v1079, %v1167
        %v1169 = vpop.f32.mrf.mxu0
        %v1170 = vadd.f32 %v1081, %v1169
        %1171 = vmatmul.bf16.gmra.mxu0 %v574
        %v1172 = vpop.f32.mrf.mxu0
        %v1173 = vadd.f32 %v1084, %v1172
        %v1174 = vpop.f32.mrf.mxu0
        %v1175 = vadd.f32 %v1086, %v1174
        %1176 = vmatmul.bf16.gmra.mxu0 %v578
        %v1177 = vpop.f32.mrf.mxu0
        %v1178 = vadd.f32 %v1089, %v1177
        %v1179 = vpop.f32.mrf.mxu0
        %v1180 = vadd.f32 %v1091, %v1179
        %1181 = vmatmul.bf16.gmra.mxu0 %v582
        %v1182 = vpop.f32.mrf.mxu0
        %v1183 = vadd.f32 %v1094, %v1182
        %v1184 = vpop.f32.mrf.mxu0
        %v1185 = vadd.f32 %v1096, %v1184
        %1186 = vmatmul.bf16.gmra.mxu0 %v586
        %v1187 = vpop.f32.mrf.mxu0
        %v1188 = vadd.f32 %v1099, %v1187
        %v1189 = vpop.f32.mrf.mxu0
        %v1190 = vadd.f32 %v1101, %v1189
        %1191 = vmatmul.bf16.gmra.mxu0 %v590
        %v1192 = vpop.f32.mrf.mxu0
        %v1193 = vadd.f32 %v1104, %v1192
        %v1194 = vpop.f32.mrf.mxu0
        %v1195 = vadd.f32 %v1106, %v1194
        %1196 = vmatmul.bf16.gmra.mxu0 %v594
        %v1197 = vpop.f32.mrf.mxu0
        %v1198 = vadd.f32 %v1109, %v1197
        %v1199 = vpop.f32.mrf.mxu0
        %v1200 = vadd.f32 %v1111, %v1199
        %1201 = vmatmul.bf16.gmra.mxu0 %v598
        %v1202 = vpop.f32.mrf.mxu0
        %v1203 = vadd.f32 %v1114, %v1202
        %v1204 = vpop.f32.mrf.mxu0
        %v1205 = vadd.f32 %v1116, %v1204
        %1206 = vmatmul.bf16.gmra.mxu0 %v602
        %v1207 = vpop.f32.mrf.mxu0
        %v1208 = vadd.f32 %v1119, %v1207
        %v1209 = vpop.f32.mrf.mxu0
        %v1210 = vadd.f32 %v1121, %v1209
        %1211 = vmatmul.bf16.gmra.mxu0 %v606
        %v1212 = vpop.f32.mrf.mxu0
        %v1213 = vadd.f32 %v1124, %v1212
        %v1214 = vpop.f32.mrf.mxu0
        %v1215 = vadd.f32 %v1126, %v1214
        %1216 = vmatmul.bf16.gmra.mxu0 %v610
        %v1217 = vpop.f32.mrf.mxu0
        %v1218 = vadd.f32 %v1129, %v1217
        %v1219 = vpop.f32.mrf.mxu0
        %v1220 = vadd.f32 %v1131, %v1219
        %1221 = vmatmul.bf16.gmra.mxu0 %v614
        %v1222 = vpop.f32.mrf.mxu0
        %v1223 = vadd.f32 %v1134, %v1222
        %v1224 = vpop.f32.mrf.mxu0
        %v1225 = vadd.f32 %v1136, %v1224
        %1226 = vmatmul.bf16.gmra.mxu0 %v618
        %v1227 = vpop.f32.mrf.mxu0
        %v1228 = vadd.f32 %v1139, %v1227
        %v1229 = vpop.f32.mrf.mxu0
        %v1230 = vadd.f32 %v1141, %v1229
        %1231 = vmatmul.bf16.gmra.mxu0 %v622
        %v1232 = vpop.f32.mrf.mxu0
        %v1233 = vadd.f32 %v1144, %v1232
        %v1234 = vpop.f32.mrf.mxu0
        %v1235 = vadd.f32 %v1146, %v1234
        %1236 = vmatmul.bf16.gmra.mxu0 %v626
        %v1237 = vpop.f32.mrf.mxu0
        %v1238 = vadd.f32 %v1149, %v1237
        %v1239 = vpop.f32.mrf.mxu0
        %v1240 = vadd.f32 %v1151, %v1239
        %1241 = vmatmul.bf16.gmra.mxu0 %v630
        %v1242 = vpop.f32.mrf.mxu0
        %v1243 = vadd.f32 %v1154, %v1242
        %v1244 = vpop.f32.mrf.mxu0
        %v1245 = vadd.f32 %v1156, %v1244
        %1246 = vdwg.mxu0
        %v1247 = vmax.f32 %v1168, 0.0
        %v1248 = vmax.f32 %v1170, 0.0
        %v1249 = vmax.f32 %v1173, 0.0
        %v1250 = vmax.f32 %v1175, 0.0
        %v1251 = vmax.f32 %v1178, 0.0
        %v1252 = vmax.f32 %v1180, 0.0
        %v1253 = vmax.f32 %v1183, 0.0
        %v1254 = vmax.f32 %v1185, 0.0
        %v1255 = vmax.f32 %v1188, 0.0
        %v1256 = vmax.f32 %v1190, 0.0
        %v1257 = vmax.f32 %v1193, 0.0
        %v1258 = vmax.f32 %v1195, 0.0
        %v1259 = vmax.f32 %v1198, 0.0
        %v1260 = vmax.f32 %v1200, 0.0
        %v1261 = vmax.f32 %v1203, 0.0
        %v1262 = vmax.f32 %v1205, 0.0
        %v1263 = vmax.f32 %v1208, 0.0
        %v1264 = vmax.f32 %v1210, 0.0
        %v1265 = vmax.f32 %v1213, 0.0
        %v1266 = vmax.f32 %v1215, 0.0
        %v1267 = vmax.f32 %v1218, 0.0
        %v1268 = vmax.f32 %v1220, 0.0
        %v1269 = vmax.f32 %v1223, 0.0
        %v1270 = vmax.f32 %v1225, 0.0
        %v1271 = vmax.f32 %v1228, 0.0
        %v1272 = vmax.f32 %v1230, 0.0
        %v1273 = vmax.f32 %v1233, 0.0
        %v1274 = vmax.f32 %v1235, 0.0
        %v1275 = vmax.f32 %v1238, 0.0
        %v1276 = vmax.f32 %v1240, 0.0
        %v1277 = vmax.f32 %v1243, 0.0
        %v1278 = vmax.f32 %v1245, 0.0
        %v1279 = vpack.c.bf16 %v1247, %v1247
        %v1280 = vpack.c.bf16 %v1248, %v1248
        %v1281 = vpack.c.bf16 %v1249, %v1249
        %v1282 = vpack.c.bf16 %v1250, %v1250
        %v1283 = vpack.c.bf16 %v1251, %v1251
        %v1284 = vpack.c.bf16 %v1252, %v1252
        %v1285 = vpack.c.bf16 %v1253, %v1253
        %v1286 = vpack.c.bf16 %v1254, %v1254
        %v1287 = vpack.c.bf16 %v1255, %v1255
        %v1288 = vpack.c.bf16 %v1256, %v1256
        %v1289 = vpack.c.bf16 %v1257, %v1257
        %v1290 = vpack.c.bf16 %v1258, %v1258
        %v1291 = vpack.c.bf16 %v1259, %v1259
        %v1292 = vpack.c.bf16 %v1260, %v1260
        %v1293 = vpack.c.bf16 %v1261, %v1261
        %v1294 = vpack.c.bf16 %v1262, %v1262
        %v1295 = vpack.c.bf16 %v1263, %v1263
        %v1296 = vpack.c.bf16 %v1264, %v1264
        %v1297 = vpack.c.bf16 %v1265, %v1265
        %v1298 = vpack.c.bf16 %v1266, %v1266
        %v1299 = vpack.c.bf16 %v1267, %v1267
        %v1300 = vpack.c.bf16 %v1268, %v1268
        %v1301 = vpack.c.bf16 %v1269, %v1269
        %v1302 = vpack.c.bf16 %v1270, %v1270
        %v1303 = vpack.c.bf16 %v1271, %v1271
        %v1304 = vpack.c.bf16 %v1272, %v1272
        %v1305 = vpack.c.bf16 %v1273, %v1273
        %v1306 = vpack.c.bf16 %v1274, %v1274
        %v1307 = vpack.c.bf16 %v1275, %v1275
        %v1308 = vpack.c.bf16 %v1276, %v1276
        %v1309 = vpack.c.bf16 %v1277, %v1277
        %v1310 = vpack.c.bf16 %v1278, %v1278
        %p1311 = scmp.gt.s32.totalorder %s32, 0
        // Predicated region
        $region77: #{tpu_custom_call.1} parent=47 // pred_check
          %p1312 = pneg %p1311
        $region78: #{tpu_custom_call.1} parent=47 // pred_check_branch
          %1314 = sbr.rel (%p1312) target = $region80
        $region79: #{tpu_custom_call.1} parent=47 // pred_region
          %s1315 = ssub.s32 %s32, 1
          %p1316 = scmp.gt.s32.totalorder %s1315, 0
          %v1317 = vld [vmem:[#allocation3] sm:$0xf]
          %v1318 = vld [vmem:[#allocation3 + $0x4] sm:$0xf]
          %v1319 = vld [vmem:[#allocation3 + $0x8] sm:$0xf]
          %v1320 = vld [vmem:[#allocation3 + $0xc] sm:$0xf]
          %v1321 = vld [vmem:[#allocation3 + $0x10] sm:$0xf]
          %v1322 = vld [vmem:[#allocation3 + $0x14] sm:$0xf]
          %v1323 = vld [vmem:[#allocation3 + $0x18] sm:$0xf]
          %v1324 = vld [vmem:[#allocation3 + $0x1c] sm:$0xf]
          %s1325 = scalar_select %p1316, 1, 0
          %v1326 = vstv %s1325
          %vm1327 = vcmp.eq.s32.totalorder %v1326, 1
          %v1328 = vsel %vm1327, %v1317, 0
          %v1329 = vsel %vm1327, %v1318, 0
          %v1330 = vsel %vm1327, %v1319, 0
          %v1331 = vsel %vm1327, %v1320, 0
          %v1332 = vsel %vm1327, %v1321, 0
          %v1333 = vsel %vm1327, %v1322, 0
          %v1334 = vsel %vm1327, %v1323, 0
          %v1335 = vsel %vm1327, %v1324, 0
          %p1336 = scmp.lt.s32.totalorder %s1315, 3
          %s1337 = scalar_select %p1336, 1, 0
          %v1338 = vstv %s1337
          %vm1339 = vcmp.eq.s32.totalorder %v1338, 1
          %v1340 = vsel %vm1339, %v1279, 0
          %v1341 = vsel %vm1339, %v1280, 0
          %v1342 = vsel %vm1339, %v1281, 0
          %v1343 = vsel %vm1339, %v1282, 0
          %v1344 = vsel %vm1339, %v1283, 0
          %v1345 = vsel %vm1339, %v1284, 0
          %v1346 = vsel %vm1339, %v1285, 0
          %v1347 = vsel %vm1339, %v1286, 0
          %v1348 = vld [vmem:[#allocation2] sm:$0xf]
          %v1349 = vld [vmem:[#allocation2 + $0x4] sm:$0xf]
          %v1350 = vld [vmem:[#allocation2 + $0x8] sm:$0xf]
          %v1351 = vld [vmem:[#allocation2 + $0xc] sm:$0xf]
          %v1352 = vld [vmem:[#allocation2 + $0x10] sm:$0xf]
          %v1353 = vld [vmem:[#allocation2 + $0x14] sm:$0xf]
          %v1354 = vld [vmem:[#allocation2 + $0x18] sm:$0xf]
          %v1355 = vld [vmem:[#allocation2 + $0x1c] sm:$0xf]
          %v1356 = vld [vmem:[#allocation2 + $0x20] sm:$0xf]
          %v1357 = vld [vmem:[#allocation2 + $0x24] sm:$0xf]
          %v1358 = vld [vmem:[#allocation2 + $0x28] sm:$0xf]
          %v1359 = vld [vmem:[#allocation2 + $0x2c] sm:$0xf]
          %v1360 = vld [vmem:[#allocation2 + $0x30] sm:$0xf]
          %v1361 = vld [vmem:[#allocation2 + $0x34] sm:$0xf]
          %v1362 = vld [vmem:[#allocation2 + $0x38] sm:$0xf]
          %v1363 = vld [vmem:[#allocation2 + $0x3c] sm:$0xf]
          %v1364 = vld [vmem:[#allocation2 + $0x40] sm:$0xf]
          %v1365 = vld [vmem:[#allocation2 + $0x44] sm:$0xf]
          %v1366 = vld [vmem:[#allocation2 + $0x48] sm:$0xf]
          %v1367 = vld [vmem:[#allocation2 + $0x4c] sm:$0xf]
          %v1368 = vld [vmem:[#allocation2 + $0x50] sm:$0xf]
          %v1369 = vld [vmem:[#allocation2 + $0x54] sm:$0xf]
          %v1370 = vld [vmem:[#allocation2 + $0x58] sm:$0xf]
          %v1371 = vld [vmem:[#allocation2 + $0x5c] sm:$0xf]
          %v1372 = vld [vmem:[#allocation2 + $0x60] sm:$0xf]
          %v1373 = vld [vmem:[#allocation2 + $0x64] sm:$0xf]
          %v1374 = vld [vmem:[#allocation2 + $0x68] sm:$0xf]
          %v1375 = vld [vmem:[#allocation2 + $0x6c] sm:$0xf]
          %v1376 = vld [vmem:[#allocation2 + $0x70] sm:$0xf]
          %v1377 = vld [vmem:[#allocation2 + $0x74] sm:$0xf]
          %v1378 = vld [vmem:[#allocation2 + $0x78] sm:$0xf]
          %v1379 = vld [vmem:[#allocation2 + $0x7c] sm:$0xf]
          %1380 = vst [vmem:[#allocation5] sm:$0xf] 0
          %1381 = vst [vmem:[#allocation5 + $0x4] sm:$0xf] 0
          %1382 = vst [vmem:[#allocation5 + $0x8] sm:$0xf] 0
          %1383 = vst [vmem:[#allocation5 + $0xc] sm:$0xf] 0
          %1384 = vst [vmem:[#allocation5 + $0x10] sm:$0xf] 0
          %1385 = vst [vmem:[#allocation5 + $0x14] sm:$0xf] 0
          %1386 = vst [vmem:[#allocation5 + $0x18] sm:$0xf] 0
          %1387 = vst [vmem:[#allocation5 + $0x1c] sm:$0xf] 0
          %1388 = vst [vmem:[#allocation5 + $0x20] sm:$0xf] 0
          %1389 = vst [vmem:[#allocation5 + $0x24] sm:$0xf] 0
          %1390 = vst [vmem:[#allocation5 + $0x28] sm:$0xf] 0
          %1391 = vst [vmem:[#allocation5 + $0x2c] sm:$0xf] 0
          %1392 = vst [vmem:[#allocation5 + $0x30] sm:$0xf] 0
          %1393 = vst [vmem:[#allocation5 + $0x34] sm:$0xf] 0
          %1394 = vst [vmem:[#allocation5 + $0x38] sm:$0xf] 0
          %1395 = vst [vmem:[#allocation5 + $0x3c] sm:$0xf] 0
          %1396 = vst [vmem:[#allocation5 + $0x40] sm:$0xf] 0
          %1397 = vst [vmem:[#allocation5 + $0x44] sm:$0xf] 0
          %1398 = vst [vmem:[#allocation5 + $0x48] sm:$0xf] 0
          %1399 = vst [vmem:[#allocation5 + $0x4c] sm:$0xf] 0
          %1400 = vst [vmem:[#allocation5 + $0x50] sm:$0xf] 0
          %1401 = vst [vmem:[#allocation5 + $0x54] sm:$0xf] 0
          %1402 = vst [vmem:[#allocation5 + $0x58] sm:$0xf] 0
          %1403 = vst [vmem:[#allocation5 + $0x5c] sm:$0xf] 0
          %1404 = vst [vmem:[#allocation5 + $0x60] sm:$0xf] 0
          %1405 = vst [vmem:[#allocation5 + $0x64] sm:$0xf] 0
          %1406 = vst [vmem:[#allocation5 + $0x68] sm:$0xf] 0
          %1407 = vst [vmem:[#allocation5 + $0x6c] sm:$0xf] 0
          %1408 = vst [vmem:[#allocation5 + $0x70] sm:$0xf] 0
          %1409 = vst [vmem:[#allocation5 + $0x74] sm:$0xf] 0
          %1410 = vst [vmem:[#allocation5 + $0x78] sm:$0xf] 0
          %1411 = vst [vmem:[#allocation5 + $0x7c] sm:$0xf] 0
          %1412 = vst [vmem:[#allocation5 + $0x80] sm:$0xf] 0
          %1413 = vst [vmem:[#allocation5 + $0x84] sm:$0xf] 0
          %1414 = vst [vmem:[#allocation5 + $0x88] sm:$0xf] 0
          %1415 = vst [vmem:[#allocation5 + $0x8c] sm:$0xf] 0
          %1416 = vst [vmem:[#allocation5 + $0x90] sm:$0xf] 0
          %1417 = vst [vmem:[#allocation5 + $0x94] sm:$0xf] 0
          %1418 = vst [vmem:[#allocation5 + $0x98] sm:$0xf] 0
          %1419 = vst [vmem:[#allocation5 + $0x9c] sm:$0xf] 0
          %1420 = vst [vmem:[#allocation5 + $0xa0] sm:$0xf] 0
          %1421 = vst [vmem:[#allocation5 + $0xa4] sm:$0xf] 0
          %1422 = vst [vmem:[#allocation5 + $0xa8] sm:$0xf] 0
          %1423 = vst [vmem:[#allocation5 + $0xac] sm:$0xf] 0
          %1424 = vst [vmem:[#allocation5 + $0xb0] sm:$0xf] 0
          %1425 = vst [vmem:[#allocation5 + $0xb4] sm:$0xf] 0
          %1426 = vst [vmem:[#allocation5 + $0xb8] sm:$0xf] 0
          %1427 = vst [vmem:[#allocation5 + $0xbc] sm:$0xf] 0
          %1428 = vst [vmem:[#allocation5 + $0xc0] sm:$0xf] 0
          %1429 = vst [vmem:[#allocation5 + $0xc4] sm:$0xf] 0
          %1430 = vst [vmem:[#allocation5 + $0xc8] sm:$0xf] 0
          %1431 = vst [vmem:[#allocation5 + $0xcc] sm:$0xf] 0
          %1432 = vst [vmem:[#allocation5 + $0xd0] sm:$0xf] 0
          %1433 = vst [vmem:[#allocation5 + $0xd4] sm:$0xf] 0
          %1434 = vst [vmem:[#allocation5 + $0xd8] sm:$0xf] 0
          %1435 = vst [vmem:[#allocation5 + $0xdc] sm:$0xf] 0
          %1436 = vst [vmem:[#allocation5 + $0xe0] sm:$0xf] 0
          %1437 = vst [vmem:[#allocation5 + $0xe4] sm:$0xf] 0
          %1438 = vst [vmem:[#allocation5 + $0xe8] sm:$0xf] 0
          %1439 = vst [vmem:[#allocation5 + $0xec] sm:$0xf] 0
          %1440 = vst [vmem:[#allocation5 + $0xf0] sm:$0xf] 0
          %1441 = vst [vmem:[#allocation5 + $0xf4] sm:$0xf] 0
          %1442 = vst [vmem:[#allocation5 + $0xf8] sm:$0xf] 0
          %1443 = vst [vmem:[#allocation5 + $0xfc] sm:$0xf] 0
          %1444 = vst [vmem:[#allocation5 + $0x100] sm:$0xf] 0
          %vm1493 = vcmask 1040384
          %vm1494 = vcmask 1044484
          %vm1495 = vmor %vm1493, %vm1494
          %v1496 = vrot.slane %v1328, 7
          %v1497 = vrot.slane %v1496, 4
          %v1498 = vrot.slane %v1329, 7
          %v1499 = vsel %vm1495, %v1497, %v1498
          %v1500 = vrot.slane %v1498, 4
          %v1501 = vrot.slane %v1330, 7
          %v1502 = vsel %vm1495, %v1500, %v1501
          %v1503 = vrot.slane %v1501, 4
          %v1504 = vrot.slane %v1331, 7
          %v1505 = vsel %vm1495, %v1503, %v1504
          %v1506 = vrot.slane %v1504, 4
          %v1507 = vrot.slane %v1332, 7
          %v1508 = vrot.slane %v1507, 4
          %v1509 = vrot.slane %v1333, 7
          %v1510 = vsel %vm1495, %v1508, %v1509
          %v1511 = vrot.slane %v1509, 4
          %v1512 = vrot.slane %v1334, 7
          %v1513 = vsel %vm1495, %v1511, %v1512
          %v1514 = vrot.slane %v1512, 4
          %v1515 = vrot.slane %v1335, 7
          %v1516 = vsel %vm1495, %v1514, %v1515
          %v1517 = vrot.slane %v1515, 4
          %v1518 = vrot.slane %v1348, 7
          %v1519 = vrot.slane %v1518, 4
          %v1520 = vrot.slane %v1349, 7
          %v1521 = vsel %vm1495, %v1519, %v1520
          %v1522 = vrot.slane %v1520, 4
          %v1523 = vrot.slane %v1350, 7
          %v1524 = vsel %vm1495, %v1522, %v1523
          %v1525 = vrot.slane %v1523, 4
          %v1526 = vrot.slane %v1351, 7
          %v1527 = vsel %vm1495, %v1525, %v1526
          %v1528 = vrot.slane %v1526, 4
          %v1529 = vrot.slane %v1352, 7
          %v1530 = vrot.slane %v1529, 4
          %v1531 = vrot.slane %v1353, 7
          %v1532 = vsel %vm1495, %v1530, %v1531
          %v1533 = vrot.slane %v1531, 4
          %v1534 = vrot.slane %v1354, 7
          %v1535 = vsel %vm1495, %v1533, %v1534
          %v1536 = vrot.slane %v1534, 4
          %v1537 = vrot.slane %v1355, 7
          %v1538 = vsel %vm1495, %v1536, %v1537
          %v1539 = vrot.slane %v1537, 4
          %v1540 = vrot.slane %v1356, 7
          %v1541 = vrot.slane %v1540, 4
          %v1542 = vrot.slane %v1357, 7
          %v1543 = vsel %vm1495, %v1541, %v1542
          %v1544 = vrot.slane %v1542, 4
          %v1545 = vrot.slane %v1358, 7
          %v1546 = vsel %vm1495, %v1544, %v1545
          %v1547 = vrot.slane %v1545, 4
          %v1548 = vrot.slane %v1359, 7
          %v1549 = vsel %vm1495, %v1547, %v1548
          %v1550 = vrot.slane %v1548, 4
          %v1551 = vrot.slane %v1360, 7
          %v1552 = vrot.slane %v1551, 4
          %v1553 = vrot.slane %v1361, 7
          %v1554 = vsel %vm1495, %v1552, %v1553
          %v1555 = vrot.slane %v1553, 4
          %v1556 = vrot.slane %v1362, 7
          %v1557 = vsel %vm1495, %v1555, %v1556
          %v1558 = vrot.slane %v1556, 4
          %v1559 = vrot.slane %v1363, 7
          %v1560 = vsel %vm1495, %v1558, %v1559
          %v1561 = vrot.slane %v1559, 4
          %v1562 = vrot.slane %v1364, 7
          %v1563 = vrot.slane %v1562, 4
          %v1564 = vrot.slane %v1365, 7
          %v1565 = vsel %vm1495, %v1563, %v1564
          %v1566 = vrot.slane %v1564, 4
          %v1567 = vrot.slane %v1366, 7
          %v1568 = vsel %vm1495, %v1566, %v1567
          %v1569 = vrot.slane %v1567, 4
          %v1570 = vrot.slane %v1367, 7
          %v1571 = vsel %vm1495, %v1569, %v1570
          %v1572 = vrot.slane %v1570, 4
          %v1573 = vrot.slane %v1368, 7
          %v1574 = vrot.slane %v1573, 4
          %v1575 = vrot.slane %v1369, 7
          %v1576 = vsel %vm1495, %v1574, %v1575
          %v1577 = vrot.slane %v1575, 4
          %v1578 = vrot.slane %v1370, 7
          %v1579 = vsel %vm1495, %v1577, %v1578
          %v1580 = vrot.slane %v1578, 4
          %v1581 = vrot.slane %v1371, 7
          %v1582 = vsel %vm1495, %v1580, %v1581
          %v1583 = vrot.slane %v1581, 4
          %v1584 = vrot.slane %v1372, 7
          %v1585 = vrot.slane %v1584, 4
          %v1586 = vrot.slane %v1373, 7
          %v1587 = vsel %vm1495, %v1585, %v1586
          %v1588 = vrot.slane %v1586, 4
          %v1589 = vrot.slane %v1374, 7
          %v1590 = vsel %vm1495, %v1588, %v1589
          %v1591 = vrot.slane %v1589, 4
          %v1592 = vrot.slane %v1375, 7
          %v1593 = vsel %vm1495, %v1591, %v1592
          %v1594 = vrot.slane %v1592, 4
          %v1595 = vrot.slane %v1376, 7
          %v1596 = vrot.slane %v1595, 4
          %v1597 = vrot.slane %v1377, 7
          %v1598 = vsel %vm1495, %v1596, %v1597
          %v1599 = vrot.slane %v1597, 4
          %v1600 = vrot.slane %v1378, 7
          %v1601 = vsel %vm1495, %v1599, %v1600
          %v1602 = vrot.slane %v1600, 4
          %v1603 = vrot.slane %v1379, 7
          %v1604 = vsel %vm1495, %v1602, %v1603
          %v1605 = vrot.slane %v1603, 4
          %v1606 = vrot.slane %v1340, 7
          %v1607 = vrot.slane %v1606, 4
          %v1608 = vrot.slane %v1341, 7
          %v1609 = vsel %vm1495, %v1607, %v1608
          %v1610 = vrot.slane %v1608, 4
          %v1611 = vrot.slane %v1342, 7
          %v1612 = vsel %vm1495, %v1610, %v1611
          %v1613 = vrot.slane %v1611, 4
          %v1614 = vrot.slane %v1343, 7
          %v1615 = vsel %vm1495, %v1613, %v1614
          %v1616 = vrot.slane %v1614, 4
          %v1617 = vrot.slane %v1344, 7
          %v1618 = vrot.slane %v1617, 4
          %v1619 = vrot.slane %v1345, 7
          %v1620 = vsel %vm1495, %v1618, %v1619
          %v1621 = vrot.slane %v1619, 4
          %v1622 = vrot.slane %v1346, 7
          %v1623 = vsel %vm1495, %v1621, %v1622
          %v1624 = vrot.slane %v1622, 4
          %v1625 = vrot.slane %v1347, 7
          %v1626 = vsel %vm1495, %v1624, %v1625
          %v1627 = vrot.slane %v1625, 4
          %1688 = vst [vmem:[#allocation5] sm:$0xe] %v1496
          %1689 = vst [vmem:[#allocation5 + $0x4] sm:$0xf] %v1499
          %1690 = vst [vmem:[#allocation5 + $0x8] sm:$0xf] %v1502
          %1691 = vst [vmem:[#allocation5 + $0xc] sm:$0xf] %v1505
          %1692 = vst [vmem:[#allocation5 + $0x10] sm:$0x1] %v1506
          %1693 = vst [vmem:[#allocation5 + $0x14] sm:$0xe] %v1507
          %1694 = vst [vmem:[#allocation5 + $0x18] sm:$0xf] %v1510
          %1695 = vst [vmem:[#allocation5 + $0x1c] sm:$0xf] %v1513
          %1696 = vst [vmem:[#allocation5 + $0x20] sm:$0xf] %v1516
          %1697 = vst [vmem:[#allocation5 + $0x24] sm:$0x1] %v1517
          %1698 = vst [vmem:[#allocation5 + $0x28] sm:$0xe] %v1518
          %1699 = vst [vmem:[#allocation5 + $0x2c] sm:$0xf] %v1521
          %1700 = vst [vmem:[#allocation5 + $0x30] sm:$0xf] %v1524
          %1701 = vst [vmem:[#allocation5 + $0x34] sm:$0xf] %v1527
          %1702 = vst [vmem:[#allocation5 + $0x38] sm:$0x1] %v1528
          %1703 = vst [vmem:[#allocation5 + $0x3c] sm:$0xe] %v1529
          %1704 = vst [vmem:[#allocation5 + $0x40] sm:$0xf] %v1532
          %1705 = vst [vmem:[#allocation5 + $0x44] sm:$0xf] %v1535
          %1706 = vst [vmem:[#allocation5 + $0x48] sm:$0xf] %v1538
          %1707 = vst [vmem:[#allocation5 + $0x4c] sm:$0x1] %v1539
          %1708 = vst [vmem:[#allocation5 + $0x50] sm:$0xe] %v1540
          %1709 = vst [vmem:[#allocation5 + $0x54] sm:$0xf] %v1543
          %1710 = vst [vmem:[#allocation5 + $0x58] sm:$0xf] %v1546
          %1711 = vst [vmem:[#allocation5 + $0x5c] sm:$0xf] %v1549
          %1712 = vst [vmem:[#allocation5 + $0x60] sm:$0x1] %v1550
          %1713 = vst [vmem:[#allocation5 + $0x64] sm:$0xe] %v1551
          %1714 = vst [vmem:[#allocation5 + $0x68] sm:$0xf] %v1554
          %1715 = vst [vmem:[#allocation5 + $0x6c] sm:$0xf] %v1557
          %1716 = vst [vmem:[#allocation5 + $0x70] sm:$0xf] %v1560
          %1717 = vst [vmem:[#allocation5 + $0x74] sm:$0x1] %v1561
          %1718 = vst [vmem:[#allocation5 + $0x78] sm:$0xe] %v1562
          %1719 = vst [vmem:[#allocation5 + $0x7c] sm:$0xf] %v1565
          %1720 = vst [vmem:[#allocation5 + $0x80] sm:$0xf] %v1568
          %1721 = vst [vmem:[#allocation5 + $0x84] sm:$0xf] %v1571
          %1722 = vst [vmem:[#allocation5 + $0x88] sm:$0x1] %v1572
          %1723 = vst [vmem:[#allocation5 + $0x8c] sm:$0xe] %v1573
          %1724 = vst [vmem:[#allocation5 + $0x90] sm:$0xf] %v1576
          %1725 = vst [vmem:[#allocation5 + $0x94] sm:$0xf] %v1579
          %1726 = vst [vmem:[#allocation5 + $0x98] sm:$0xf] %v1582
          %1727 = vst [vmem:[#allocation5 + $0x9c] sm:$0x1] %v1583
          %1728 = vst [vmem:[#allocation5 + $0xa0] sm:$0xe] %v1584
          %1729 = vst [vmem:[#allocation5 + $0xa4] sm:$0xf] %v1587
          %1730 = vst [vmem:[#allocation5 + $0xa8] sm:$0xf] %v1590
          %1731 = vst [vmem:[#allocation5 + $0xac] sm:$0xf] %v1593
          %1732 = vst [vmem:[#allocation5 + $0xb0] sm:$0x1] %v1594
          %1733 = vst [vmem:[#allocation5 + $0xb4] sm:$0xe] %v1595
          %1734 = vst [vmem:[#allocation5 + $0xb8] sm:$0xf] %v1598
          %1735 = vst [vmem:[#allocation5 + $0xbc] sm:$0xf] %v1601
          %1736 = vst [vmem:[#allocation5 + $0xc0] sm:$0xf] %v1604
          %1737 = vst [vmem:[#allocation5 + $0xc4] sm:$0x1] %v1605
          %1738 = vst [vmem:[#allocation5 + $0xc8] sm:$0xe] %v1606
          %1739 = vst [vmem:[#allocation5 + $0xcc] sm:$0xf] %v1609
          %1740 = vst [vmem:[#allocation5 + $0xd0] sm:$0xf] %v1612
          %1741 = vst [vmem:[#allocation5 + $0xd4] sm:$0xf] %v1615
          %1742 = vst [vmem:[#allocation5 + $0xd8] sm:$0x1] %v1616
          %1743 = vst [vmem:[#allocation5 + $0xdc] sm:$0xe] %v1617
          %1744 = vst [vmem:[#allocation5 + $0xe0] sm:$0xf] %v1620
          %1745 = vst [vmem:[#allocation5 + $0xe4] sm:$0xf] %v1623
          %1746 = vst [vmem:[#allocation5 + $0xe8] sm:$0xf] %v1626
          %1747 = vst [vmem:[#allocation5 + $0xec] sm:$0x1] %v1627
          %v1748 = vld [vmem:[#allocation5] sm:$0xf]
          %v1749 = vld [vmem:[#allocation5 + $0x4] sm:$0xf]
          %v1750 = vld [vmem:[#allocation5 + $0x8] sm:$0xf]
          %v1751 = vld [vmem:[#allocation5 + $0xc] sm:$0xf]
          %v1752 = vld [vmem:[#allocation5 + $0x10] sm:$0xf]
          %v1753 = vld [vmem:[#allocation5 + $0x14] sm:$0xf]
          %v1754 = vld [vmem:[#allocation5 + $0x18] sm:$0xf]
          %v1755 = vld [vmem:[#allocation5 + $0x1c] sm:$0xf]
          %v1756 = vld [vmem:[#allocation5 + $0x20] sm:$0xf]
          %v1757 = vld [vmem:[#allocation5 + $0x24] sm:$0xf]
          %v1758 = vld [vmem:[#allocation5 + $0x28] sm:$0xf]
          %v1759 = vld [vmem:[#allocation5 + $0x2c] sm:$0xf]
          %v1760 = vld [vmem:[#allocation5 + $0x30] sm:$0xf]
          %v1761 = vld [vmem:[#allocation5 + $0x34] sm:$0xf]
          %v1762 = vld [vmem:[#allocation5 + $0x38] sm:$0xf]
          %v1763 = vld [vmem:[#allocation5 + $0x3c] sm:$0xf]
          %v1764 = vld [vmem:[#allocation5 + $0x40] sm:$0xf]
          %v1765 = vld [vmem:[#allocation5 + $0x44] sm:$0xf]
          %v1766 = vld [vmem:[#allocation5 + $0x48] sm:$0xf]
          %v1767 = vld [vmem:[#allocation5 + $0x4c] sm:$0xf]
          %v1768 = vld [vmem:[#allocation5 + $0x50] sm:$0xf]
          %v1769 = vld [vmem:[#allocation5 + $0x54] sm:$0xf]
          %v1770 = vld [vmem:[#allocation5 + $0x58] sm:$0xf]
          %v1771 = vld [vmem:[#allocation5 + $0x5c] sm:$0xf]
          %v1772 = vld [vmem:[#allocation5 + $0x60] sm:$0xf]
          %v1773 = vld [vmem:[#allocation5 + $0x64] sm:$0xf]
          %v1774 = vld [vmem:[#allocation5 + $0x68] sm:$0xf]
          %v1775 = vld [vmem:[#allocation5 + $0x6c] sm:$0xf]
          %v1776 = vld [vmem:[#allocation5 + $0x70] sm:$0xf]
          %v1777 = vld [vmem:[#allocation5 + $0x74] sm:$0xf]
          %v1778 = vld [vmem:[#allocation5 + $0x78] sm:$0xf]
          %v1779 = vld [vmem:[#allocation5 + $0x7c] sm:$0xf]
          %v1780 = vld [vmem:[#allocation5 + $0x80] sm:$0xf]
          %v1781 = vld [vmem:[#allocation5 + $0x84] sm:$0xf]
          %v1782 = vld [vmem:[#allocation5 + $0x88] sm:$0xf]
          %v1783 = vld [vmem:[#allocation5 + $0x8c] sm:$0xf]
          %v1784 = vld [vmem:[#allocation5 + $0x90] sm:$0xf]
          %v1785 = vld [vmem:[#allocation5 + $0x94] sm:$0xf]
          %v1786 = vld [vmem:[#allocation5 + $0x98] sm:$0xf]
          %v1787 = vld [vmem:[#allocation5 + $0x9c] sm:$0xf]
          %v1788 = vld [vmem:[#allocation5 + $0xa0] sm:$0xf]
          %v1789 = vld [vmem:[#allocation5 + $0xa4] sm:$0xf]
          %v1790 = vld [vmem:[#allocation5 + $0xa8] sm:$0xf]
          %v1791 = vld [vmem:[#allocation5 + $0xac] sm:$0xf]
          %v1792 = vld [vmem:[#allocation5 + $0xb0] sm:$0xf]
          %v1793 = vld [vmem:[#allocation5 + $0xb4] sm:$0xf]
          %v1794 = vld [vmem:[#allocation5 + $0xb8] sm:$0xf]
          %v1795 = vld [vmem:[#allocation5 + $0xbc] sm:$0xf]
          %v1796 = vld [vmem:[#allocation5 + $0xc0] sm:$0xf]
          %v1797 = vld [vmem:[#allocation5 + $0xc4] sm:$0xf]
          %v1798 = vld [vmem:[#allocation5 + $0xc8] sm:$0xf]
          %v1799 = vld [vmem:[#allocation5 + $0xcc] sm:$0xf]
          %v1800 = vld [vmem:[#allocation5 + $0xd0] sm:$0xf]
          %v1801 = vld [vmem:[#allocation5 + $0xd4] sm:$0xf]
          %v1802 = vld [vmem:[#allocation5 + $0xd8] sm:$0xf]
          %v1803 = vld [vmem:[#allocation5 + $0xdc] sm:$0xf]
          %v1804 = vld [vmem:[#allocation5 + $0xe0] sm:$0xf]
          %v1805 = vld [vmem:[#allocation5 + $0xe4] sm:$0xf]
          %v1806 = vld [vmem:[#allocation5 + $0xe8] sm:$0xf]
          %v1807 = vld [vmem:[#allocation5 + $0xec] sm:$0xf]
          %v1808 = vld [vmem:[#allocation5 + $0xf0] sm:$0xf]
          %v1849 = vunpack.c.l.b16 %v1748
          %v1850 = vunpack.c.l.b16 %v1749
          %v1851 = vunpack.c.l.b16 %v1750
          %v1852 = vunpack.c.l.b16 %v1751
          %v1853 = vunpack.c.l.b16 %v1752
          %v1854 = vunpack.c.l.b16 %v1753
          %v1855 = vunpack.c.l.b16 %v1754
          %v1856 = vunpack.c.l.b16 %v1755
          %v1857 = vunpack.c.l.b16 %v1756
          %v1858 = vunpack.c.l.b16 %v1757
          %v1859 = vunpack.c.l.b16 %v1758
          %v1860 = vunpack.c.l.b16 %v1759
          %v1861 = vunpack.c.l.b16 %v1760
          %v1862 = vunpack.c.l.b16 %v1761
          %v1863 = vunpack.c.l.b16 %v1762
          %v1864 = vunpack.c.l.b16 %v1763
          %v1865 = vunpack.c.l.b16 %v1764
          %v1866 = vunpack.c.l.b16 %v1765
          %v1867 = vunpack.c.l.b16 %v1766
          %v1868 = vunpack.c.l.b16 %v1767
          %v1869 = vunpack.c.l.b16 %v1768
          %v1870 = vunpack.c.l.b16 %v1769
          %v1871 = vunpack.c.l.b16 %v1770
          %v1872 = vunpack.c.l.b16 %v1771
          %v1873 = vunpack.c.l.b16 %v1772
          %v1874 = vunpack.c.l.b16 %v1773
          %v1875 = vunpack.c.l.b16 %v1774
          %v1876 = vunpack.c.l.b16 %v1775
          %v1877 = vunpack.c.l.b16 %v1776
          %v1878 = vunpack.c.l.b16 %v1777
          %v1879 = vunpack.c.l.b16 %v1778
          %v1880 = vunpack.c.l.b16 %v1779
          %v1881 = vunpack.c.l.b16 %v1780
          %v1882 = vunpack.c.l.b16 %v1781
          %v1883 = vunpack.c.l.b16 %v1782
          %v1884 = vunpack.c.l.b16 %v1783
          %v1885 = vunpack.c.l.b16 %v1784
          %v1886 = vunpack.c.l.b16 %v1785
          %v1887 = vunpack.c.l.b16 %v1786
          %v1888 = vunpack.c.l.b16 %v1787
          %v1889 = vpack.c.b16 %v1850, %v1849
          %v1890 = vpack.c.b16 %v1852, %v1851
          %v1891 = vpack.c.b16 %v1854, %v1853
          %v1892 = vpack.c.b16 %v1856, %v1855
          %v1893 = vpack.c.b16 %v1858, %v1857
          %v1894 = vpack.c.b16 %v1860, %v1859
          %v1895 = vpack.c.b16 %v1862, %v1861
          %v1896 = vpack.c.b16 %v1864, %v1863
          %v1897 = vpack.c.b16 %v1866, %v1865
          %v1898 = vpack.c.b16 %v1868, %v1867
          %v1899 = vpack.c.b16 %v1870, %v1869
          %v1900 = vpack.c.b16 %v1872, %v1871
          %v1901 = vpack.c.b16 %v1874, %v1873
          %v1902 = vpack.c.b16 %v1876, %v1875
          %v1903 = vpack.c.b16 %v1878, %v1877
          %v1904 = vpack.c.b16 %v1880, %v1879
          %v1905 = vpack.c.b16 %v1882, %v1881
          %v1906 = vpack.c.b16 %v1884, %v1883
          %v1907 = vpack.c.b16 %v1886, %v1885
          %v1908 = vpack.c.b16 %v1888, %v1887
          %v1930 = vunpack.c.l.b16 %v1788
          %v1931 = vpack.c.b16 %v1930, %v1930
          %vm1932 = vcmask 1046528
          %v1933 = vrot.slane %v1889, 1
          %v1934 = vrot.slane %v1890, 1
          %v1935 = vsel %vm1932, %v1933, %v1934
          %v1936 = vrot.slane %v1891, 1
          %v1937 = vsel %vm1932, %v1934, %v1936
          %v1938 = vrot.slane %v1892, 1
          %v1939 = vsel %vm1932, %v1936, %v1938
          %v1940 = vrot.slane %v1893, 1
          %v1941 = vsel %vm1932, %v1938, %v1940
          %v1942 = vrot.slane %v1894, 1
          %v1943 = vsel %vm1932, %v1940, %v1942
          %v1944 = vrot.slane %v1895, 1
          %v1945 = vsel %vm1932, %v1942, %v1944
          %v1946 = vrot.slane %v1896, 1
          %v1947 = vsel %vm1932, %v1944, %v1946
          %v1948 = vrot.slane %v1897, 1
          %v1949 = vsel %vm1932, %v1946, %v1948
          %v1950 = vrot.slane %v1898, 1
          %v1951 = vsel %vm1932, %v1948, %v1950
          %v1952 = vrot.slane %v1899, 1
          %v1953 = vsel %vm1932, %v1950, %v1952
          %v1954 = vrot.slane %v1900, 1
          %v1955 = vsel %vm1932, %v1952, %v1954
          %v1956 = vrot.slane %v1901, 1
          %v1957 = vsel %vm1932, %v1954, %v1956
          %v1958 = vrot.slane %v1902, 1
          %v1959 = vsel %vm1932, %v1956, %v1958
          %v1960 = vrot.slane %v1903, 1
          %v1961 = vsel %vm1932, %v1958, %v1960
          %v1962 = vrot.slane %v1904, 1
          %v1963 = vsel %vm1932, %v1960, %v1962
          %v1964 = vrot.slane %v1905, 1
          %v1965 = vsel %vm1932, %v1962, %v1964
          %v1966 = vrot.slane %v1906, 1
          %v1967 = vsel %vm1932, %v1964, %v1966
          %v1968 = vrot.slane %v1907, 1
          %v1969 = vsel %vm1932, %v1966, %v1968
          %v1970 = vrot.slane %v1908, 1
          %v1971 = vsel %vm1932, %v1968, %v1970
          %v1972 = vrot.slane %v1931, 1
          %v1973 = vsel %vm1932, %v1970, %v1972
          %vm1994 = vcmask 1045504
          %v1995 = vrot.slane %v1889, 2
          %v1996 = vrot.slane %v1890, 2
          %v1997 = vsel %vm1994, %v1995, %v1996
          %v1998 = vrot.slane %v1891, 2
          %v1999 = vsel %vm1994, %v1996, %v1998
          %v2000 = vrot.slane %v1892, 2
          %v2001 = vsel %vm1994, %v1998, %v2000
          %v2002 = vrot.slane %v1893, 2
          %v2003 = vsel %vm1994, %v2000, %v2002
          %v2004 = vrot.slane %v1894, 2
          %v2005 = vsel %vm1994, %v2002, %v2004
          %v2006 = vrot.slane %v1895, 2
          %v2007 = vsel %vm1994, %v2004, %v2006
          %v2008 = vrot.slane %v1896, 2
          %v2009 = vsel %vm1994, %v2006, %v2008
          %v2010 = vrot.slane %v1897, 2
          %v2011 = vsel %vm1994, %v2008, %v2010
          %v2012 = vrot.slane %v1898, 2
          %v2013 = vsel %vm1994, %v2010, %v2012
          %v2014 = vrot.slane %v1899, 2
          %v2015 = vsel %vm1994, %v2012, %v2014
          %v2016 = vrot.slane %v1900, 2
          %v2017 = vsel %vm1994, %v2014, %v2016
          %v2018 = vrot.slane %v1901, 2
          %v2019 = vsel %vm1994, %v2016, %v2018
          %v2020 = vrot.slane %v1902, 2
          %v2021 = vsel %vm1994, %v2018, %v2020
          %v2022 = vrot.slane %v1903, 2
          %v2023 = vsel %vm1994, %v2020, %v2022
          %v2024 = vrot.slane %v1904, 2
          %v2025 = vsel %vm1994, %v2022, %v2024
          %v2026 = vrot.slane %v1905, 2
          %v2027 = vsel %vm1994, %v2024, %v2026
          %v2028 = vrot.slane %v1906, 2
          %v2029 = vsel %vm1994, %v2026, %v2028
          %v2030 = vrot.slane %v1907, 2
          %v2031 = vsel %vm1994, %v2028, %v2030
          %v2032 = vrot.slane %v1908, 2
          %v2033 = vsel %vm1994, %v2030, %v2032
          %v2034 = vrot.slane %v1931, 2
          %v2035 = vsel %vm1994, %v2032, %v2034
          %v2065 = vunpack.c.l.b16 %v1789
          %v2066 = vunpack.c.l.b16 %v1790
          %v2067 = vunpack.c.l.b16 %v1791
          %v2068 = vunpack.c.l.b16 %v1792
          %v2069 = vunpack.c.l.b16 %v1793
          %v2070 = vunpack.c.l.b16 %v1794
          %v2071 = vunpack.c.l.b16 %v1795
          %v2072 = vunpack.c.l.b16 %v1796
          %v2073 = vunpack.c.l.b16 %v1797
          %v2074 = vpack.c.b16 %v2065, %v1930
          %v2075 = vpack.c.b16 %v2067, %v2066
          %v2076 = vpack.c.b16 %v2069, %v2068
          %v2077 = vpack.c.b16 %v2071, %v2070
          %v2078 = vpack.c.b16 %v2073, %v2072
          %v2085 = vunpack.c.l.b16 %v1798
          %v2086 = vpack.c.b16 %v2085, %v2085
          %v2087 = vrot.slane %v2074, 1
          %v2088 = vsel %vm1932, %v1970, %v2087
          %v2089 = vrot.slane %v2075, 1
          %v2090 = vsel %vm1932, %v2087, %v2089
          %v2091 = vrot.slane %v2076, 1
          %v2092 = vsel %vm1932, %v2089, %v2091
          %v2093 = vrot.slane %v2077, 1
          %v2094 = vsel %vm1932, %v2091, %v2093
          %v2095 = vrot.slane %v2078, 1
          %v2096 = vsel %vm1932, %v2093, %v2095
          %v2097 = vrot.slane %v2086, 1
          %v2098 = vsel %vm1932, %v2095, %v2097
          %v2105 = vrot.slane %v2074, 2
          %v2106 = vsel %vm1994, %v2032, %v2105
          %v2107 = vrot.slane %v2075, 2
          %v2108 = vsel %vm1994, %v2105, %v2107
          %v2109 = vrot.slane %v2076, 2
          %v2110 = vsel %vm1994, %v2107, %v2109
          %v2111 = vrot.slane %v2077, 2
          %v2112 = vsel %vm1994, %v2109, %v2111
          %v2113 = vrot.slane %v2078, 2
          %v2114 = vsel %vm1994, %v2111, %v2113
          %v2115 = vrot.slane %v2086, 2
          %v2116 = vsel %vm1994, %v2113, %v2115
          %v2132 = vunpack.c.l.b16 %v1799
          %v2133 = vunpack.c.l.b16 %v1800
          %v2134 = vunpack.c.l.b16 %v1801
          %v2135 = vunpack.c.l.b16 %v1802
          %v2136 = vunpack.c.l.b16 %v1803
          %v2137 = vunpack.c.l.b16 %v1804
          %v2138 = vunpack.c.l.b16 %v1805
          %v2139 = vunpack.c.l.b16 %v1806
          %v2140 = vunpack.c.l.b16 %v1807
          %v2141 = vpack.c.b16 %v2132, %v2085
          %v2142 = vpack.c.b16 %v2134, %v2133
          %v2143 = vpack.c.b16 %v2136, %v2135
          %v2144 = vpack.c.b16 %v2138, %v2137
          %v2145 = vpack.c.b16 %v2140, %v2139
          %v2152 = vunpack.c.l.b16 %v1808
          %v2153 = vpack.c.b16 %v2152, %v2152
          %v2154 = vrot.slane %v2141, 1
          %v2155 = vsel %vm1932, %v2095, %v2154
          %v2156 = vrot.slane %v2142, 1
          %v2157 = vsel %vm1932, %v2154, %v2156
          %v2158 = vrot.slane %v2143, 1
          %v2159 = vsel %vm1932, %v2156, %v2158
          %v2160 = vrot.slane %v2144, 1
          %v2161 = vsel %vm1932, %v2158, %v2160
          %v2162 = vrot.slane %v2145, 1
          %v2163 = vsel %vm1932, %v2160, %v2162
          %v2164 = vrot.slane %v2153, 1
          %v2165 = vsel %vm1932, %v2162, %v2164
          %v2172 = vrot.slane %v2141, 2
          %v2173 = vsel %vm1994, %v2113, %v2172
          %v2174 = vrot.slane %v2142, 2
          %v2175 = vsel %vm1994, %v2172, %v2174
          %v2176 = vrot.slane %v2143, 2
          %v2177 = vsel %vm1994, %v2174, %v2176
          %v2178 = vrot.slane %v2144, 2
          %v2179 = vsel %vm1994, %v2176, %v2178
          %v2180 = vrot.slane %v2145, 2
          %v2181 = vsel %vm1994, %v2178, %v2180
          %v2182 = vrot.slane %v2153, 2
          %v2183 = vsel %vm1994, %v2180, %v2182
          %v2190 = vld [vmem:[#allocation12] sm:$0xf]
          %v2191 = vld [vmem:[#allocation12 + $0x4] sm:$0xf]
          %v2192 = vld [vmem:[#allocation12 + $0x8] sm:$0xf]
          %v2193 = vld [vmem:[#allocation12 + $0xc] sm:$0xf]
          %v2194 = vld [vmem:[#allocation12 + $0x10] sm:$0xf]
          %v2195 = vld [vmem:[#allocation12 + $0x14] sm:$0xf]
          %v2196 = vld [vmem:[#allocation12 + $0x18] sm:$0xf]
          %v2197 = vld [vmem:[#allocation12 + $0x1c] sm:$0xf]
          %v2198 = vld [vmem:[#allocation12 + $0x20] sm:$0xf]
          %v2199 = vld [vmem:[#allocation12 + $0x24] sm:$0xf]
          %v2200 = vld [vmem:[#allocation12 + $0x28] sm:$0xf]
          %v2201 = vld [vmem:[#allocation12 + $0x2c] sm:$0xf]
          %v2202 = vld [vmem:[#allocation12 + $0x30] sm:$0xf]
          %v2203 = vld [vmem:[#allocation12 + $0x34] sm:$0xf]
          %v2204 = vld [vmem:[#allocation12 + $0x38] sm:$0xf]
          %v2205 = vld [vmem:[#allocation12 + $0x3c] sm:$0xf]
          %v2206 = vld [vmem:[#allocation12 + $0x40] sm:$0xf]
          %v2207 = vld [vmem:[#allocation12 + $0x44] sm:$0xf]
          %v2208 = vld [vmem:[#allocation12 + $0x48] sm:$0xf]
          %v2209 = vld [vmem:[#allocation12 + $0x4c] sm:$0xf]
          %v2210 = vld [vmem:[#allocation12 + $0x50] sm:$0xf]
          %v2211 = vld [vmem:[#allocation12 + $0x54] sm:$0xf]
          %v2212 = vld [vmem:[#allocation12 + $0x58] sm:$0xf]
          %v2213 = vld [vmem:[#allocation12 + $0x5c] sm:$0xf]
          %v2214 = vld [vmem:[#allocation12 + $0x60] sm:$0xf]
          %v2215 = vld [vmem:[#allocation12 + $0x64] sm:$0xf]
          %v2216 = vld [vmem:[#allocation12 + $0x68] sm:$0xf]
          %v2217 = vld [vmem:[#allocation12 + $0x6c] sm:$0xf]
          %v2218 = vld [vmem:[#allocation12 + $0x70] sm:$0xf]
          %v2219 = vld [vmem:[#allocation12 + $0x74] sm:$0xf]
          %v2220 = vld [vmem:[#allocation12 + $0x78] sm:$0xf]
          %v2221 = vld [vmem:[#allocation12 + $0x7c] sm:$0xf]
          %v2222 = vld [vmem:[#allocation12 + $0x80] sm:$0xf]
          %v2223 = vld [vmem:[#allocation12 + $0x84] sm:$0xf]
          %v2224 = vld [vmem:[#allocation12 + $0x88] sm:$0xf]
          %v2225 = vld [vmem:[#allocation12 + $0x8c] sm:$0xf]
          %v2226 = vld [vmem:[#allocation12 + $0x90] sm:$0xf]
          %v2227 = vld [vmem:[#allocation12 + $0x94] sm:$0xf]
          %v2228 = vld [vmem:[#allocation12 + $0x98] sm:$0xf]
          %v2229 = vld [vmem:[#allocation12 + $0x9c] sm:$0xf]
          %v2230 = vld [vmem:[#allocation12 + $0xa0] sm:$0xf]
          %v2231 = vld [vmem:[#allocation12 + $0xa4] sm:$0xf]
          %v2232 = vld [vmem:[#allocation12 + $0xa8] sm:$0xf]
          %v2233 = vld [vmem:[#allocation12 + $0xac] sm:$0xf]
          %v2234 = vld [vmem:[#allocation12 + $0xb0] sm:$0xf]
          %v2235 = vld [vmem:[#allocation12 + $0xb4] sm:$0xf]
          %v2236 = vld [vmem:[#allocation12 + $0xb8] sm:$0xf]
          %v2237 = vld [vmem:[#allocation12 + $0xbc] sm:$0xf]
          %v2238 = vld [vmem:[#allocation12 + $0xc0] sm:$0xf]
          %v2239 = vld [vmem:[#allocation12 + $0xc4] sm:$0xf]
          %v2240 = vld [vmem:[#allocation12 + $0xc8] sm:$0xf]
          %v2241 = vld [vmem:[#allocation12 + $0xcc] sm:$0xf]
          %v2242 = vld [vmem:[#allocation12 + $0xd0] sm:$0xf]
          %v2243 = vld [vmem:[#allocation12 + $0xd4] sm:$0xf]
          %v2244 = vld [vmem:[#allocation12 + $0xd8] sm:$0xf]
          %v2245 = vld [vmem:[#allocation12 + $0xdc] sm:$0xf]
          %v2246 = vld [vmem:[#allocation12 + $0xe0] sm:$0xf]
          %v2247 = vld [vmem:[#allocation12 + $0xe4] sm:$0xf]
          %v2248 = vld [vmem:[#allocation12 + $0xe8] sm:$0xf]
          %v2249 = vld [vmem:[#allocation12 + $0xec] sm:$0xf]
          %v2250 = vld [vmem:[#allocation12 + $0xf0] sm:$0xf]
          %v2251 = vld [vmem:[#allocation12 + $0xf4] sm:$0xf]
          %v2252 = vld [vmem:[#allocation12 + $0xf8] sm:$0xf]
          %v2253 = vld [vmem:[#allocation12 + $0xfc] sm:$0xf]
          %v2254 = vld [vmem:[#allocation12 + $0x100] sm:$0xf]
          %v2255 = vld [vmem:[#allocation12 + $0x104] sm:$0xf]
          %v2256 = vld [vmem:[#allocation12 + $0x108] sm:$0xf]
          %v2257 = vld [vmem:[#allocation12 + $0x10c] sm:$0xf]
          %v2258 = vld [vmem:[#allocation12 + $0x110] sm:$0xf]
          %v2259 = vld [vmem:[#allocation12 + $0x114] sm:$0xf]
          %v2260 = vld [vmem:[#allocation12 + $0x118] sm:$0xf]
          %v2261 = vld [vmem:[#allocation12 + $0x11c] sm:$0xf]
          %v2262 = vld [vmem:[#allocation12 + $0x120] sm:$0xf]
          %v2263 = vld [vmem:[#allocation12 + $0x124] sm:$0xf]
          %v2264 = vld [vmem:[#allocation12 + $0x128] sm:$0xf]
          %v2265 = vld [vmem:[#allocation12 + $0x12c] sm:$0xf]
          %v2266 = vld [vmem:[#allocation12 + $0x130] sm:$0xf]
          %v2267 = vld [vmem:[#allocation12 + $0x134] sm:$0xf]
          %v2268 = vld [vmem:[#allocation12 + $0x138] sm:$0xf]
          %v2269 = vld [vmem:[#allocation12 + $0x13c] sm:$0xf]
          %v2270 = vld [vmem:[#allocation12 + $0x140] sm:$0xf]
          %v2271 = vld [vmem:[#allocation12 + $0x144] sm:$0xf]
          %v2272 = vld [vmem:[#allocation12 + $0x148] sm:$0xf]
          %v2273 = vld [vmem:[#allocation12 + $0x14c] sm:$0xf]
          %v2274 = vld [vmem:[#allocation12 + $0x150] sm:$0xf]
          %v2275 = vld [vmem:[#allocation12 + $0x154] sm:$0xf]
          %v2276 = vld [vmem:[#allocation12 + $0x158] sm:$0xf]
          %v2277 = vld [vmem:[#allocation12 + $0x15c] sm:$0xf]
          %v2278 = vld [vmem:[#allocation12 + $0x160] sm:$0xf]
          %v2279 = vld [vmem:[#allocation12 + $0x164] sm:$0xf]
          %v2280 = vld [vmem:[#allocation12 + $0x168] sm:$0xf]
          %v2281 = vld [vmem:[#allocation12 + $0x16c] sm:$0xf]
          %v2282 = vld [vmem:[#allocation12 + $0x170] sm:$0xf]
          %v2283 = vld [vmem:[#allocation12 + $0x174] sm:$0xf]
          %v2284 = vld [vmem:[#allocation12 + $0x178] sm:$0xf]
          %v2285 = vld [vmem:[#allocation12 + $0x17c] sm:$0xf]
          %v2286 = vld [vmem:[#allocation12 + $0x180] sm:$0xf]
          %v2287 = vld [vmem:[#allocation12 + $0x184] sm:$0xf]
          %v2288 = vld [vmem:[#allocation12 + $0x188] sm:$0xf]
          %v2289 = vld [vmem:[#allocation12 + $0x18c] sm:$0xf]
          %v2290 = vld [vmem:[#allocation12 + $0x190] sm:$0xf]
          %v2291 = vld [vmem:[#allocation12 + $0x194] sm:$0xf]
          %v2292 = vld [vmem:[#allocation12 + $0x198] sm:$0xf]
          %v2293 = vld [vmem:[#allocation12 + $0x19c] sm:$0xf]
          %v2294 = vld [vmem:[#allocation12 + $0x1a0] sm:$0xf]
          %v2295 = vld [vmem:[#allocation12 + $0x1a4] sm:$0xf]
          %v2296 = vld [vmem:[#allocation12 + $0x1a8] sm:$0xf]
          %v2297 = vld [vmem:[#allocation12 + $0x1ac] sm:$0xf]
          %v2298 = vld [vmem:[#allocation12 + $0x1b0] sm:$0xf]
          %v2299 = vld [vmem:[#allocation12 + $0x1b4] sm:$0xf]
          %v2300 = vld [vmem:[#allocation12 + $0x1b8] sm:$0xf]
          %v2301 = vld [vmem:[#allocation12 + $0x1bc] sm:$0xf]
          %v2302 = vld [vmem:[#allocation12 + $0x1c0] sm:$0xf]
          %v2303 = vld [vmem:[#allocation12 + $0x1c4] sm:$0xf]
          %v2304 = vld [vmem:[#allocation12 + $0x1c8] sm:$0xf]
          %v2305 = vld [vmem:[#allocation12 + $0x1cc] sm:$0xf]
          %v2306 = vld [vmem:[#allocation12 + $0x1d0] sm:$0xf]
          %v2307 = vld [vmem:[#allocation12 + $0x1d4] sm:$0xf]
          %v2308 = vld [vmem:[#allocation12 + $0x1d8] sm:$0xf]
          %v2309 = vld [vmem:[#allocation12 + $0x1dc] sm:$0xf]
          %v2310 = vld [vmem:[#allocation12 + $0x1e0] sm:$0xf]
          %v2311 = vld [vmem:[#allocation12 + $0x1e4] sm:$0xf]
          %v2312 = vld [vmem:[#allocation12 + $0x1e8] sm:$0xf]
          %v2313 = vld [vmem:[#allocation12 + $0x1ec] sm:$0xf]
          %v2314 = vld [vmem:[#allocation12 + $0x1f0] sm:$0xf]
          %v2315 = vld [vmem:[#allocation12 + $0x1f4] sm:$0xf]
          %v2316 = vld [vmem:[#allocation12 + $0x1f8] sm:$0xf]
          %v2317 = vld [vmem:[#allocation12 + $0x1fc] sm:$0xf]
          %v2318 = vld [vmem:[#allocation12 + $0x200] sm:$0xf]
          %v2319 = vld [vmem:[#allocation12 + $0x204] sm:$0xf]
          %v2320 = vld [vmem:[#allocation12 + $0x208] sm:$0xf]
          %v2321 = vld [vmem:[#allocation12 + $0x20c] sm:$0xf]
          %v2322 = vld [vmem:[#allocation12 + $0x210] sm:$0xf]
          %v2323 = vld [vmem:[#allocation12 + $0x214] sm:$0xf]
          %v2324 = vld [vmem:[#allocation12 + $0x218] sm:$0xf]
          %v2325 = vld [vmem:[#allocation12 + $0x21c] sm:$0xf]
          %v2326 = vld [vmem:[#allocation12 + $0x220] sm:$0xf]
          %v2327 = vld [vmem:[#allocation12 + $0x224] sm:$0xf]
          %v2328 = vld [vmem:[#allocation12 + $0x228] sm:$0xf]
          %v2329 = vld [vmem:[#allocation12 + $0x22c] sm:$0xf]
          %v2330 = vld [vmem:[#allocation12 + $0x230] sm:$0xf]
          %v2331 = vld [vmem:[#allocation12 + $0x234] sm:$0xf]
          %v2332 = vld [vmem:[#allocation12 + $0x238] sm:$0xf]
          %v2333 = vld [vmem:[#allocation12 + $0x23c] sm:$0xf]
          %v2478 = vunpack.c.l.b16 %v2190
          %v2479 = vunpack.c.l.b16 %v2191
          %v2480 = vunpack.c.l.b16 %v2192
          %v2481 = vunpack.c.l.b16 %v2193
          %v2482 = vunpack.c.l.b16 %v2194
          %v2483 = vunpack.c.l.b16 %v2195
          %v2484 = vunpack.c.l.b16 %v2196
          %v2485 = vunpack.c.l.b16 %v2197
          %v2486 = vunpack.c.l.b16 %v2198
          %v2487 = vunpack.c.l.b16 %v2199
          %v2488 = vunpack.c.l.b16 %v2200
          %v2489 = vunpack.c.l.b16 %v2201
          %v2490 = vunpack.c.l.b16 %v2202
          %v2491 = vunpack.c.l.b16 %v2203
          %v2492 = vunpack.c.l.b16 %v2204
          %v2493 = vunpack.c.l.b16 %v2205
          %v2494 = vunpack.c.l.b16 %v2206
          %v2495 = vunpack.c.l.b16 %v2207
          %v2496 = vunpack.c.l.b16 %v2208
          %v2497 = vunpack.c.l.b16 %v2209
          %v2498 = vunpack.c.l.b16 %v2210
          %v2499 = vunpack.c.l.b16 %v2211
          %v2500 = vunpack.c.l.b16 %v2212
          %v2501 = vunpack.c.l.b16 %v2213
          %v2502 = vunpack.c.l.b16 %v2214
          %v2503 = vunpack.c.l.b16 %v2215
          %v2504 = vunpack.c.l.b16 %v2216
          %v2505 = vunpack.c.l.b16 %v2217
          %v2506 = vunpack.c.l.b16 %v2218
          %v2507 = vunpack.c.l.b16 %v2219
          %v2508 = vunpack.c.l.b16 %v2220
          %v2509 = vunpack.c.l.b16 %v2221
          %v2510 = vunpack.c.l.b16 %v2222
          %v2511 = vunpack.c.l.b16 %v2223
          %v2512 = vunpack.c.l.b16 %v2224
          %v2513 = vunpack.c.l.b16 %v2225
          %v2514 = vunpack.c.l.b16 %v2226
          %v2515 = vunpack.c.l.b16 %v2227
          %v2516 = vunpack.c.l.b16 %v2228
          %v2517 = vunpack.c.l.b16 %v2229
          %v2518 = vunpack.c.l.b16 %v2230
          %v2519 = vunpack.c.l.b16 %v2231
          %v2520 = vunpack.c.l.b16 %v2232
          %v2521 = vunpack.c.l.b16 %v2233
          %v2522 = vunpack.c.l.b16 %v2234
          %v2523 = vunpack.c.l.b16 %v2235
          %v2524 = vunpack.c.l.b16 %v2236
          %v2525 = vunpack.c.l.b16 %v2237
          %v2526 = vunpack.c.l.b16 %v2238
          %v2527 = vunpack.c.l.b16 %v2239
          %v2528 = vunpack.c.l.b16 %v2240
          %v2529 = vunpack.c.l.b16 %v2241
          %v2530 = vunpack.c.l.b16 %v2242
          %v2531 = vunpack.c.l.b16 %v2243
          %v2532 = vunpack.c.l.b16 %v2244
          %v2533 = vunpack.c.l.b16 %v2245
          %v2534 = vunpack.c.l.b16 %v2246
          %v2535 = vunpack.c.l.b16 %v2247
          %v2536 = vunpack.c.l.b16 %v2248
          %v2537 = vunpack.c.l.b16 %v2249
          %v2538 = vunpack.c.l.b16 %v2250
          %v2539 = vunpack.c.l.b16 %v2251
          %v2540 = vunpack.c.l.b16 %v2252
          %v2541 = vunpack.c.l.b16 %v2253
          %v2542 = vunpack.c.l.b16 %v2254
          %v2543 = vunpack.c.l.b16 %v2255
          %v2544 = vunpack.c.l.b16 %v2256
          %v2545 = vunpack.c.l.b16 %v2257
          %v2546 = vunpack.c.l.b16 %v2258
          %v2547 = vunpack.c.l.b16 %v2259
          %v2548 = vunpack.c.l.b16 %v2260
          %v2549 = vunpack.c.l.b16 %v2261
          %v2550 = vunpack.c.l.b16 %v2262
          %v2551 = vunpack.c.l.b16 %v2263
          %v2552 = vunpack.c.l.b16 %v2264
          %v2553 = vunpack.c.l.b16 %v2265
          %v2554 = vunpack.c.l.b16 %v2266
          %v2555 = vunpack.c.l.b16 %v2267
          %v2556 = vunpack.c.l.b16 %v2268
          %v2557 = vunpack.c.l.b16 %v2269
          %v2558 = vunpack.c.l.b16 %v2270
          %v2559 = vunpack.c.l.b16 %v2271
          %v2560 = vunpack.c.l.b16 %v2272
          %v2561 = vunpack.c.l.b16 %v2273
          %v2562 = vunpack.c.l.b16 %v2274
          %v2563 = vunpack.c.l.b16 %v2275
          %v2564 = vunpack.c.l.b16 %v2276
          %v2565 = vunpack.c.l.b16 %v2277
          %v2566 = vunpack.c.l.b16 %v2278
          %v2567 = vunpack.c.l.b16 %v2279
          %v2568 = vunpack.c.l.b16 %v2280
          %v2569 = vunpack.c.l.b16 %v2281
          %v2570 = vunpack.c.l.b16 %v2282
          %v2571 = vunpack.c.l.b16 %v2283
          %v2572 = vunpack.c.l.b16 %v2284
          %v2573 = vunpack.c.l.b16 %v2285
          %v2574 = vunpack.c.l.b16 %v2286
          %v2575 = vunpack.c.l.b16 %v2287
          %v2576 = vunpack.c.l.b16 %v2288
          %v2577 = vunpack.c.l.b16 %v2289
          %v2578 = vunpack.c.l.b16 %v2290
          %v2579 = vunpack.c.l.b16 %v2291
          %v2580 = vunpack.c.l.b16 %v2292
          %v2581 = vunpack.c.l.b16 %v2293
          %v2582 = vunpack.c.l.b16 %v2294
          %v2583 = vunpack.c.l.b16 %v2295
          %v2584 = vunpack.c.l.b16 %v2296
          %v2585 = vunpack.c.l.b16 %v2297
          %v2586 = vunpack.c.l.b16 %v2298
          %v2587 = vunpack.c.l.b16 %v2299
          %v2588 = vunpack.c.l.b16 %v2300
          %v2589 = vunpack.c.l.b16 %v2301
          %v2590 = vunpack.c.l.b16 %v2302
          %v2591 = vunpack.c.l.b16 %v2303
          %v2592 = vunpack.c.l.b16 %v2304
          %v2593 = vunpack.c.l.b16 %v2305
          %v2594 = vunpack.c.l.b16 %v2306
          %v2595 = vunpack.c.l.b16 %v2307
          %v2596 = vunpack.c.l.b16 %v2308
          %v2597 = vunpack.c.l.b16 %v2309
          %v2598 = vunpack.c.l.b16 %v2310
          %v2599 = vunpack.c.l.b16 %v2311
          %v2600 = vunpack.c.l.b16 %v2312
          %v2601 = vunpack.c.l.b16 %v2313
          %v2602 = vunpack.c.l.b16 %v2314
          %v2603 = vunpack.c.l.b16 %v2315
          %v2604 = vunpack.c.l.b16 %v2316
          %v2605 = vunpack.c.l.b16 %v2317
          %v2606 = vunpack.c.l.b16 %v2318
          %v2607 = vunpack.c.l.b16 %v2319
          %v2608 = vunpack.c.l.b16 %v2320
          %v2609 = vunpack.c.l.b16 %v2321
          %v2610 = vunpack.c.l.b16 %v2322
          %v2611 = vunpack.c.l.b16 %v2323
          %v2612 = vunpack.c.l.b16 %v2324
          %v2613 = vunpack.c.l.b16 %v2325
          %v2614 = vunpack.c.l.b16 %v2326
          %v2615 = vunpack.c.l.b16 %v2327
          %v2616 = vunpack.c.l.b16 %v2328
          %v2617 = vunpack.c.l.b16 %v2329
          %v2618 = vunpack.c.l.b16 %v2330
          %v2619 = vunpack.c.l.b16 %v2331
          %v2620 = vunpack.c.l.b16 %v2332
          %v2621 = vunpack.c.l.b16 %v2333
          %v2622 = vpack.c.b16 %v2479, %v2478
          %v2623 = vpack.c.b16 %v2481, %v2480
          %v2624 = vpack.c.b16 %v2483, %v2482
          %v2625 = vpack.c.b16 %v2485, %v2484
          %v2626 = vpack.c.b16 %v2487, %v2486
          %v2627 = vpack.c.b16 %v2489, %v2488
          %v2628 = vpack.c.b16 %v2491, %v2490
          %v2629 = vpack.c.b16 %v2493, %v2492
          %v2630 = vpack.c.b16 %v2495, %v2494
          %v2631 = vpack.c.b16 %v2497, %v2496
          %v2632 = vpack.c.b16 %v2499, %v2498
          %v2633 = vpack.c.b16 %v2501, %v2500
          %v2634 = vpack.c.b16 %v2503, %v2502
          %v2635 = vpack.c.b16 %v2505, %v2504
          %v2636 = vpack.c.b16 %v2507, %v2506
          %v2637 = vpack.c.b16 %v2509, %v2508
          %v2638 = vpack.c.b16 %v2511, %v2510
          %v2639 = vpack.c.b16 %v2513, %v2512
          %v2640 = vpack.c.b16 %v2515, %v2514
          %v2641 = vpack.c.b16 %v2517, %v2516
          %v2642 = vpack.c.b16 %v2519, %v2518
          %v2643 = vpack.c.b16 %v2521, %v2520
          %v2644 = vpack.c.b16 %v2523, %v2522
          %v2645 = vpack.c.b16 %v2525, %v2524
          %v2646 = vpack.c.b16 %v2527, %v2526
          %v2647 = vpack.c.b16 %v2529, %v2528
          %v2648 = vpack.c.b16 %v2531, %v2530
          %v2649 = vpack.c.b16 %v2533, %v2532
          %v2650 = vpack.c.b16 %v2535, %v2534
          %v2651 = vpack.c.b16 %v2537, %v2536
          %v2652 = vpack.c.b16 %v2539, %v2538
          %v2653 = vpack.c.b16 %v2541, %v2540
          %v2654 = vpack.c.b16 %v2543, %v2542
          %v2655 = vpack.c.b16 %v2545, %v2544
          %v2656 = vpack.c.b16 %v2547, %v2546
          %v2657 = vpack.c.b16 %v2549, %v2548
          %v2658 = vpack.c.b16 %v2551, %v2550
          %v2659 = vpack.c.b16 %v2553, %v2552
          %v2660 = vpack.c.b16 %v2555, %v2554
          %v2661 = vpack.c.b16 %v2557, %v2556
          %v2662 = vpack.c.b16 %v2559, %v2558
          %v2663 = vpack.c.b16 %v2561, %v2560
          %v2664 = vpack.c.b16 %v2563, %v2562
          %v2665 = vpack.c.b16 %v2565, %v2564
          %v2666 = vpack.c.b16 %v2567, %v2566
          %v2667 = vpack.c.b16 %v2569, %v2568
          %v2668 = vpack.c.b16 %v2571, %v2570
          %v2669 = vpack.c.b16 %v2573, %v2572
          %v2670 = vpack.c.b16 %v2575, %v2574
          %v2671 = vpack.c.b16 %v2577, %v2576
          %v2672 = vpack.c.b16 %v2579, %v2578
          %v2673 = vpack.c.b16 %v2581, %v2580
          %v2674 = vpack.c.b16 %v2583, %v2582
          %v2675 = vpack.c.b16 %v2585, %v2584
          %v2676 = vpack.c.b16 %v2587, %v2586
          %v2677 = vpack.c.b16 %v2589, %v2588
          %v2678 = vpack.c.b16 %v2591, %v2590
          %v2679 = vpack.c.b16 %v2593, %v2592
          %v2680 = vpack.c.b16 %v2595, %v2594
          %v2681 = vpack.c.b16 %v2597, %v2596
          %v2682 = vpack.c.b16 %v2599, %v2598
          %v2683 = vpack.c.b16 %v2601, %v2600
          %v2684 = vpack.c.b16 %v2603, %v2602
          %v2685 = vpack.c.b16 %v2605, %v2604
          %v2686 = vpack.c.b16 %v2607, %v2606
          %v2687 = vpack.c.b16 %v2609, %v2608
          %v2688 = vpack.c.b16 %v2611, %v2610
          %v2689 = vpack.c.b16 %v2613, %v2612
          %v2690 = vpack.c.b16 %v2615, %v2614
          %v2691 = vpack.c.b16 %v2617, %v2616
          %v2692 = vpack.c.b16 %v2619, %v2618
          %v2693 = vpack.c.b16 %v2621, %v2620
          %2766 = vmatpush.bf16.msra.mxu0 %v2629
          %2767 = vmatpush.bf16.msra.mxu0 %v2628
          %2768 = vmatpush.bf16.msra.mxu0 %v2627
          %2769 = vmatpush.bf16.msra.mxu0 %v2626
          %2770 = vmatpush.bf16.msra.mxu0 %v2625
          %2771 = vmatpush.bf16.msra.mxu0 %v2624
          %2772 = vmatpush.bf16.msra.mxu0 %v2623
          %2773 = vmatpush.bf16.msra.mxu0 %v2622
          %2774 = vmatmul.bf16.gmra.mxu0 %v1889
          %v2775 = vpop.f32.mrf.mxu0
          %v2776 = vadd.f32 0.0, %v2775
          %v2777 = vpop.f32.mrf.mxu0
          %v2778 = vadd.f32 0.0, %v2777
          %2779 = vmatmul.bf16.gmra.mxu0 %v1890
          %v2780 = vpop.f32.mrf.mxu0
          %v2781 = vadd.f32 0.0, %v2780
          %v2782 = vpop.f32.mrf.mxu0
          %v2783 = vadd.f32 0.0, %v2782
          %2784 = vmatmul.bf16.gmra.mxu0 %v1891
          %v2785 = vpop.f32.mrf.mxu0
          %v2786 = vpop.f32.mrf.mxu0
          %v2787 = vadd.f32 0.0, %v2786
          %2788 = vmatmul.bf16.gmra.mxu0 %v1892
          %v2789 = vpop.f32.mrf.mxu0
          %v2790 = vadd.f32 0.0, %v2789
          %v2791 = vpop.f32.mrf.mxu0
          %v2792 = vadd.f32 0.0, %v2791
          %2793 = vmatmul.bf16.gmra.mxu0 %v1893
          %v2794 = vpop.f32.mrf.mxu0
          %v2795 = vadd.f32 0.0, %v2794
          %v2796 = vpop.f32.mrf.mxu0
          %2797 = vmatmul.bf16.gmra.mxu0 %v1894
          %v2798 = vpop.f32.mrf.mxu0
          %v2799 = vadd.f32 0.0, %v2798
          %v2800 = vpop.f32.mrf.mxu0
          %v2801 = vadd.f32 0.0, %v2800
          %2802 = vmatmul.bf16.gmra.mxu0 %v1895
          %v2803 = vpop.f32.mrf.mxu0
          %v2804 = vadd.f32 0.0, %v2803
          %v2805 = vpop.f32.mrf.mxu0
          %v2806 = vadd.f32 0.0, %v2805
          %2807 = vmatmul.bf16.gmra.mxu0 %v1896
          %v2808 = vpop.f32.mrf.mxu0
          %v2809 = vpop.f32.mrf.mxu0
          %v2810 = vadd.f32 0.0, %v2809
          %2811 = vmatmul.bf16.gmra.mxu0 %v1897
          %v2812 = vpop.f32.mrf.mxu0
          %v2813 = vadd.f32 0.0, %v2812
          %v2814 = vpop.f32.mrf.mxu0
          %v2815 = vadd.f32 0.0, %v2814
          %2816 = vmatmul.bf16.gmra.mxu0 %v1898
          %v2817 = vpop.f32.mrf.mxu0
          %v2818 = vadd.f32 0.0, %v2817
          %v2819 = vpop.f32.mrf.mxu0
          %2820 = vmatmul.bf16.gmra.mxu0 %v1899
          %v2821 = vpop.f32.mrf.mxu0
          %v2822 = vadd.f32 0.0, %v2821
          %v2823 = vpop.f32.mrf.mxu0
          %v2824 = vadd.f32 0.0, %v2823
          %2825 = vmatmul.bf16.gmra.mxu0 %v1900
          %v2826 = vpop.f32.mrf.mxu0
          %v2827 = vadd.f32 0.0, %v2826
          %v2828 = vpop.f32.mrf.mxu0
          %v2829 = vadd.f32 0.0, %v2828
          %2830 = vmatmul.bf16.gmra.mxu0 %v1901
          %v2831 = vpop.f32.mrf.mxu0
          %v2832 = vpop.f32.mrf.mxu0
          %v2833 = vadd.f32 0.0, %v2832
          %2834 = vmatmul.bf16.gmra.mxu0 %v1902
          %v2835 = vpop.f32.mrf.mxu0
          %v2836 = vadd.f32 0.0, %v2835
          %v2837 = vpop.f32.mrf.mxu0
          %v2838 = vadd.f32 0.0, %v2837
          %2839 = vmatmul.bf16.gmra.mxu0 %v1903
          %v2840 = vpop.f32.mrf.mxu0
          %v2841 = vadd.f32 0.0, %v2840
          %v2842 = vpop.f32.mrf.mxu0
          %2843 = vmatmul.bf16.gmra.mxu0 %v1904
          %v2844 = vpop.f32.mrf.mxu0
          %v2845 = vadd.f32 0.0, %v2844
          %v2846 = vpop.f32.mrf.mxu0
          %v2847 = vadd.f32 0.0, %v2846
          %2848 = vmatmul.bf16.gmra.mxu0 %v1905
          %v2849 = vpop.f32.mrf.mxu0
          %v2850 = vadd.f32 0.0, %v2849
          %v2851 = vpop.f32.mrf.mxu0
          %v2852 = vadd.f32 0.0, %v2851
          %2853 = vmatmul.bf16.gmra.mxu0 %v1906
          %v2854 = vpop.f32.mrf.mxu0
          %v2855 = vpop.f32.mrf.mxu0
          %v2856 = vadd.f32 0.0, %v2855
          %2857 = vmatmul.bf16.gmra.mxu0 %v1907
          %v2858 = vpop.f32.mrf.mxu0
          %v2859 = vadd.f32 0.0, %v2858
          %v2860 = vpop.f32.mrf.mxu0
          %v2861 = vadd.f32 0.0, %v2860
          %2862 = vmatmul.bf16.gmra.mxu0 %v1908
          %v2863 = vpop.f32.mrf.mxu0
          %v2864 = vadd.f32 0.0, %v2863
          %v2865 = vpop.f32.mrf.mxu0
          %2866 = vdwg.mxu0
          %2867 = vmatpush.bf16.msra.mxu0 %v2637
          %2868 = vmatpush.bf16.msra.mxu0 %v2636
          %2869 = vmatpush.bf16.msra.mxu0 %v2635
          %2870 = vmatpush.bf16.msra.mxu0 %v2634
          %2871 = vmatpush.bf16.msra.mxu0 %v2633
          %2872 = vmatpush.bf16.msra.mxu0 %v2632
          %2873 = vmatpush.bf16.msra.mxu0 %v2631
          %2874 = vmatpush.bf16.msra.mxu0 %v2630
          %2875 = vmatmul.bf16.gmra.mxu0 %v1935
          %v2876 = vpop.f32.mrf.mxu0
          %v2877 = vadd.f32 %v2776, %v2876
          %v2878 = vpop.f32.mrf.mxu0
          %v2879 = vadd.f32 %v2778, %v2878
          %2880 = vmatmul.bf16.gmra.mxu0 %v1937
          %v2881 = vpop.f32.mrf.mxu0
          %v2882 = vadd.f32 %v2781, %v2881
          %v2883 = vpop.f32.mrf.mxu0
          %v2884 = vadd.f32 %v2783, %v2883
          %2885 = vmatmul.bf16.gmra.mxu0 %v1939
          %v2886 = vpop.f32.mrf.mxu0
          %v2887 = vpop.f32.mrf.mxu0
          %v2888 = vadd.f32 %v2787, %v2887
          %2889 = vmatmul.bf16.gmra.mxu0 %v1941
          %v2890 = vpop.f32.mrf.mxu0
          %v2891 = vadd.f32 %v2790, %v2890
          %v2892 = vpop.f32.mrf.mxu0
          %v2893 = vadd.f32 %v2792, %v2892
          %2894 = vmatmul.bf16.gmra.mxu0 %v1943
          %v2895 = vpop.f32.mrf.mxu0
          %v2896 = vadd.f32 %v2795, %v2895
          %v2897 = vpop.f32.mrf.mxu0
          %2898 = vmatmul.bf16.gmra.mxu0 %v1945
          %v2899 = vpop.f32.mrf.mxu0
          %v2900 = vadd.f32 %v2799, %v2899
          %v2901 = vpop.f32.mrf.mxu0
          %v2902 = vadd.f32 %v2801, %v2901
          %2903 = vmatmul.bf16.gmra.mxu0 %v1947
          %v2904 = vpop.f32.mrf.mxu0
          %v2905 = vadd.f32 %v2804, %v2904
          %v2906 = vpop.f32.mrf.mxu0
          %v2907 = vadd.f32 %v2806, %v2906
          %2908 = vmatmul.bf16.gmra.mxu0 %v1949
          %v2909 = vpop.f32.mrf.mxu0
          %v2910 = vpop.f32.mrf.mxu0
          %v2911 = vadd.f32 %v2810, %v2910
          %2912 = vmatmul.bf16.gmra.mxu0 %v1951
          %v2913 = vpop.f32.mrf.mxu0
          %v2914 = vadd.f32 %v2813, %v2913
          %v2915 = vpop.f32.mrf.mxu0
          %v2916 = vadd.f32 %v2815, %v2915
          %2917 = vmatmul.bf16.gmra.mxu0 %v1953
          %v2918 = vpop.f32.mrf.mxu0
          %v2919 = vadd.f32 %v2818, %v2918
          %v2920 = vpop.f32.mrf.mxu0
          %2921 = vmatmul.bf16.gmra.mxu0 %v1955
          %v2922 = vpop.f32.mrf.mxu0
          %v2923 = vadd.f32 %v2822, %v2922
          %v2924 = vpop.f32.mrf.mxu0
          %v2925 = vadd.f32 %v2824, %v2924
          %2926 = vmatmul.bf16.gmra.mxu0 %v1957
          %v2927 = vpop.f32.mrf.mxu0
          %v2928 = vadd.f32 %v2827, %v2927
          %v2929 = vpop.f32.mrf.mxu0
          %v2930 = vadd.f32 %v2829, %v2929
          %2931 = vmatmul.bf16.gmra.mxu0 %v1959
          %v2932 = vpop.f32.mrf.mxu0
          %v2933 = vpop.f32.mrf.mxu0
          %v2934 = vadd.f32 %v2833, %v2933
          %2935 = vmatmul.bf16.gmra.mxu0 %v1961
          %v2936 = vpop.f32.mrf.mxu0
          %v2937 = vadd.f32 %v2836, %v2936
          %v2938 = vpop.f32.mrf.mxu0
          %v2939 = vadd.f32 %v2838, %v2938
          %2940 = vmatmul.bf16.gmra.mxu0 %v1963
          %v2941 = vpop.f32.mrf.mxu0
          %v2942 = vadd.f32 %v2841, %v2941
          %v2943 = vpop.f32.mrf.mxu0
          %2944 = vmatmul.bf16.gmra.mxu0 %v1965
          %v2945 = vpop.f32.mrf.mxu0
          %v2946 = vadd.f32 %v2845, %v2945
          %v2947 = vpop.f32.mrf.mxu0
          %v2948 = vadd.f32 %v2847, %v2947
          %2949 = vmatmul.bf16.gmra.mxu0 %v1967
          %v2950 = vpop.f32.mrf.mxu0
          %v2951 = vadd.f32 %v2850, %v2950
          %v2952 = vpop.f32.mrf.mxu0
          %v2953 = vadd.f32 %v2852, %v2952
          %2954 = vmatmul.bf16.gmra.mxu0 %v1969
          %v2955 = vpop.f32.mrf.mxu0
          %v2956 = vpop.f32.mrf.mxu0
          %v2957 = vadd.f32 %v2856, %v2956
          %2958 = vmatmul.bf16.gmra.mxu0 %v1971
          %v2959 = vpop.f32.mrf.mxu0
          %v2960 = vadd.f32 %v2859, %v2959
          %v2961 = vpop.f32.mrf.mxu0
          %v2962 = vadd.f32 %v2861, %v2961
          %2963 = vmatmul.bf16.gmra.mxu0 %v1973
          %v2964 = vpop.f32.mrf.mxu0
          %v2965 = vadd.f32 %v2864, %v2964
          %v2966 = vpop.f32.mrf.mxu0
          %2967 = vdwg.mxu0
          %2968 = vmatpush.bf16.msra.mxu0 %v2645
          %2969 = vmatpush.bf16.msra.mxu0 %v2644
          %2970 = vmatpush.bf16.msra.mxu0 %v2643
          %2971 = vmatpush.bf16.msra.mxu0 %v2642
          %2972 = vmatpush.bf16.msra.mxu0 %v2641
          %2973 = vmatpush.bf16.msra.mxu0 %v2640
          %2974 = vmatpush.bf16.msra.mxu0 %v2639
          %2975 = vmatpush.bf16.msra.mxu0 %v2638
          %2976 = vmatmul.bf16.gmra.mxu0 %v1997
          %v2977 = vpop.f32.mrf.mxu0
          %v2978 = vadd.f32 %v2877, %v2977
          %v2979 = vpop.f32.mrf.mxu0
          %v2980 = vadd.f32 %v2879, %v2979
          %2981 = vmatmul.bf16.gmra.mxu0 %v1999
          %v2982 = vpop.f32.mrf.mxu0
          %v2983 = vadd.f32 %v2882, %v2982
          %v2984 = vpop.f32.mrf.mxu0
          %v2985 = vadd.f32 %v2884, %v2984
          %2986 = vmatmul.bf16.gmra.mxu0 %v2001
          %v2987 = vpop.f32.mrf.mxu0
          %v2988 = vpop.f32.mrf.mxu0
          %v2989 = vadd.f32 %v2888, %v2988
          %2990 = vmatmul.bf16.gmra.mxu0 %v2003
          %v2991 = vpop.f32.mrf.mxu0
          %v2992 = vadd.f32 %v2891, %v2991
          %v2993 = vpop.f32.mrf.mxu0
          %v2994 = vadd.f32 %v2893, %v2993
          %2995 = vmatmul.bf16.gmra.mxu0 %v2005
          %v2996 = vpop.f32.mrf.mxu0
          %v2997 = vadd.f32 %v2896, %v2996
          %v2998 = vpop.f32.mrf.mxu0
          %2999 = vmatmul.bf16.gmra.mxu0 %v2007
          %v3000 = vpop.f32.mrf.mxu0
          %v3001 = vadd.f32 %v2900, %v3000
          %v3002 = vpop.f32.mrf.mxu0
          %v3003 = vadd.f32 %v2902, %v3002
          %3004 = vmatmul.bf16.gmra.mxu0 %v2009
          %v3005 = vpop.f32.mrf.mxu0
          %v3006 = vadd.f32 %v2905, %v3005
          %v3007 = vpop.f32.mrf.mxu0
          %v3008 = vadd.f32 %v2907, %v3007
          %3009 = vmatmul.bf16.gmra.mxu0 %v2011
          %v3010 = vpop.f32.mrf.mxu0
          %v3011 = vpop.f32.mrf.mxu0
          %v3012 = vadd.f32 %v2911, %v3011
          %3013 = vmatmul.bf16.gmra.mxu0 %v2013
          %v3014 = vpop.f32.mrf.mxu0
          %v3015 = vadd.f32 %v2914, %v3014
          %v3016 = vpop.f32.mrf.mxu0
          %v3017 = vadd.f32 %v2916, %v3016
          %3018 = vmatmul.bf16.gmra.mxu0 %v2015
          %v3019 = vpop.f32.mrf.mxu0
          %v3020 = vadd.f32 %v2919, %v3019
          %v3021 = vpop.f32.mrf.mxu0
          %3022 = vmatmul.bf16.gmra.mxu0 %v2017
          %v3023 = vpop.f32.mrf.mxu0
          %v3024 = vadd.f32 %v2923, %v3023
          %v3025 = vpop.f32.mrf.mxu0
          %v3026 = vadd.f32 %v2925, %v3025
          %3027 = vmatmul.bf16.gmra.mxu0 %v2019
          %v3028 = vpop.f32.mrf.mxu0
          %v3029 = vadd.f32 %v2928, %v3028
          %v3030 = vpop.f32.mrf.mxu0
          %v3031 = vadd.f32 %v2930, %v3030
          %3032 = vmatmul.bf16.gmra.mxu0 %v2021
          %v3033 = vpop.f32.mrf.mxu0
          %v3034 = vpop.f32.mrf.mxu0
          %v3035 = vadd.f32 %v2934, %v3034
          %3036 = vmatmul.bf16.gmra.mxu0 %v2023
          %v3037 = vpop.f32.mrf.mxu0
          %v3038 = vadd.f32 %v2937, %v3037
          %v3039 = vpop.f32.mrf.mxu0
          %v3040 = vadd.f32 %v2939, %v3039
          %3041 = vmatmul.bf16.gmra.mxu0 %v2025
          %v3042 = vpop.f32.mrf.mxu0
          %v3043 = vadd.f32 %v2942, %v3042
          %v3044 = vpop.f32.mrf.mxu0
          %3045 = vmatmul.bf16.gmra.mxu0 %v2027
          %v3046 = vpop.f32.mrf.mxu0
          %v3047 = vadd.f32 %v2946, %v3046
          %v3048 = vpop.f32.mrf.mxu0
          %v3049 = vadd.f32 %v2948, %v3048
          %3050 = vmatmul.bf16.gmra.mxu0 %v2029
          %v3051 = vpop.f32.mrf.mxu0
          %v3052 = vadd.f32 %v2951, %v3051
          %v3053 = vpop.f32.mrf.mxu0
          %v3054 = vadd.f32 %v2953, %v3053
          %3055 = vmatmul.bf16.gmra.mxu0 %v2031
          %v3056 = vpop.f32.mrf.mxu0
          %v3057 = vpop.f32.mrf.mxu0
          %v3058 = vadd.f32 %v2957, %v3057
          %3059 = vmatmul.bf16.gmra.mxu0 %v2033
          %v3060 = vpop.f32.mrf.mxu0
          %v3061 = vadd.f32 %v2960, %v3060
          %v3062 = vpop.f32.mrf.mxu0
          %v3063 = vadd.f32 %v2962, %v3062
          %3064 = vmatmul.bf16.gmra.mxu0 %v2035
          %v3065 = vpop.f32.mrf.mxu0
          %v3066 = vadd.f32 %v2965, %v3065
          %v3067 = vpop.f32.mrf.mxu0
          %3068 = vdwg.mxu0
          %3069 = vmatpush.bf16.msra.mxu0 %v2653
          %3070 = vmatpush.bf16.msra.mxu0 %v2652
          %3071 = vmatpush.bf16.msra.mxu0 %v2651
          %3072 = vmatpush.bf16.msra.mxu0 %v2650
          %3073 = vmatpush.bf16.msra.mxu0 %v2649
          %3074 = vmatpush.bf16.msra.mxu0 %v2648
          %3075 = vmatpush.bf16.msra.mxu0 %v2647
          %3076 = vmatpush.bf16.msra.mxu0 %v2646
          %3077 = vmatmul.bf16.gmra.mxu0 %v1894
          %v3078 = vpop.f32.mrf.mxu0
          %v3079 = vadd.f32 %v2978, %v3078
          %v3080 = vpop.f32.mrf.mxu0
          %v3081 = vadd.f32 %v2980, %v3080
          %3082 = vmatmul.bf16.gmra.mxu0 %v1895
          %v3083 = vpop.f32.mrf.mxu0
          %v3084 = vadd.f32 %v2983, %v3083
          %v3085 = vpop.f32.mrf.mxu0
          %v3086 = vadd.f32 %v2985, %v3085
          %3087 = vmatmul.bf16.gmra.mxu0 %v1896
          %v3088 = vpop.f32.mrf.mxu0
          %v3089 = vpop.f32.mrf.mxu0
          %v3090 = vadd.f32 %v2989, %v3089
          %3091 = vmatmul.bf16.gmra.mxu0 %v1897
          %v3092 = vpop.f32.mrf.mxu0
          %v3093 = vadd.f32 %v2992, %v3092
          %v3094 = vpop.f32.mrf.mxu0
          %v3095 = vadd.f32 %v2994, %v3094
          %3096 = vmatmul.bf16.gmra.mxu0 %v1898
          %v3097 = vpop.f32.mrf.mxu0
          %v3098 = vadd.f32 %v2997, %v3097
          %v3099 = vpop.f32.mrf.mxu0
          %3100 = vmatmul.bf16.gmra.mxu0 %v1899
          %v3101 = vpop.f32.mrf.mxu0
          %v3102 = vadd.f32 %v3001, %v3101
          %v3103 = vpop.f32.mrf.mxu0
          %v3104 = vadd.f32 %v3003, %v3103
          %3105 = vmatmul.bf16.gmra.mxu0 %v1900
          %v3106 = vpop.f32.mrf.mxu0
          %v3107 = vadd.f32 %v3006, %v3106
          %v3108 = vpop.f32.mrf.mxu0
          %v3109 = vadd.f32 %v3008, %v3108
          %3110 = vmatmul.bf16.gmra.mxu0 %v1901
          %v3111 = vpop.f32.mrf.mxu0
          %v3112 = vpop.f32.mrf.mxu0
          %v3113 = vadd.f32 %v3012, %v3112
          %3114 = vmatmul.bf16.gmra.mxu0 %v1902
          %v3115 = vpop.f32.mrf.mxu0
          %v3116 = vadd.f32 %v3015, %v3115
          %v3117 = vpop.f32.mrf.mxu0
          %v3118 = vadd.f32 %v3017, %v3117
          %3119 = vmatmul.bf16.gmra.mxu0 %v1903
          %v3120 = vpop.f32.mrf.mxu0
          %v3121 = vadd.f32 %v3020, %v3120
          %v3122 = vpop.f32.mrf.mxu0
          %3123 = vmatmul.bf16.gmra.mxu0 %v1904
          %v3124 = vpop.f32.mrf.mxu0
          %v3125 = vadd.f32 %v3024, %v3124
          %v3126 = vpop.f32.mrf.mxu0
          %v3127 = vadd.f32 %v3026, %v3126
          %3128 = vmatmul.bf16.gmra.mxu0 %v1905
          %v3129 = vpop.f32.mrf.mxu0
          %v3130 = vadd.f32 %v3029, %v3129
          %v3131 = vpop.f32.mrf.mxu0
          %v3132 = vadd.f32 %v3031, %v3131
          %3133 = vmatmul.bf16.gmra.mxu0 %v1906
          %v3134 = vpop.f32.mrf.mxu0
          %v3135 = vpop.f32.mrf.mxu0
          %v3136 = vadd.f32 %v3035, %v3135
          %3137 = vmatmul.bf16.gmra.mxu0 %v1907
          %v3138 = vpop.f32.mrf.mxu0
          %v3139 = vadd.f32 %v3038, %v3138
          %v3140 = vpop.f32.mrf.mxu0
          %v3141 = vadd.f32 %v3040, %v3140
          %3142 = vmatmul.bf16.gmra.mxu0 %v1908
          %v3143 = vpop.f32.mrf.mxu0
          %v3144 = vadd.f32 %v3043, %v3143
          %v3145 = vpop.f32.mrf.mxu0
          %3146 = vmatmul.bf16.gmra.mxu0 %v2074
          %v3147 = vpop.f32.mrf.mxu0
          %v3148 = vadd.f32 %v3047, %v3147
          %v3149 = vpop.f32.mrf.mxu0
          %v3150 = vadd.f32 %v3049, %v3149
          %3151 = vmatmul.bf16.gmra.mxu0 %v2075
          %v3152 = vpop.f32.mrf.mxu0
          %v3153 = vadd.f32 %v3052, %v3152
          %v3154 = vpop.f32.mrf.mxu0
          %v3155 = vadd.f32 %v3054, %v3154
          %3156 = vmatmul.bf16.gmra.mxu0 %v2076
          %v3157 = vpop.f32.mrf.mxu0
          %v3158 = vpop.f32.mrf.mxu0
          %v3159 = vadd.f32 %v3058, %v3158
          %3160 = vmatmul.bf16.gmra.mxu0 %v2077
          %v3161 = vpop.f32.mrf.mxu0
          %v3162 = vadd.f32 %v3061, %v3161
          %v3163 = vpop.f32.mrf.mxu0
          %v3164 = vadd.f32 %v3063, %v3163
          %3165 = vmatmul.bf16.gmra.mxu0 %v2078
          %v3166 = vpop.f32.mrf.mxu0
          %v3167 = vadd.f32 %v3066, %v3166
          %v3168 = vpop.f32.mrf.mxu0
          %3169 = vdwg.mxu0
          %3170 = vmatpush.bf16.msra.mxu0 %v2661
          %3171 = vmatpush.bf16.msra.mxu0 %v2660
          %3172 = vmatpush.bf16.msra.mxu0 %v2659
          %3173 = vmatpush.bf16.msra.mxu0 %v2658
          %3174 = vmatpush.bf16.msra.mxu0 %v2657
          %3175 = vmatpush.bf16.msra.mxu0 %v2656
          %3176 = vmatpush.bf16.msra.mxu0 %v2655
          %3177 = vmatpush.bf16.msra.mxu0 %v2654
          %3178 = vmatmul.bf16.gmra.mxu0 %v1945
          %v3179 = vpop.f32.mrf.mxu0
          %v3180 = vadd.f32 %v3079, %v3179
          %v3181 = vpop.f32.mrf.mxu0
          %v3182 = vadd.f32 %v3081, %v3181
          %3183 = vmatmul.bf16.gmra.mxu0 %v1947
          %v3184 = vpop.f32.mrf.mxu0
          %v3185 = vadd.f32 %v3084, %v3184
          %v3186 = vpop.f32.mrf.mxu0
          %v3187 = vadd.f32 %v3086, %v3186
          %3188 = vmatmul.bf16.gmra.mxu0 %v1949
          %v3189 = vpop.f32.mrf.mxu0
          %v3190 = vpop.f32.mrf.mxu0
          %v3191 = vadd.f32 %v3090, %v3190
          %3192 = vmatmul.bf16.gmra.mxu0 %v1951
          %v3193 = vpop.f32.mrf.mxu0
          %v3194 = vadd.f32 %v3093, %v3193
          %v3195 = vpop.f32.mrf.mxu0
          %v3196 = vadd.f32 %v3095, %v3195
          %3197 = vmatmul.bf16.gmra.mxu0 %v1953
          %v3198 = vpop.f32.mrf.mxu0
          %v3199 = vadd.f32 %v3098, %v3198
          %v3200 = vpop.f32.mrf.mxu0
          %3201 = vmatmul.bf16.gmra.mxu0 %v1955
          %v3202 = vpop.f32.mrf.mxu0
          %v3203 = vadd.f32 %v3102, %v3202
          %v3204 = vpop.f32.mrf.mxu0
          %v3205 = vadd.f32 %v3104, %v3204
          %3206 = vmatmul.bf16.gmra.mxu0 %v1957
          %v3207 = vpop.f32.mrf.mxu0
          %v3208 = vadd.f32 %v3107, %v3207
          %v3209 = vpop.f32.mrf.mxu0
          %v3210 = vadd.f32 %v3109, %v3209
          %3211 = vmatmul.bf16.gmra.mxu0 %v1959
          %v3212 = vpop.f32.mrf.mxu0
          %v3213 = vpop.f32.mrf.mxu0
          %v3214 = vadd.f32 %v3113, %v3213
          %3215 = vmatmul.bf16.gmra.mxu0 %v1961
          %v3216 = vpop.f32.mrf.mxu0
          %v3217 = vadd.f32 %v3116, %v3216
          %v3218 = vpop.f32.mrf.mxu0
          %v3219 = vadd.f32 %v3118, %v3218
          %3220 = vmatmul.bf16.gmra.mxu0 %v1963
          %v3221 = vpop.f32.mrf.mxu0
          %v3222 = vadd.f32 %v3121, %v3221
          %v3223 = vpop.f32.mrf.mxu0
          %3224 = vmatmul.bf16.gmra.mxu0 %v1965
          %v3225 = vpop.f32.mrf.mxu0
          %v3226 = vadd.f32 %v3125, %v3225
          %v3227 = vpop.f32.mrf.mxu0
          %v3228 = vadd.f32 %v3127, %v3227
          %3229 = vmatmul.bf16.gmra.mxu0 %v1967
          %v3230 = vpop.f32.mrf.mxu0
          %v3231 = vadd.f32 %v3130, %v3230
          %v3232 = vpop.f32.mrf.mxu0
          %v3233 = vadd.f32 %v3132, %v3232
          %3234 = vmatmul.bf16.gmra.mxu0 %v1969
          %v3235 = vpop.f32.mrf.mxu0
          %v3236 = vpop.f32.mrf.mxu0
          %v3237 = vadd.f32 %v3136, %v3236
          %3238 = vmatmul.bf16.gmra.mxu0 %v1971
          %v3239 = vpop.f32.mrf.mxu0
          %v3240 = vadd.f32 %v3139, %v3239
          %v3241 = vpop.f32.mrf.mxu0
          %v3242 = vadd.f32 %v3141, %v3241
          %3243 = vmatmul.bf16.gmra.mxu0 %v2088
          %v3244 = vpop.f32.mrf.mxu0
          %v3245 = vadd.f32 %v3144, %v3244
          %v3246 = vpop.f32.mrf.mxu0
          %3247 = vmatmul.bf16.gmra.mxu0 %v2090
          %v3248 = vpop.f32.mrf.mxu0
          %v3249 = vadd.f32 %v3148, %v3248
          %v3250 = vpop.f32.mrf.mxu0
          %v3251 = vadd.f32 %v3150, %v3250
          %3252 = vmatmul.bf16.gmra.mxu0 %v2092
          %v3253 = vpop.f32.mrf.mxu0
          %v3254 = vadd.f32 %v3153, %v3253
          %v3255 = vpop.f32.mrf.mxu0
          %v3256 = vadd.f32 %v3155, %v3255
          %3257 = vmatmul.bf16.gmra.mxu0 %v2094
          %v3258 = vpop.f32.mrf.mxu0
          %v3259 = vpop.f32.mrf.mxu0
          %v3260 = vadd.f32 %v3159, %v3259
          %3261 = vmatmul.bf16.gmra.mxu0 %v2096
          %v3262 = vpop.f32.mrf.mxu0
          %v3263 = vadd.f32 %v3162, %v3262
          %v3264 = vpop.f32.mrf.mxu0
          %v3265 = vadd.f32 %v3164, %v3264
          %3266 = vmatmul.bf16.gmra.mxu0 %v2098
          %v3267 = vpop.f32.mrf.mxu0
          %v3268 = vadd.f32 %v3167, %v3267
          %v3269 = vpop.f32.mrf.mxu0
          %3270 = vdwg.mxu0
          %3271 = vmatpush.bf16.msra.mxu0 %v2669
          %3272 = vmatpush.bf16.msra.mxu0 %v2668
          %3273 = vmatpush.bf16.msra.mxu0 %v2667
          %3274 = vmatpush.bf16.msra.mxu0 %v2666
          %3275 = vmatpush.bf16.msra.mxu0 %v2665
          %3276 = vmatpush.bf16.msra.mxu0 %v2664
          %3277 = vmatpush.bf16.msra.mxu0 %v2663
          %3278 = vmatpush.bf16.msra.mxu0 %v2662
          %3279 = vmatmul.bf16.gmra.mxu0 %v2007
          %v3280 = vpop.f32.mrf.mxu0
          %v3281 = vadd.f32 %v3180, %v3280
          %v3282 = vpop.f32.mrf.mxu0
          %v3283 = vadd.f32 %v3182, %v3282
          %3284 = vmatmul.bf16.gmra.mxu0 %v2009
          %v3285 = vpop.f32.mrf.mxu0
          %v3286 = vadd.f32 %v3185, %v3285
          %v3287 = vpop.f32.mrf.mxu0
          %v3288 = vadd.f32 %v3187, %v3287
          %3289 = vmatmul.bf16.gmra.mxu0 %v2011
          %v3290 = vpop.f32.mrf.mxu0
          %v3291 = vpop.f32.mrf.mxu0
          %v3292 = vadd.f32 %v3191, %v3291
          %3293 = vmatmul.bf16.gmra.mxu0 %v2013
          %v3294 = vpop.f32.mrf.mxu0
          %v3295 = vadd.f32 %v3194, %v3294
          %v3296 = vpop.f32.mrf.mxu0
          %v3297 = vadd.f32 %v3196, %v3296
          %3298 = vmatmul.bf16.gmra.mxu0 %v2015
          %v3299 = vpop.f32.mrf.mxu0
          %v3300 = vadd.f32 %v3199, %v3299
          %v3301 = vpop.f32.mrf.mxu0
          %3302 = vmatmul.bf16.gmra.mxu0 %v2017
          %v3303 = vpop.f32.mrf.mxu0
          %v3304 = vadd.f32 %v3203, %v3303
          %v3305 = vpop.f32.mrf.mxu0
          %v3306 = vadd.f32 %v3205, %v3305
          %3307 = vmatmul.bf16.gmra.mxu0 %v2019
          %v3308 = vpop.f32.mrf.mxu0
          %v3309 = vadd.f32 %v3208, %v3308
          %v3310 = vpop.f32.mrf.mxu0
          %v3311 = vadd.f32 %v3210, %v3310
          %3312 = vmatmul.bf16.gmra.mxu0 %v2021
          %v3313 = vpop.f32.mrf.mxu0
          %v3314 = vpop.f32.mrf.mxu0
          %v3315 = vadd.f32 %v3214, %v3314
          %3316 = vmatmul.bf16.gmra.mxu0 %v2023
          %v3317 = vpop.f32.mrf.mxu0
          %v3318 = vadd.f32 %v3217, %v3317
          %v3319 = vpop.f32.mrf.mxu0
          %v3320 = vadd.f32 %v3219, %v3319
          %3321 = vmatmul.bf16.gmra.mxu0 %v2025
          %v3322 = vpop.f32.mrf.mxu0
          %v3323 = vadd.f32 %v3222, %v3322
          %v3324 = vpop.f32.mrf.mxu0
          %3325 = vmatmul.bf16.gmra.mxu0 %v2027
          %v3326 = vpop.f32.mrf.mxu0
          %v3327 = vadd.f32 %v3226, %v3326
          %v3328 = vpop.f32.mrf.mxu0
          %v3329 = vadd.f32 %v3228, %v3328
          %3330 = vmatmul.bf16.gmra.mxu0 %v2029
          %v3331 = vpop.f32.mrf.mxu0
          %v3332 = vadd.f32 %v3231, %v3331
          %v3333 = vpop.f32.mrf.mxu0
          %v3334 = vadd.f32 %v3233, %v3333
          %3335 = vmatmul.bf16.gmra.mxu0 %v2031
          %v3336 = vpop.f32.mrf.mxu0
          %v3337 = vpop.f32.mrf.mxu0
          %v3338 = vadd.f32 %v3237, %v3337
          %3339 = vmatmul.bf16.gmra.mxu0 %v2033
          %v3340 = vpop.f32.mrf.mxu0
          %v3341 = vadd.f32 %v3240, %v3340
          %v3342 = vpop.f32.mrf.mxu0
          %v3343 = vadd.f32 %v3242, %v3342
          %3344 = vmatmul.bf16.gmra.mxu0 %v2106
          %v3345 = vpop.f32.mrf.mxu0
          %v3346 = vadd.f32 %v3245, %v3345
          %v3347 = vpop.f32.mrf.mxu0
          %3348 = vmatmul.bf16.gmra.mxu0 %v2108
          %v3349 = vpop.f32.mrf.mxu0
          %v3350 = vadd.f32 %v3249, %v3349
          %v3351 = vpop.f32.mrf.mxu0
          %v3352 = vadd.f32 %v3251, %v3351
          %3353 = vmatmul.bf16.gmra.mxu0 %v2110
          %v3354 = vpop.f32.mrf.mxu0
          %v3355 = vadd.f32 %v3254, %v3354
          %v3356 = vpop.f32.mrf.mxu0
          %v3357 = vadd.f32 %v3256, %v3356
          %3358 = vmatmul.bf16.gmra.mxu0 %v2112
          %v3359 = vpop.f32.mrf.mxu0
          %v3360 = vpop.f32.mrf.mxu0
          %v3361 = vadd.f32 %v3260, %v3360
          %3362 = vmatmul.bf16.gmra.mxu0 %v2114
          %v3363 = vpop.f32.mrf.mxu0
          %v3364 = vadd.f32 %v3263, %v3363
          %v3365 = vpop.f32.mrf.mxu0
          %v3366 = vadd.f32 %v3265, %v3365
          %3367 = vmatmul.bf16.gmra.mxu0 %v2116
          %v3368 = vpop.f32.mrf.mxu0
          %v3369 = vadd.f32 %v3268, %v3368
          %v3370 = vpop.f32.mrf.mxu0
          %3371 = vdwg.mxu0
          %3372 = vmatpush.bf16.msra.mxu0 %v2677
          %3373 = vmatpush.bf16.msra.mxu0 %v2676
          %3374 = vmatpush.bf16.msra.mxu0 %v2675
          %3375 = vmatpush.bf16.msra.mxu0 %v2674
          %3376 = vmatpush.bf16.msra.mxu0 %v2673
          %3377 = vmatpush.bf16.msra.mxu0 %v2672
          %3378 = vmatpush.bf16.msra.mxu0 %v2671
          %3379 = vmatpush.bf16.msra.mxu0 %v2670
          %3380 = vmatmul.bf16.gmra.mxu0 %v1899
          %v3381 = vpop.f32.mrf.mxu0
          %v3382 = vadd.f32 %v3281, %v3381
          %v3383 = vpop.f32.mrf.mxu0
          %v3384 = vadd.f32 %v3283, %v3383
          %3385 = vmatmul.bf16.gmra.mxu0 %v1900
          %v3386 = vpop.f32.mrf.mxu0
          %v3387 = vadd.f32 %v3286, %v3386
          %v3388 = vpop.f32.mrf.mxu0
          %v3389 = vadd.f32 %v3288, %v3388
          %3390 = vmatmul.bf16.gmra.mxu0 %v1901
          %v3391 = vpop.f32.mrf.mxu0
          %v3392 = vpop.f32.mrf.mxu0
          %v3393 = vadd.f32 %v3292, %v3392
          %3394 = vmatmul.bf16.gmra.mxu0 %v1902
          %v3395 = vpop.f32.mrf.mxu0
          %v3396 = vadd.f32 %v3295, %v3395
          %v3397 = vpop.f32.mrf.mxu0
          %v3398 = vadd.f32 %v3297, %v3397
          %3399 = vmatmul.bf16.gmra.mxu0 %v1903
          %v3400 = vpop.f32.mrf.mxu0
          %v3401 = vadd.f32 %v3300, %v3400
          %v3402 = vpop.f32.mrf.mxu0
          %3403 = vmatmul.bf16.gmra.mxu0 %v1904
          %v3404 = vpop.f32.mrf.mxu0
          %v3405 = vadd.f32 %v3304, %v3404
          %v3406 = vpop.f32.mrf.mxu0
          %v3407 = vadd.f32 %v3306, %v3406
          %3408 = vmatmul.bf16.gmra.mxu0 %v1905
          %v3409 = vpop.f32.mrf.mxu0
          %v3410 = vadd.f32 %v3309, %v3409
          %v3411 = vpop.f32.mrf.mxu0
          %v3412 = vadd.f32 %v3311, %v3411
          %3413 = vmatmul.bf16.gmra.mxu0 %v1906
          %v3414 = vpop.f32.mrf.mxu0
          %v3415 = vpop.f32.mrf.mxu0
          %v3416 = vadd.f32 %v3315, %v3415
          %3417 = vmatmul.bf16.gmra.mxu0 %v1907
          %v3418 = vpop.f32.mrf.mxu0
          %v3419 = vadd.f32 %v3318, %v3418
          %v3420 = vpop.f32.mrf.mxu0
          %v3421 = vadd.f32 %v3320, %v3420
          %3422 = vmatmul.bf16.gmra.mxu0 %v1908
          %v3423 = vpop.f32.mrf.mxu0
          %v3424 = vadd.f32 %v3323, %v3423
          %v3425 = vpop.f32.mrf.mxu0
          %3426 = vmatmul.bf16.gmra.mxu0 %v2074
          %v3427 = vpop.f32.mrf.mxu0
          %v3428 = vadd.f32 %v3327, %v3427
          %v3429 = vpop.f32.mrf.mxu0
          %v3430 = vadd.f32 %v3329, %v3429
          %3431 = vmatmul.bf16.gmra.mxu0 %v2075
          %v3432 = vpop.f32.mrf.mxu0
          %v3433 = vadd.f32 %v3332, %v3432
          %v3434 = vpop.f32.mrf.mxu0
          %v3435 = vadd.f32 %v3334, %v3434
          %3436 = vmatmul.bf16.gmra.mxu0 %v2076
          %v3437 = vpop.f32.mrf.mxu0
          %v3438 = vpop.f32.mrf.mxu0
          %v3439 = vadd.f32 %v3338, %v3438
          %3440 = vmatmul.bf16.gmra.mxu0 %v2077
          %v3441 = vpop.f32.mrf.mxu0
          %v3442 = vadd.f32 %v3341, %v3441
          %v3443 = vpop.f32.mrf.mxu0
          %v3444 = vadd.f32 %v3343, %v3443
          %3445 = vmatmul.bf16.gmra.mxu0 %v2078
          %v3446 = vpop.f32.mrf.mxu0
          %v3447 = vadd.f32 %v3346, %v3446
          %v3448 = vpop.f32.mrf.mxu0
          %3449 = vmatmul.bf16.gmra.mxu0 %v2141
          %v3450 = vpop.f32.mrf.mxu0
          %v3451 = vadd.f32 %v3350, %v3450
          %v3452 = vpop.f32.mrf.mxu0
          %v3453 = vadd.f32 %v3352, %v3452
          %3454 = vmatmul.bf16.gmra.mxu0 %v2142
          %v3455 = vpop.f32.mrf.mxu0
          %v3456 = vadd.f32 %v3355, %v3455
          %v3457 = vpop.f32.mrf.mxu0
          %v3458 = vadd.f32 %v3357, %v3457
          %3459 = vmatmul.bf16.gmra.mxu0 %v2143
          %v3460 = vpop.f32.mrf.mxu0
          %v3461 = vpop.f32.mrf.mxu0
          %v3462 = vadd.f32 %v3361, %v3461
          %3463 = vmatmul.bf16.gmra.mxu0 %v2144
          %v3464 = vpop.f32.mrf.mxu0
          %v3465 = vadd.f32 %v3364, %v3464
          %v3466 = vpop.f32.mrf.mxu0
          %v3467 = vadd.f32 %v3366, %v3466
          %3468 = vmatmul.bf16.gmra.mxu0 %v2145
          %v3469 = vpop.f32.mrf.mxu0
          %v3470 = vadd.f32 %v3369, %v3469
          %v3471 = vpop.f32.mrf.mxu0
          %3472 = vdwg.mxu0
          %3473 = vmatpush.bf16.msra.mxu0 %v2685
          %3474 = vmatpush.bf16.msra.mxu0 %v2684
          %3475 = vmatpush.bf16.msra.mxu0 %v2683
          %3476 = vmatpush.bf16.msra.mxu0 %v2682
          %3477 = vmatpush.bf16.msra.mxu0 %v2681
          %3478 = vmatpush.bf16.msra.mxu0 %v2680
          %3479 = vmatpush.bf16.msra.mxu0 %v2679
          %3480 = vmatpush.bf16.msra.mxu0 %v2678
          %3481 = vmatmul.bf16.gmra.mxu0 %v1955
          %v3482 = vpop.f32.mrf.mxu0
          %v3483 = vadd.f32 %v3382, %v3482
          %v3484 = vpop.f32.mrf.mxu0
          %v3485 = vadd.f32 %v3384, %v3484
          %3486 = vmatmul.bf16.gmra.mxu0 %v1957
          %v3487 = vpop.f32.mrf.mxu0
          %v3488 = vadd.f32 %v3387, %v3487
          %v3489 = vpop.f32.mrf.mxu0
          %v3490 = vadd.f32 %v3389, %v3489
          %3491 = vmatmul.bf16.gmra.mxu0 %v1959
          %v3492 = vpop.f32.mrf.mxu0
          %v3493 = vpop.f32.mrf.mxu0
          %v3494 = vadd.f32 %v3393, %v3493
          %3495 = vmatmul.bf16.gmra.mxu0 %v1961
          %v3496 = vpop.f32.mrf.mxu0
          %v3497 = vadd.f32 %v3396, %v3496
          %v3498 = vpop.f32.mrf.mxu0
          %v3499 = vadd.f32 %v3398, %v3498
          %3500 = vmatmul.bf16.gmra.mxu0 %v1963
          %v3501 = vpop.f32.mrf.mxu0
          %v3502 = vadd.f32 %v3401, %v3501
          %v3503 = vpop.f32.mrf.mxu0
          %3504 = vmatmul.bf16.gmra.mxu0 %v1965
          %v3505 = vpop.f32.mrf.mxu0
          %v3506 = vadd.f32 %v3405, %v3505
          %v3507 = vpop.f32.mrf.mxu0
          %v3508 = vadd.f32 %v3407, %v3507
          %3509 = vmatmul.bf16.gmra.mxu0 %v1967
          %v3510 = vpop.f32.mrf.mxu0
          %v3511 = vadd.f32 %v3410, %v3510
          %v3512 = vpop.f32.mrf.mxu0
          %v3513 = vadd.f32 %v3412, %v3512
          %3514 = vmatmul.bf16.gmra.mxu0 %v1969
          %v3515 = vpop.f32.mrf.mxu0
          %v3516 = vpop.f32.mrf.mxu0
          %v3517 = vadd.f32 %v3416, %v3516
          %3518 = vmatmul.bf16.gmra.mxu0 %v1971
          %v3519 = vpop.f32.mrf.mxu0
          %v3520 = vadd.f32 %v3419, %v3519
          %v3521 = vpop.f32.mrf.mxu0
          %v3522 = vadd.f32 %v3421, %v3521
          %3523 = vmatmul.bf16.gmra.mxu0 %v2088
          %v3524 = vpop.f32.mrf.mxu0
          %v3525 = vadd.f32 %v3424, %v3524
          %v3526 = vpop.f32.mrf.mxu0
          %3527 = vmatmul.bf16.gmra.mxu0 %v2090
          %v3528 = vpop.f32.mrf.mxu0
          %v3529 = vadd.f32 %v3428, %v3528
          %v3530 = vpop.f32.mrf.mxu0
          %v3531 = vadd.f32 %v3430, %v3530
          %3532 = vmatmul.bf16.gmra.mxu0 %v2092
          %v3533 = vpop.f32.mrf.mxu0
          %v3534 = vadd.f32 %v3433, %v3533
          %v3535 = vpop.f32.mrf.mxu0
          %v3536 = vadd.f32 %v3435, %v3535
          %3537 = vmatmul.bf16.gmra.mxu0 %v2094
          %v3538 = vpop.f32.mrf.mxu0
          %v3539 = vpop.f32.mrf.mxu0
          %v3540 = vadd.f32 %v3439, %v3539
          %3541 = vmatmul.bf16.gmra.mxu0 %v2096
          %v3542 = vpop.f32.mrf.mxu0
          %v3543 = vadd.f32 %v3442, %v3542
          %v3544 = vpop.f32.mrf.mxu0
          %v3545 = vadd.f32 %v3444, %v3544
          %3546 = vmatmul.bf16.gmra.mxu0 %v2155
          %v3547 = vpop.f32.mrf.mxu0
          %v3548 = vadd.f32 %v3447, %v3547
          %v3549 = vpop.f32.mrf.mxu0
          %3550 = vmatmul.bf16.gmra.mxu0 %v2157
          %v3551 = vpop.f32.mrf.mxu0
          %v3552 = vadd.f32 %v3451, %v3551
          %v3553 = vpop.f32.mrf.mxu0
          %v3554 = vadd.f32 %v3453, %v3553
          %3555 = vmatmul.bf16.gmra.mxu0 %v2159
          %v3556 = vpop.f32.mrf.mxu0
          %v3557 = vadd.f32 %v3456, %v3556
          %v3558 = vpop.f32.mrf.mxu0
          %v3559 = vadd.f32 %v3458, %v3558
          %3560 = vmatmul.bf16.gmra.mxu0 %v2161
          %v3561 = vpop.f32.mrf.mxu0
          %v3562 = vpop.f32.mrf.mxu0
          %v3563 = vadd.f32 %v3462, %v3562
          %3564 = vmatmul.bf16.gmra.mxu0 %v2163
          %v3565 = vpop.f32.mrf.mxu0
          %v3566 = vadd.f32 %v3465, %v3565
          %v3567 = vpop.f32.mrf.mxu0
          %v3568 = vadd.f32 %v3467, %v3567
          %3569 = vmatmul.bf16.gmra.mxu0 %v2165
          %v3570 = vpop.f32.mrf.mxu0
          %v3571 = vadd.f32 %v3470, %v3570
          %v3572 = vpop.f32.mrf.mxu0
          %3573 = vdwg.mxu0
          %3574 = vmatpush.bf16.msra.mxu0 %v2693
          %3575 = vmatpush.bf16.msra.mxu0 %v2692
          %3576 = vmatpush.bf16.msra.mxu0 %v2691
          %3577 = vmatpush.bf16.msra.mxu0 %v2690
          %3578 = vmatpush.bf16.msra.mxu0 %v2689
          %3579 = vmatpush.bf16.msra.mxu0 %v2688
          %3580 = vmatpush.bf16.msra.mxu0 %v2687
          %3581 = vmatpush.bf16.msra.mxu0 %v2686
          %3582 = vmatmul.bf16.gmra.mxu0 %v2017
          %v3583 = vpop.f32.mrf.mxu0
          %v3584 = vadd.f32 %v3483, %v3583
          %v3585 = vpop.f32.mrf.mxu0
          %v3586 = vadd.f32 %v3485, %v3585
          %3587 = vmatmul.bf16.gmra.mxu0 %v2019
          %v3588 = vpop.f32.mrf.mxu0
          %v3589 = vadd.f32 %v3488, %v3588
          %v3590 = vpop.f32.mrf.mxu0
          %v3591 = vadd.f32 %v3490, %v3590
          %3592 = vmatmul.bf16.gmra.mxu0 %v2021
          %v3593 = vpop.f32.mrf.mxu0
          %v3594 = vpop.f32.mrf.mxu0
          %v3595 = vadd.f32 %v3494, %v3594
          %3596 = vmatmul.bf16.gmra.mxu0 %v2023
          %v3597 = vpop.f32.mrf.mxu0
          %v3598 = vadd.f32 %v3497, %v3597
          %v3599 = vpop.f32.mrf.mxu0
          %v3600 = vadd.f32 %v3499, %v3599
          %3601 = vmatmul.bf16.gmra.mxu0 %v2025
          %v3602 = vpop.f32.mrf.mxu0
          %v3603 = vadd.f32 %v3502, %v3602
          %v3604 = vpop.f32.mrf.mxu0
          %3605 = vmatmul.bf16.gmra.mxu0 %v2027
          %v3606 = vpop.f32.mrf.mxu0
          %v3607 = vadd.f32 %v3506, %v3606
          %v3608 = vpop.f32.mrf.mxu0
          %v3609 = vadd.f32 %v3508, %v3608
          %3610 = vmatmul.bf16.gmra.mxu0 %v2029
          %v3611 = vpop.f32.mrf.mxu0
          %v3612 = vadd.f32 %v3511, %v3611
          %v3613 = vpop.f32.mrf.mxu0
          %v3614 = vadd.f32 %v3513, %v3613
          %3615 = vmatmul.bf16.gmra.mxu0 %v2031
          %v3616 = vpop.f32.mrf.mxu0
          %v3617 = vpop.f32.mrf.mxu0
          %v3618 = vadd.f32 %v3517, %v3617
          %3619 = vmatmul.bf16.gmra.mxu0 %v2033
          %v3620 = vpop.f32.mrf.mxu0
          %v3621 = vadd.f32 %v3520, %v3620
          %v3622 = vpop.f32.mrf.mxu0
          %v3623 = vadd.f32 %v3522, %v3622
          %3624 = vmatmul.bf16.gmra.mxu0 %v2106
          %v3625 = vpop.f32.mrf.mxu0
          %v3626 = vadd.f32 %v3525, %v3625
          %v3627 = vpop.f32.mrf.mxu0
          %3628 = vmatmul.bf16.gmra.mxu0 %v2108
          %v3629 = vpop.f32.mrf.mxu0
          %v3630 = vadd.f32 %v3529, %v3629
          %v3631 = vpop.f32.mrf.mxu0
          %v3632 = vadd.f32 %v3531, %v3631
          %3633 = vmatmul.bf16.gmra.mxu0 %v2110
          %v3634 = vpop.f32.mrf.mxu0
          %v3635 = vadd.f32 %v3534, %v3634
          %v3636 = vpop.f32.mrf.mxu0
          %v3637 = vadd.f32 %v3536, %v3636
          %3638 = vmatmul.bf16.gmra.mxu0 %v2112
          %v3639 = vpop.f32.mrf.mxu0
          %v3640 = vpop.f32.mrf.mxu0
          %v3641 = vadd.f32 %v3540, %v3640
          %3642 = vmatmul.bf16.gmra.mxu0 %v2114
          %v3643 = vpop.f32.mrf.mxu0
          %v3644 = vadd.f32 %v3543, %v3643
          %v3645 = vpop.f32.mrf.mxu0
          %v3646 = vadd.f32 %v3545, %v3645
          %3647 = vmatmul.bf16.gmra.mxu0 %v2173
          %v3648 = vpop.f32.mrf.mxu0
          %v3649 = vadd.f32 %v3548, %v3648
          %v3650 = vpop.f32.mrf.mxu0
          %3651 = vmatmul.bf16.gmra.mxu0 %v2175
          %v3652 = vpop.f32.mrf.mxu0
          %v3653 = vadd.f32 %v3552, %v3652
          %v3654 = vpop.f32.mrf.mxu0
          %v3655 = vadd.f32 %v3554, %v3654
          %3656 = vmatmul.bf16.gmra.mxu0 %v2177
          %v3657 = vpop.f32.mrf.mxu0
          %v3658 = vadd.f32 %v3557, %v3657
          %v3659 = vpop.f32.mrf.mxu0
          %v3660 = vadd.f32 %v3559, %v3659
          %3661 = vmatmul.bf16.gmra.mxu0 %v2179
          %v3662 = vpop.f32.mrf.mxu0
          %v3663 = vpop.f32.mrf.mxu0
          %v3664 = vadd.f32 %v3563, %v3663
          %3665 = vmatmul.bf16.gmra.mxu0 %v2181
          %v3666 = vpop.f32.mrf.mxu0
          %v3667 = vadd.f32 %v3566, %v3666
          %v3668 = vpop.f32.mrf.mxu0
          %v3669 = vadd.f32 %v3568, %v3668
          %3670 = vmatmul.bf16.gmra.mxu0 %v2183
          %v3671 = vpop.f32.mrf.mxu0
          %v3672 = vadd.f32 %v3571, %v3671
          %v3673 = vpop.f32.mrf.mxu0
          %3674 = vdwg.mxu0
          %v3675 = vld [vmem:[#allocation14] sm:$0x1]
          %v3677 = vperm.slane %v3675, 0
          %v3679 = vadd.f32 %v3584, %v3677
          %v3680 = vadd.f32 %v3586, %v3677
          %v3681 = vadd.f32 %v3589, %v3677
          %v3682 = vadd.f32 %v3591, %v3677
          %v3683 = vadd.f32 %v3595, %v3677
          %v3684 = vadd.f32 %v3598, %v3677
          %v3685 = vadd.f32 %v3600, %v3677
          %v3686 = vadd.f32 %v3603, %v3677
          %v3687 = vadd.f32 %v3607, %v3677
          %v3688 = vadd.f32 %v3609, %v3677
          %v3689 = vadd.f32 %v3612, %v3677
          %v3690 = vadd.f32 %v3614, %v3677
          %v3691 = vadd.f32 %v3618, %v3677
          %v3692 = vadd.f32 %v3621, %v3677
          %v3693 = vadd.f32 %v3623, %v3677
          %v3694 = vadd.f32 %v3626, %v3677
          %v3695 = vadd.f32 %v3630, %v3677
          %v3696 = vadd.f32 %v3632, %v3677
          %v3697 = vadd.f32 %v3635, %v3677
          %v3698 = vadd.f32 %v3637, %v3677
          %v3699 = vadd.f32 %v3641, %v3677
          %v3700 = vadd.f32 %v3644, %v3677
          %v3701 = vadd.f32 %v3646, %v3677
          %v3702 = vadd.f32 %v3649, %v3677
          %v3703 = vadd.f32 %v3653, %v3677
          %v3704 = vadd.f32 %v3655, %v3677
          %v3705 = vadd.f32 %v3658, %v3677
          %v3706 = vadd.f32 %v3660, %v3677
          %v3707 = vadd.f32 %v3664, %v3677
          %v3708 = vadd.f32 %v3667, %v3677
          %v3709 = vadd.f32 %v3669, %v3677
          %v3710 = vadd.f32 %v3672, %v3677
          %v3711 = vmax.f32 %v3679, 0.0
          %v3712 = vmax.f32 %v3680, 0.0
          %v3713 = vmax.f32 %v3681, 0.0
          %v3714 = vmax.f32 %v3682, 0.0
          %v3715 = vmax.f32 %v3683, 0.0
          %v3716 = vmax.f32 %v3684, 0.0
          %v3717 = vmax.f32 %v3685, 0.0
          %v3718 = vmax.f32 %v3686, 0.0
          %v3719 = vmax.f32 %v3687, 0.0
          %v3720 = vmax.f32 %v3688, 0.0
          %v3721 = vmax.f32 %v3689, 0.0
          %v3722 = vmax.f32 %v3690, 0.0
          %v3723 = vmax.f32 %v3691, 0.0
          %v3724 = vmax.f32 %v3692, 0.0
          %v3725 = vmax.f32 %v3693, 0.0
          %v3726 = vmax.f32 %v3694, 0.0
          %v3727 = vmax.f32 %v3695, 0.0
          %v3728 = vmax.f32 %v3696, 0.0
          %v3729 = vmax.f32 %v3697, 0.0
          %v3730 = vmax.f32 %v3698, 0.0
          %v3731 = vmax.f32 %v3699, 0.0
          %v3732 = vmax.f32 %v3700, 0.0
          %v3733 = vmax.f32 %v3701, 0.0
          %v3734 = vmax.f32 %v3702, 0.0
          %v3735 = vmax.f32 %v3703, 0.0
          %v3736 = vmax.f32 %v3704, 0.0
          %v3737 = vmax.f32 %v3705, 0.0
          %v3738 = vmax.f32 %v3706, 0.0
          %v3739 = vmax.f32 %v3707, 0.0
          %v3740 = vmax.f32 %v3708, 0.0
          %v3741 = vmax.f32 %v3709, 0.0
          %v3742 = vmax.f32 %v3710, 0.0
          %v3743 = vpack.c.bf16 %v3712, %v3711
          %v3744 = vpack.c.bf16 %v3714, %v3713
          %v3745 = vpack.c.bf16 %v3716, %v3715
          %v3746 = vpack.c.bf16 %v3718, %v3717
          %v3747 = vpack.c.bf16 %v3720, %v3719
          %v3748 = vpack.c.bf16 %v3722, %v3721
          %v3749 = vpack.c.bf16 %v3724, %v3723
          %v3750 = vpack.c.bf16 %v3726, %v3725
          %v3751 = vpack.c.bf16 %v3728, %v3727
          %v3752 = vpack.c.bf16 %v3730, %v3729
          %v3753 = vpack.c.bf16 %v3732, %v3731
          %v3754 = vpack.c.bf16 %v3734, %v3733
          %v3755 = vpack.c.bf16 %v3736, %v3735
          %v3756 = vpack.c.bf16 %v3738, %v3737
          %v3757 = vpack.c.bf16 %v3740, %v3739
          %v3758 = vpack.c.bf16 %v3742, %v3741
          %v3759 = vld [vmem:[#allocation15] sm:$0xff]
          %v3760 = vld [vmem:[#allocation15 + $0x8] sm:$0xff]
          %v3761 = vld [vmem:[#allocation15 + $0x10] sm:$0xff]
          %v3762 = vld [vmem:[#allocation15 + $0x18] sm:$0xff]
          %v3763 = vld [vmem:[#allocation15 + $0x20] sm:$0xff]
          %v3764 = vld [vmem:[#allocation15 + $0x28] sm:$0xff]
          %v3765 = vld [vmem:[#allocation15 + $0x30] sm:$0xff]
          %v3766 = vld [vmem:[#allocation15 + $0x38] sm:$0xff]
          %v3767 = vld [vmem:[#allocation15 + $0x40] sm:$0xff]
          %v3768 = vld [vmem:[#allocation15 + $0x48] sm:$0xff]
          %v3769 = vld [vmem:[#allocation15 + $0x50] sm:$0xff]
          %v3770 = vld [vmem:[#allocation15 + $0x58] sm:$0xff]
          %v3771 = vld [vmem:[#allocation15 + $0x60] sm:$0xff]
          %v3772 = vld [vmem:[#allocation15 + $0x68] sm:$0xff]
          %v3773 = vld [vmem:[#allocation15 + $0x70] sm:$0xff]
          %v3774 = vld [vmem:[#allocation15 + $0x78] sm:$0xff]
          %v3775 = vld [vmem:[#allocation15 + $0x80] sm:$0xff]
          %v3776 = vld [vmem:[#allocation15 + $0x88] sm:$0xff]
          %v3777 = vld [vmem:[#allocation15 + $0x90] sm:$0xff]
          %v3778 = vld [vmem:[#allocation15 + $0x98] sm:$0xff]
          %v3779 = vld [vmem:[#allocation15 + $0xa0] sm:$0xff]
          %v3780 = vld [vmem:[#allocation15 + $0xa8] sm:$0xff]
          %v3781 = vld [vmem:[#allocation15 + $0xb0] sm:$0xff]
          %v3782 = vld [vmem:[#allocation15 + $0xb8] sm:$0xff]
          %v3783 = vld [vmem:[#allocation15 + $0xc0] sm:$0xff]
          %v3784 = vld [vmem:[#allocation15 + $0xc8] sm:$0xff]
          %v3785 = vld [vmem:[#allocation15 + $0xd0] sm:$0xff]
          %v3786 = vld [vmem:[#allocation15 + $0xd8] sm:$0xff]
          %v3787 = vld [vmem:[#allocation15 + $0xe0] sm:$0xff]
          %v3788 = vld [vmem:[#allocation15 + $0xe8] sm:$0xff]
          %v3789 = vld [vmem:[#allocation15 + $0xf0] sm:$0xff]
          %v3790 = vld [vmem:[#allocation15 + $0xf8] sm:$0xff]
          %v3791 = vld [vmem:[#allocation17] sm:$0xf]
          %v3793 = vperm.slane %v3791, 0
          %v3794 = vperm.slane %v3791, 1
          %v3795 = vperm.slane %v3791, 2
          %v3796 = vperm.slane %v3791, 3
          %v3833 = vunpack.c.l.b16 %v3759
          %v3834 = vunpack.c.h.b16 %v3759
          %v3835 = vunpack.c.l.b16 %v3760
          %v3836 = vunpack.c.h.b16 %v3760
          %v3837 = vunpack.c.l.b16 %v3761
          %v3838 = vunpack.c.h.b16 %v3761
          %v3839 = vunpack.c.l.b16 %v3762
          %v3840 = vunpack.c.h.b16 %v3762
          %v3841 = vunpack.c.l.b16 %v3763
          %v3842 = vunpack.c.h.b16 %v3763
          %v3843 = vunpack.c.l.b16 %v3764
          %v3844 = vunpack.c.h.b16 %v3764
          %v3845 = vunpack.c.l.b16 %v3765
          %v3846 = vunpack.c.h.b16 %v3765
          %v3847 = vunpack.c.l.b16 %v3766
          %v3848 = vunpack.c.h.b16 %v3766
          %v3849 = vunpack.c.l.b16 %v3767
          %v3850 = vunpack.c.h.b16 %v3767
          %v3851 = vunpack.c.l.b16 %v3768
          %v3852 = vunpack.c.h.b16 %v3768
          %v3853 = vunpack.c.l.b16 %v3769
          %v3854 = vunpack.c.h.b16 %v3769
          %v3855 = vunpack.c.l.b16 %v3770
          %v3856 = vunpack.c.h.b16 %v3770
          %v3857 = vunpack.c.l.b16 %v3771
          %v3858 = vunpack.c.h.b16 %v3771
          %v3859 = vunpack.c.l.b16 %v3772
          %v3860 = vunpack.c.h.b16 %v3772
          %v3861 = vunpack.c.l.b16 %v3773
          %v3862 = vunpack.c.h.b16 %v3773
          %v3863 = vunpack.c.l.b16 %v3774
          %v3864 = vunpack.c.h.b16 %v3774
          %v3865 = vunpack.c.l.b16 %v3775
          %v3866 = vunpack.c.h.b16 %v3775
          %v3867 = vunpack.c.l.b16 %v3776
          %v3868 = vunpack.c.h.b16 %v3776
          %v3869 = vunpack.c.l.b16 %v3777
          %v3870 = vunpack.c.h.b16 %v3777
          %v3871 = vunpack.c.l.b16 %v3778
          %v3872 = vunpack.c.h.b16 %v3778
          %v3873 = vunpack.c.l.b16 %v3779
          %v3874 = vunpack.c.h.b16 %v3779
          %v3875 = vunpack.c.l.b16 %v3780
          %v3876 = vunpack.c.h.b16 %v3780
          %v3877 = vunpack.c.l.b16 %v3781
          %v3878 = vunpack.c.h.b16 %v3781
          %v3879 = vunpack.c.l.b16 %v3782
          %v3880 = vunpack.c.h.b16 %v3782
          %v3881 = vunpack.c.l.b16 %v3783
          %v3882 = vunpack.c.h.b16 %v3783
          %v3883 = vunpack.c.l.b16 %v3784
          %v3884 = vunpack.c.h.b16 %v3784
          %v3885 = vunpack.c.l.b16 %v3785
          %v3886 = vunpack.c.h.b16 %v3785
          %v3887 = vunpack.c.l.b16 %v3786
          %v3888 = vunpack.c.h.b16 %v3786
          %v3889 = vunpack.c.l.b16 %v3787
          %v3890 = vunpack.c.h.b16 %v3787
          %v3891 = vunpack.c.l.b16 %v3788
          %v3892 = vunpack.c.h.b16 %v3788
          %v3893 = vunpack.c.l.b16 %v3789
          %v3894 = vunpack.c.h.b16 %v3789
          %v3895 = vunpack.c.l.b16 %v3790
          %v3896 = vunpack.c.h.b16 %v3790
          %v3897 = vpack.c.b16 %v3837, %v3833
          %v3898 = vpack.c.b16 %v3838, %v3834
          %v3899 = vpack.c.b16 %v3839, %v3835
          %v3900 = vpack.c.b16 %v3840, %v3836
          %v3901 = vpack.c.b16 %v3845, %v3841
          %v3902 = vpack.c.b16 %v3846, %v3842
          %v3903 = vpack.c.b16 %v3847, %v3843
          %v3904 = vpack.c.b16 %v3848, %v3844
          %v3905 = vpack.c.b16 %v3853, %v3849
          %v3906 = vpack.c.b16 %v3854, %v3850
          %v3907 = vpack.c.b16 %v3855, %v3851
          %v3908 = vpack.c.b16 %v3856, %v3852
          %v3909 = vpack.c.b16 %v3861, %v3857
          %v3910 = vpack.c.b16 %v3862, %v3858
          %v3911 = vpack.c.b16 %v3863, %v3859
          %v3912 = vpack.c.b16 %v3864, %v3860
          %v3913 = vpack.c.b16 %v3869, %v3865
          %v3914 = vpack.c.b16 %v3870, %v3866
          %v3915 = vpack.c.b16 %v3871, %v3867
          %v3916 = vpack.c.b16 %v3872, %v3868
          %v3917 = vpack.c.b16 %v3877, %v3873
          %v3918 = vpack.c.b16 %v3878, %v3874
          %v3919 = vpack.c.b16 %v3879, %v3875
          %v3920 = vpack.c.b16 %v3880, %v3876
          %v3921 = vpack.c.b16 %v3885, %v3881
          %v3922 = vpack.c.b16 %v3886, %v3882
          %v3923 = vpack.c.b16 %v3887, %v3883
          %v3924 = vpack.c.b16 %v3888, %v3884
          %v3925 = vpack.c.b16 %v3893, %v3889
          %v3926 = vpack.c.b16 %v3894, %v3890
          %v3927 = vpack.c.b16 %v3895, %v3891
          %v3928 = vpack.c.b16 %v3896, %v3892
          %3961 = vmatpush.bf16.msra.mxu0 %v3925
          %3962 = vmatpush.bf16.msra.mxu0 %v3921
          %3963 = vmatpush.bf16.msra.mxu0 %v3917
          %3964 = vmatpush.bf16.msra.mxu0 %v3913
          %3965 = vmatpush.bf16.msra.mxu0 %v3909
          %3966 = vmatpush.bf16.msra.mxu0 %v3905
          %3967 = vmatpush.bf16.msra.mxu0 %v3901
          %3968 = vmatpush.bf16.msra.mxu0 %v3897
          %3969 = vmatmul.bf16.gmra.mxu0 %v3743
          %v3970 = vpop.f32.mrf.mxu0
          %v3971 = vadd.f32 %v3793, %v3970
          %v3972 = vpop.f32.mrf.mxu0
          %v3973 = vadd.f32 %v3793, %v3972
          %3974 = vmatmul.bf16.gmra.mxu0 %v3744
          %v3975 = vpop.f32.mrf.mxu0
          %v3976 = vadd.f32 %v3793, %v3975
          %v3977 = vpop.f32.mrf.mxu0
          %v3978 = vadd.f32 %v3793, %v3977
          %3979 = vmatmul.bf16.gmra.mxu0 %v3745
          %v3980 = vpop.f32.mrf.mxu0
          %v3981 = vadd.f32 %v3793, %v3980
          %v3982 = vpop.f32.mrf.mxu0
          %v3983 = vadd.f32 %v3793, %v3982
          %3984 = vmatmul.bf16.gmra.mxu0 %v3746
          %v3985 = vpop.f32.mrf.mxu0
          %v3986 = vadd.f32 %v3793, %v3985
          %v3987 = vpop.f32.mrf.mxu0
          %v3988 = vadd.f32 %v3793, %v3987
          %3989 = vmatmul.bf16.gmra.mxu0 %v3747
          %v3990 = vpop.f32.mrf.mxu0
          %v3991 = vadd.f32 %v3793, %v3990
          %v3992 = vpop.f32.mrf.mxu0
          %v3993 = vadd.f32 %v3793, %v3992
          %3994 = vmatmul.bf16.gmra.mxu0 %v3748
          %v3995 = vpop.f32.mrf.mxu0
          %v3996 = vadd.f32 %v3793, %v3995
          %v3997 = vpop.f32.mrf.mxu0
          %v3998 = vadd.f32 %v3793, %v3997
          %3999 = vmatmul.bf16.gmra.mxu0 %v3749
          %v4000 = vpop.f32.mrf.mxu0
          %v4001 = vadd.f32 %v3793, %v4000
          %v4002 = vpop.f32.mrf.mxu0
          %v4003 = vadd.f32 %v3793, %v4002
          %4004 = vmatmul.bf16.gmra.mxu0 %v3750
          %v4005 = vpop.f32.mrf.mxu0
          %v4006 = vadd.f32 %v3793, %v4005
          %v4007 = vpop.f32.mrf.mxu0
          %v4008 = vadd.f32 %v3793, %v4007
          %4009 = vmatmul.bf16.gmra.mxu0 %v3751
          %v4010 = vpop.f32.mrf.mxu0
          %v4011 = vadd.f32 %v3793, %v4010
          %v4012 = vpop.f32.mrf.mxu0
          %v4013 = vadd.f32 %v3793, %v4012
          %4014 = vmatmul.bf16.gmra.mxu0 %v3752
          %v4015 = vpop.f32.mrf.mxu0
          %v4016 = vadd.f32 %v3793, %v4015
          %v4017 = vpop.f32.mrf.mxu0
          %v4018 = vadd.f32 %v3793, %v4017
          %4019 = vmatmul.bf16.gmra.mxu0 %v3753
          %v4020 = vpop.f32.mrf.mxu0
          %v4021 = vadd.f32 %v3793, %v4020
          %v4022 = vpop.f32.mrf.mxu0
          %v4023 = vadd.f32 %v3793, %v4022
          %4024 = vmatmul.bf16.gmra.mxu0 %v3754
          %v4025 = vpop.f32.mrf.mxu0
          %v4026 = vadd.f32 %v3793, %v4025
          %v4027 = vpop.f32.mrf.mxu0
          %v4028 = vadd.f32 %v3793, %v4027
          %4029 = vmatmul.bf16.gmra.mxu0 %v3755
          %v4030 = vpop.f32.mrf.mxu0
          %v4031 = vadd.f32 %v3793, %v4030
          %v4032 = vpop.f32.mrf.mxu0
          %v4033 = vadd.f32 %v3793, %v4032
          %4034 = vmatmul.bf16.gmra.mxu0 %v3756
          %v4035 = vpop.f32.mrf.mxu0
          %v4036 = vadd.f32 %v3793, %v4035
          %v4037 = vpop.f32.mrf.mxu0
          %v4038 = vadd.f32 %v3793, %v4037
          %4039 = vmatmul.bf16.gmra.mxu0 %v3757
          %v4040 = vpop.f32.mrf.mxu0
          %v4041 = vadd.f32 %v3793, %v4040
          %v4042 = vpop.f32.mrf.mxu0
          %v4043 = vadd.f32 %v3793, %v4042
          %4044 = vmatmul.bf16.gmra.mxu0 %v3758
          %v4045 = vpop.f32.mrf.mxu0
          %v4046 = vadd.f32 %v3793, %v4045
          %v4047 = vpop.f32.mrf.mxu0
          %v4048 = vadd.f32 %v3793, %v4047
          %4049 = vdwg.mxu0
          %4050 = vmatpush.bf16.msra.mxu0 %v3926
          %4051 = vmatpush.bf16.msra.mxu0 %v3922
          %4052 = vmatpush.bf16.msra.mxu0 %v3918
          %4053 = vmatpush.bf16.msra.mxu0 %v3914
          %4054 = vmatpush.bf16.msra.mxu0 %v3910
          %4055 = vmatpush.bf16.msra.mxu0 %v3906
          %4056 = vmatpush.bf16.msra.mxu0 %v3902
          %4057 = vmatpush.bf16.msra.mxu0 %v3898
          %4058 = vmatmul.bf16.gmra.mxu0 %v3743
          %v4059 = vpop.f32.mrf.mxu0
          %v4060 = vadd.f32 %v3794, %v4059
          %v4061 = vpop.f32.mrf.mxu0
          %v4062 = vadd.f32 %v3794, %v4061
          %4063 = vmatmul.bf16.gmra.mxu0 %v3744
          %v4064 = vpop.f32.mrf.mxu0
          %v4065 = vadd.f32 %v3794, %v4064
          %v4066 = vpop.f32.mrf.mxu0
          %v4067 = vadd.f32 %v3794, %v4066
          %4068 = vmatmul.bf16.gmra.mxu0 %v3745
          %v4069 = vpop.f32.mrf.mxu0
          %v4070 = vadd.f32 %v3794, %v4069
          %v4071 = vpop.f32.mrf.mxu0
          %v4072 = vadd.f32 %v3794, %v4071
          %4073 = vmatmul.bf16.gmra.mxu0 %v3746
          %v4074 = vpop.f32.mrf.mxu0
          %v4075 = vadd.f32 %v3794, %v4074
          %v4076 = vpop.f32.mrf.mxu0
          %v4077 = vadd.f32 %v3794, %v4076
          %4078 = vmatmul.bf16.gmra.mxu0 %v3747
          %v4079 = vpop.f32.mrf.mxu0
          %v4080 = vadd.f32 %v3794, %v4079
          %v4081 = vpop.f32.mrf.mxu0
          %v4082 = vadd.f32 %v3794, %v4081
          %4083 = vmatmul.bf16.gmra.mxu0 %v3748
          %v4084 = vpop.f32.mrf.mxu0
          %v4085 = vadd.f32 %v3794, %v4084
          %v4086 = vpop.f32.mrf.mxu0
          %v4087 = vadd.f32 %v3794, %v4086
          %4088 = vmatmul.bf16.gmra.mxu0 %v3749
          %v4089 = vpop.f32.mrf.mxu0
          %v4090 = vadd.f32 %v3794, %v4089
          %v4091 = vpop.f32.mrf.mxu0
          %v4092 = vadd.f32 %v3794, %v4091
          %4093 = vmatmul.bf16.gmra.mxu0 %v3750
          %v4094 = vpop.f32.mrf.mxu0
          %v4095 = vadd.f32 %v3794, %v4094
          %v4096 = vpop.f32.mrf.mxu0
          %v4097 = vadd.f32 %v3794, %v4096
          %4098 = vmatmul.bf16.gmra.mxu0 %v3751
          %v4099 = vpop.f32.mrf.mxu0
          %v4100 = vadd.f32 %v3794, %v4099
          %v4101 = vpop.f32.mrf.mxu0
          %v4102 = vadd.f32 %v3794, %v4101
          %4103 = vmatmul.bf16.gmra.mxu0 %v3752
          %v4104 = vpop.f32.mrf.mxu0
          %v4105 = vadd.f32 %v3794, %v4104
          %v4106 = vpop.f32.mrf.mxu0
          %v4107 = vadd.f32 %v3794, %v4106
          %4108 = vmatmul.bf16.gmra.mxu0 %v3753
          %v4109 = vpop.f32.mrf.mxu0
          %v4110 = vadd.f32 %v3794, %v4109
          %v4111 = vpop.f32.mrf.mxu0
          %v4112 = vadd.f32 %v3794, %v4111
          %4113 = vmatmul.bf16.gmra.mxu0 %v3754
          %v4114 = vpop.f32.mrf.mxu0
          %v4115 = vadd.f32 %v3794, %v4114
          %v4116 = vpop.f32.mrf.mxu0
          %v4117 = vadd.f32 %v3794, %v4116
          %4118 = vmatmul.bf16.gmra.mxu0 %v3755
          %v4119 = vpop.f32.mrf.mxu0
          %v4120 = vadd.f32 %v3794, %v4119
          %v4121 = vpop.f32.mrf.mxu0
          %v4122 = vadd.f32 %v3794, %v4121
          %4123 = vmatmul.bf16.gmra.mxu0 %v3756
          %v4124 = vpop.f32.mrf.mxu0
          %v4125 = vadd.f32 %v3794, %v4124
          %v4126 = vpop.f32.mrf.mxu0
          %v4127 = vadd.f32 %v3794, %v4126
          %4128 = vmatmul.bf16.gmra.mxu0 %v3757
          %v4129 = vpop.f32.mrf.mxu0
          %v4130 = vadd.f32 %v3794, %v4129
          %v4131 = vpop.f32.mrf.mxu0
          %v4132 = vadd.f32 %v3794, %v4131
          %4133 = vmatmul.bf16.gmra.mxu0 %v3758
          %v4134 = vpop.f32.mrf.mxu0
          %v4135 = vadd.f32 %v3794, %v4134
          %v4136 = vpop.f32.mrf.mxu0
          %v4137 = vadd.f32 %v3794, %v4136
          %4138 = vdwg.mxu0
          %4139 = vmatpush.bf16.msra.mxu0 %v3927
          %4140 = vmatpush.bf16.msra.mxu0 %v3923
          %4141 = vmatpush.bf16.msra.mxu0 %v3919
          %4142 = vmatpush.bf16.msra.mxu0 %v3915
          %4143 = vmatpush.bf16.msra.mxu0 %v3911
          %4144 = vmatpush.bf16.msra.mxu0 %v3907
          %4145 = vmatpush.bf16.msra.mxu0 %v3903
          %4146 = vmatpush.bf16.msra.mxu0 %v3899
          %4147 = vmatmul.bf16.gmra.mxu0 %v3743
          %v4148 = vpop.f32.mrf.mxu0
          %v4149 = vadd.f32 %v3795, %v4148
          %v4150 = vpop.f32.mrf.mxu0
          %v4151 = vadd.f32 %v3795, %v4150
          %4152 = vmatmul.bf16.gmra.mxu0 %v3744
          %v4153 = vpop.f32.mrf.mxu0
          %v4154 = vadd.f32 %v3795, %v4153
          %v4155 = vpop.f32.mrf.mxu0
          %v4156 = vadd.f32 %v3795, %v4155
          %4157 = vmatmul.bf16.gmra.mxu0 %v3745
          %v4158 = vpop.f32.mrf.mxu0
          %v4159 = vadd.f32 %v3795, %v4158
          %v4160 = vpop.f32.mrf.mxu0
          %v4161 = vadd.f32 %v3795, %v4160
          %4162 = vmatmul.bf16.gmra.mxu0 %v3746
          %v4163 = vpop.f32.mrf.mxu0
          %v4164 = vadd.f32 %v3795, %v4163
          %v4165 = vpop.f32.mrf.mxu0
          %v4166 = vadd.f32 %v3795, %v4165
          %4167 = vmatmul.bf16.gmra.mxu0 %v3747
          %v4168 = vpop.f32.mrf.mxu0
          %v4169 = vadd.f32 %v3795, %v4168
          %v4170 = vpop.f32.mrf.mxu0
          %v4171 = vadd.f32 %v3795, %v4170
          %4172 = vmatmul.bf16.gmra.mxu0 %v3748
          %v4173 = vpop.f32.mrf.mxu0
          %v4174 = vadd.f32 %v3795, %v4173
          %v4175 = vpop.f32.mrf.mxu0
          %v4176 = vadd.f32 %v3795, %v4175
          %4177 = vmatmul.bf16.gmra.mxu0 %v3749
          %v4178 = vpop.f32.mrf.mxu0
          %v4179 = vadd.f32 %v3795, %v4178
          %v4180 = vpop.f32.mrf.mxu0
          %v4181 = vadd.f32 %v3795, %v4180
          %4182 = vmatmul.bf16.gmra.mxu0 %v3750
          %v4183 = vpop.f32.mrf.mxu0
          %v4184 = vadd.f32 %v3795, %v4183
          %v4185 = vpop.f32.mrf.mxu0
          %v4186 = vadd.f32 %v3795, %v4185
          %4187 = vmatmul.bf16.gmra.mxu0 %v3751
          %v4188 = vpop.f32.mrf.mxu0
          %v4189 = vadd.f32 %v3795, %v4188
          %v4190 = vpop.f32.mrf.mxu0
          %v4191 = vadd.f32 %v3795, %v4190
          %4192 = vmatmul.bf16.gmra.mxu0 %v3752
          %v4193 = vpop.f32.mrf.mxu0
          %v4194 = vadd.f32 %v3795, %v4193
          %v4195 = vpop.f32.mrf.mxu0
          %v4196 = vadd.f32 %v3795, %v4195
          %4197 = vmatmul.bf16.gmra.mxu0 %v3753
          %v4198 = vpop.f32.mrf.mxu0
          %v4199 = vadd.f32 %v3795, %v4198
          %v4200 = vpop.f32.mrf.mxu0
          %v4201 = vadd.f32 %v3795, %v4200
          %4202 = vmatmul.bf16.gmra.mxu0 %v3754
          %v4203 = vpop.f32.mrf.mxu0
          %v4204 = vadd.f32 %v3795, %v4203
          %v4205 = vpop.f32.mrf.mxu0
          %v4206 = vadd.f32 %v3795, %v4205
          %4207 = vmatmul.bf16.gmra.mxu0 %v3755
          %v4208 = vpop.f32.mrf.mxu0
          %v4209 = vadd.f32 %v3795, %v4208
          %v4210 = vpop.f32.mrf.mxu0
          %v4211 = vadd.f32 %v3795, %v4210
          %4212 = vmatmul.bf16.gmra.mxu0 %v3756
          %v4213 = vpop.f32.mrf.mxu0
          %v4214 = vadd.f32 %v3795, %v4213
          %v4215 = vpop.f32.mrf.mxu0
          %v4216 = vadd.f32 %v3795, %v4215
          %4217 = vmatmul.bf16.gmra.mxu0 %v3757
          %v4218 = vpop.f32.mrf.mxu0
          %v4219 = vadd.f32 %v3795, %v4218
          %v4220 = vpop.f32.mrf.mxu0
          %v4221 = vadd.f32 %v3795, %v4220
          %4222 = vmatmul.bf16.gmra.mxu0 %v3758
          %v4223 = vpop.f32.mrf.mxu0
          %v4224 = vadd.f32 %v3795, %v4223
          %v4225 = vpop.f32.mrf.mxu0
          %v4226 = vadd.f32 %v3795, %v4225
          %4227 = vdwg.mxu0
          %4228 = vmatpush.bf16.msra.mxu0 %v3928
          %4229 = vmatpush.bf16.msra.mxu0 %v3924
          %4230 = vmatpush.bf16.msra.mxu0 %v3920
          %4231 = vmatpush.bf16.msra.mxu0 %v3916
          %4232 = vmatpush.bf16.msra.mxu0 %v3912
          %4233 = vmatpush.bf16.msra.mxu0 %v3908
          %4234 = vmatpush.bf16.msra.mxu0 %v3904
          %4235 = vmatpush.bf16.msra.mxu0 %v3900
          %4236 = vmatmul.bf16.gmra.mxu0 %v3743
          %v4237 = vpop.f32.mrf.mxu0
          %v4238 = vadd.f32 %v3796, %v4237
          %v4239 = vpop.f32.mrf.mxu0
          %v4240 = vadd.f32 %v3796, %v4239
          %4241 = vmatmul.bf16.gmra.mxu0 %v3744
          %v4242 = vpop.f32.mrf.mxu0
          %v4243 = vadd.f32 %v3796, %v4242
          %v4244 = vpop.f32.mrf.mxu0
          %v4245 = vadd.f32 %v3796, %v4244
          %4246 = vmatmul.bf16.gmra.mxu0 %v3745
          %v4247 = vpop.f32.mrf.mxu0
          %v4248 = vadd.f32 %v3796, %v4247
          %v4249 = vpop.f32.mrf.mxu0
          %v4250 = vadd.f32 %v3796, %v4249
          %4251 = vmatmul.bf16.gmra.mxu0 %v3746
          %v4252 = vpop.f32.mrf.mxu0
          %v4253 = vadd.f32 %v3796, %v4252
          %v4254 = vpop.f32.mrf.mxu0
          %v4255 = vadd.f32 %v3796, %v4254
          %4256 = vmatmul.bf16.gmra.mxu0 %v3747
          %v4257 = vpop.f32.mrf.mxu0
          %v4258 = vadd.f32 %v3796, %v4257
          %v4259 = vpop.f32.mrf.mxu0
          %v4260 = vadd.f32 %v3796, %v4259
          %4261 = vmatmul.bf16.gmra.mxu0 %v3748
          %v4262 = vpop.f32.mrf.mxu0
          %v4263 = vadd.f32 %v3796, %v4262
          %v4264 = vpop.f32.mrf.mxu0
          %v4265 = vadd.f32 %v3796, %v4264
          %4266 = vmatmul.bf16.gmra.mxu0 %v3749
          %v4267 = vpop.f32.mrf.mxu0
          %v4268 = vadd.f32 %v3796, %v4267
          %v4269 = vpop.f32.mrf.mxu0
          %v4270 = vadd.f32 %v3796, %v4269
          %4271 = vmatmul.bf16.gmra.mxu0 %v3750
          %v4272 = vpop.f32.mrf.mxu0
          %v4273 = vadd.f32 %v3796, %v4272
          %v4274 = vpop.f32.mrf.mxu0
          %v4275 = vadd.f32 %v3796, %v4274
          %4276 = vmatmul.bf16.gmra.mxu0 %v3751
          %v4277 = vpop.f32.mrf.mxu0
          %v4278 = vadd.f32 %v3796, %v4277
          %v4279 = vpop.f32.mrf.mxu0
          %v4280 = vadd.f32 %v3796, %v4279
          %4281 = vmatmul.bf16.gmra.mxu0 %v3752
          %v4282 = vpop.f32.mrf.mxu0
          %v4283 = vadd.f32 %v3796, %v4282
          %v4284 = vpop.f32.mrf.mxu0
          %v4285 = vadd.f32 %v3796, %v4284
          %4286 = vmatmul.bf16.gmra.mxu0 %v3753
          %v4287 = vpop.f32.mrf.mxu0
          %v4288 = vadd.f32 %v3796, %v4287
          %v4289 = vpop.f32.mrf.mxu0
          %v4290 = vadd.f32 %v3796, %v4289
          %4291 = vmatmul.bf16.gmra.mxu0 %v3754
          %v4292 = vpop.f32.mrf.mxu0
          %v4293 = vadd.f32 %v3796, %v4292
          %v4294 = vpop.f32.mrf.mxu0
          %v4295 = vadd.f32 %v3796, %v4294
          %4296 = vmatmul.bf16.gmra.mxu0 %v3755
          %v4297 = vpop.f32.mrf.mxu0
          %v4298 = vadd.f32 %v3796, %v4297
          %v4299 = vpop.f32.mrf.mxu0
          %v4300 = vadd.f32 %v3796, %v4299
          %4301 = vmatmul.bf16.gmra.mxu0 %v3756
          %v4302 = vpop.f32.mrf.mxu0
          %v4303 = vadd.f32 %v3796, %v4302
          %v4304 = vpop.f32.mrf.mxu0
          %v4305 = vadd.f32 %v3796, %v4304
          %4306 = vmatmul.bf16.gmra.mxu0 %v3757
          %v4307 = vpop.f32.mrf.mxu0
          %v4308 = vadd.f32 %v3796, %v4307
          %v4309 = vpop.f32.mrf.mxu0
          %v4310 = vadd.f32 %v3796, %v4309
          %4311 = vmatmul.bf16.gmra.mxu0 %v3758
          %v4312 = vpop.f32.mrf.mxu0
          %v4313 = vadd.f32 %v3796, %v4312
          %v4314 = vpop.f32.mrf.mxu0
          %v4315 = vadd.f32 %v3796, %v4314
          %4316 = vdwg.mxu0
          %v4317 = vld [vmem:[#allocation4] sm:$0xff]
          %v4318 = vld [vmem:[#allocation4 + $0x8] sm:$0xff]
          %v4319 = vld [vmem:[#allocation4 + $0x10] sm:$0xff]
          %v4320 = vld [vmem:[#allocation4 + $0x18] sm:$0xff]
          %v4321 = vld [vmem:[#allocation4 + $0x20] sm:$0xff]
          %v4322 = vld [vmem:[#allocation4 + $0x28] sm:$0xff]
          %v4323 = vld [vmem:[#allocation4 + $0x30] sm:$0xff]
          %v4324 = vld [vmem:[#allocation4 + $0x38] sm:$0xff]
          %v4325 = vld [vmem:[#allocation4 + $0x40] sm:$0xff]
          %v4326 = vld [vmem:[#allocation4 + $0x48] sm:$0xff]
          %v4327 = vld [vmem:[#allocation4 + $0x50] sm:$0xff]
          %v4328 = vld [vmem:[#allocation4 + $0x58] sm:$0xff]
          %v4329 = vld [vmem:[#allocation4 + $0x60] sm:$0xff]
          %v4330 = vld [vmem:[#allocation4 + $0x68] sm:$0xff]
          %v4331 = vld [vmem:[#allocation4 + $0x70] sm:$0xff]
          %v4332 = vld [vmem:[#allocation4 + $0x78] sm:$0xff]
          %v4333 = vld [vmem:[#allocation4 + $0x80] sm:$0xff]
          %v4334 = vld [vmem:[#allocation4 + $0x88] sm:$0xff]
          %v4335 = vld [vmem:[#allocation4 + $0x90] sm:$0xff]
          %v4336 = vld [vmem:[#allocation4 + $0x98] sm:$0xff]
          %v4337 = vld [vmem:[#allocation4 + $0xa0] sm:$0xff]
          %v4338 = vld [vmem:[#allocation4 + $0xa8] sm:$0xff]
          %v4339 = vld [vmem:[#allocation4 + $0xb0] sm:$0xff]
          %v4340 = vld [vmem:[#allocation4 + $0xb8] sm:$0xff]
          %v4341 = vld [vmem:[#allocation4 + $0xc0] sm:$0xff]
          %v4342 = vld [vmem:[#allocation4 + $0xc8] sm:$0xff]
          %v4343 = vld [vmem:[#allocation4 + $0xd0] sm:$0xff]
          %v4344 = vld [vmem:[#allocation4 + $0xd8] sm:$0xff]
          %v4345 = vld [vmem:[#allocation4 + $0xe0] sm:$0xff]
          %v4346 = vld [vmem:[#allocation4 + $0xe8] sm:$0xff]
          %v4347 = vld [vmem:[#allocation4 + $0xf0] sm:$0xff]
          %v4348 = vld [vmem:[#allocation4 + $0xf8] sm:$0xff]
          %v4349 = vld [vmem:[#allocation4 + $0x100] sm:$0xff]
          %v4350 = vld [vmem:[#allocation4 + $0x108] sm:$0xff]
          %v4351 = vld [vmem:[#allocation4 + $0x110] sm:$0xff]
          %v4352 = vld [vmem:[#allocation4 + $0x118] sm:$0xff]
          %v4353 = vld [vmem:[#allocation4 + $0x120] sm:$0xff]
          %v4354 = vld [vmem:[#allocation4 + $0x128] sm:$0xff]
          %v4355 = vld [vmem:[#allocation4 + $0x130] sm:$0xff]
          %v4356 = vld [vmem:[#allocation4 + $0x138] sm:$0xff]
          %v4357 = vld [vmem:[#allocation4 + $0x140] sm:$0xff]
          %v4358 = vld [vmem:[#allocation4 + $0x148] sm:$0xff]
          %v4359 = vld [vmem:[#allocation4 + $0x150] sm:$0xff]
          %v4360 = vld [vmem:[#allocation4 + $0x158] sm:$0xff]
          %v4361 = vld [vmem:[#allocation4 + $0x160] sm:$0xff]
          %v4362 = vld [vmem:[#allocation4 + $0x168] sm:$0xff]
          %v4363 = vld [vmem:[#allocation4 + $0x170] sm:$0xff]
          %v4364 = vld [vmem:[#allocation4 + $0x178] sm:$0xff]
          %v4365 = vld [vmem:[#allocation4 + $0x180] sm:$0xff]
          %v4366 = vld [vmem:[#allocation4 + $0x188] sm:$0xff]
          %v4367 = vld [vmem:[#allocation4 + $0x190] sm:$0xff]
          %v4368 = vld [vmem:[#allocation4 + $0x198] sm:$0xff]
          %v4369 = vld [vmem:[#allocation4 + $0x1a0] sm:$0xff]
          %v4370 = vld [vmem:[#allocation4 + $0x1a8] sm:$0xff]
          %v4371 = vld [vmem:[#allocation4 + $0x1b0] sm:$0xff]
          %v4372 = vld [vmem:[#allocation4 + $0x1b8] sm:$0xff]
          %v4373 = vld [vmem:[#allocation4 + $0x1c0] sm:$0xff]
          %v4374 = vld [vmem:[#allocation4 + $0x1c8] sm:$0xff]
          %v4375 = vld [vmem:[#allocation4 + $0x1d0] sm:$0xff]
          %v4376 = vld [vmem:[#allocation4 + $0x1d8] sm:$0xff]
          %v4377 = vld [vmem:[#allocation4 + $0x1e0] sm:$0xff]
          %v4378 = vld [vmem:[#allocation4 + $0x1e8] sm:$0xff]
          %v4379 = vld [vmem:[#allocation4 + $0x1f0] sm:$0xff]
          %v4380 = vld [vmem:[#allocation4 + $0x1f8] sm:$0xff]
          %v4381 = vld [vmem:[#allocation4 + $0x200] sm:$0xff]
          %v4382 = vld [vmem:[#allocation4 + $0x208] sm:$0xff]
          %v4383 = vld [vmem:[#allocation4 + $0x210] sm:$0xff]
          %v4384 = vld [vmem:[#allocation4 + $0x218] sm:$0xff]
          %v4385 = vld [vmem:[#allocation4 + $0x220] sm:$0xff]
          %v4386 = vld [vmem:[#allocation4 + $0x228] sm:$0xff]
          %v4387 = vld [vmem:[#allocation4 + $0x230] sm:$0xff]
          %v4388 = vld [vmem:[#allocation4 + $0x238] sm:$0xff]
          %v4389 = vld [vmem:[#allocation4 + $0x240] sm:$0xff]
          %v4390 = vld [vmem:[#allocation4 + $0x248] sm:$0xff]
          %v4391 = vld [vmem:[#allocation4 + $0x250] sm:$0xff]
          %v4392 = vld [vmem:[#allocation4 + $0x258] sm:$0xff]
          %v4393 = vld [vmem:[#allocation4 + $0x260] sm:$0xff]
          %v4394 = vld [vmem:[#allocation4 + $0x268] sm:$0xff]
          %v4395 = vld [vmem:[#allocation4 + $0x270] sm:$0xff]
          %v4396 = vld [vmem:[#allocation4 + $0x278] sm:$0xff]
          %v4397 = vld [vmem:[#allocation4 + $0x280] sm:$0xff]
          %v4398 = vld [vmem:[#allocation4 + $0x288] sm:$0xff]
          %v4399 = vld [vmem:[#allocation4 + $0x290] sm:$0xff]
          %v4400 = vld [vmem:[#allocation4 + $0x298] sm:$0xff]
          %v4401 = vld [vmem:[#allocation4 + $0x2a0] sm:$0xff]
          %v4402 = vld [vmem:[#allocation4 + $0x2a8] sm:$0xff]
          %v4403 = vld [vmem:[#allocation4 + $0x2b0] sm:$0xff]
          %v4404 = vld [vmem:[#allocation4 + $0x2b8] sm:$0xff]
          %v4405 = vld [vmem:[#allocation4 + $0x2c0] sm:$0xff]
          %v4406 = vld [vmem:[#allocation4 + $0x2c8] sm:$0xff]
          %v4407 = vld [vmem:[#allocation4 + $0x2d0] sm:$0xff]
          %v4408 = vld [vmem:[#allocation4 + $0x2d8] sm:$0xff]
          %v4409 = vld [vmem:[#allocation4 + $0x2e0] sm:$0xff]
          %v4410 = vld [vmem:[#allocation4 + $0x2e8] sm:$0xff]
          %v4411 = vld [vmem:[#allocation4 + $0x2f0] sm:$0xff]
          %v4412 = vld [vmem:[#allocation4 + $0x2f8] sm:$0xff]
          %v4413 = vld [vmem:[#allocation4 + $0x300] sm:$0xff]
          %v4414 = vld [vmem:[#allocation4 + $0x308] sm:$0xff]
          %v4415 = vld [vmem:[#allocation4 + $0x310] sm:$0xff]
          %v4416 = vld [vmem:[#allocation4 + $0x318] sm:$0xff]
          %v4417 = vld [vmem:[#allocation4 + $0x320] sm:$0xff]
          %v4418 = vld [vmem:[#allocation4 + $0x328] sm:$0xff]
          %v4419 = vld [vmem:[#allocation4 + $0x330] sm:$0xff]
          %v4420 = vld [vmem:[#allocation4 + $0x338] sm:$0xff]
          %v4421 = vld [vmem:[#allocation4 + $0x340] sm:$0xff]
          %v4422 = vld [vmem:[#allocation4 + $0x348] sm:$0xff]
          %v4423 = vld [vmem:[#allocation4 + $0x350] sm:$0xff]
          %v4424 = vld [vmem:[#allocation4 + $0x358] sm:$0xff]
          %v4425 = vld [vmem:[#allocation4 + $0x360] sm:$0xff]
          %v4426 = vld [vmem:[#allocation4 + $0x368] sm:$0xff]
          %v4427 = vld [vmem:[#allocation4 + $0x370] sm:$0xff]
          %v4428 = vld [vmem:[#allocation4 + $0x378] sm:$0xff]
          %v4429 = vld [vmem:[#allocation4 + $0x380] sm:$0xff]
          %v4430 = vld [vmem:[#allocation4 + $0x388] sm:$0xff]
          %v4431 = vld [vmem:[#allocation4 + $0x390] sm:$0xff]
          %v4432 = vld [vmem:[#allocation4 + $0x398] sm:$0xff]
          %v4433 = vld [vmem:[#allocation4 + $0x3a0] sm:$0xff]
          %v4434 = vld [vmem:[#allocation4 + $0x3a8] sm:$0xff]
          %v4435 = vld [vmem:[#allocation4 + $0x3b0] sm:$0xff]
          %v4436 = vld [vmem:[#allocation4 + $0x3b8] sm:$0xff]
          %v4437 = vld [vmem:[#allocation4 + $0x3c0] sm:$0xff]
          %v4438 = vld [vmem:[#allocation4 + $0x3c8] sm:$0xff]
          %v4439 = vld [vmem:[#allocation4 + $0x3d0] sm:$0xff]
          %v4440 = vld [vmem:[#allocation4 + $0x3d8] sm:$0xff]
          %v4441 = vld [vmem:[#allocation4 + $0x3e0] sm:$0xff]
          %v4442 = vld [vmem:[#allocation4 + $0x3e8] sm:$0xff]
          %v4443 = vld [vmem:[#allocation4 + $0x3f0] sm:$0xff]
          %v4444 = vld [vmem:[#allocation4 + $0x3f8] sm:$0xff]
          %v4445 = vadd.f32 %v3971, %v4317
          %v4446 = vadd.f32 %v4060, %v4318
          %v4447 = vadd.f32 %v4149, %v4319
          %v4448 = vadd.f32 %v4238, %v4320
          %v4449 = vadd.f32 %v3973, %v4321
          %v4450 = vadd.f32 %v4062, %v4322
          %v4451 = vadd.f32 %v4151, %v4323
          %v4452 = vadd.f32 %v4240, %v4324
          %v4453 = vadd.f32 %v3976, %v4325
          %v4454 = vadd.f32 %v4065, %v4326
          %v4455 = vadd.f32 %v4154, %v4327
          %v4456 = vadd.f32 %v4243, %v4328
          %v4457 = vadd.f32 %v3978, %v4329
          %v4458 = vadd.f32 %v4067, %v4330
          %v4459 = vadd.f32 %v4156, %v4331
          %v4460 = vadd.f32 %v4245, %v4332
          %v4461 = vadd.f32 %v3981, %v4333
          %v4462 = vadd.f32 %v4070, %v4334
          %v4463 = vadd.f32 %v4159, %v4335
          %v4464 = vadd.f32 %v4248, %v4336
          %v4465 = vadd.f32 %v3983, %v4337
          %v4466 = vadd.f32 %v4072, %v4338
          %v4467 = vadd.f32 %v4161, %v4339
          %v4468 = vadd.f32 %v4250, %v4340
          %v4469 = vadd.f32 %v3986, %v4341
          %v4470 = vadd.f32 %v4075, %v4342
          %v4471 = vadd.f32 %v4164, %v4343
          %v4472 = vadd.f32 %v4253, %v4344
          %v4473 = vadd.f32 %v3988, %v4345
          %v4474 = vadd.f32 %v4077, %v4346
          %v4475 = vadd.f32 %v4166, %v4347
          %v4476 = vadd.f32 %v4255, %v4348
          %v4477 = vadd.f32 %v3991, %v4349
          %v4478 = vadd.f32 %v4080, %v4350
          %v4479 = vadd.f32 %v4169, %v4351
          %v4480 = vadd.f32 %v4258, %v4352
          %v4481 = vadd.f32 %v3993, %v4353
          %v4482 = vadd.f32 %v4082, %v4354
          %v4483 = vadd.f32 %v4171, %v4355
          %v4484 = vadd.f32 %v4260, %v4356
          %v4485 = vadd.f32 %v3996, %v4357
          %v4486 = vadd.f32 %v4085, %v4358
          %v4487 = vadd.f32 %v4174, %v4359
          %v4488 = vadd.f32 %v4263, %v4360
          %v4489 = vadd.f32 %v3998, %v4361
          %v4490 = vadd.f32 %v4087, %v4362
          %v4491 = vadd.f32 %v4176, %v4363
          %v4492 = vadd.f32 %v4265, %v4364
          %v4493 = vadd.f32 %v4001, %v4365
          %v4494 = vadd.f32 %v4090, %v4366
          %v4495 = vadd.f32 %v4179, %v4367
          %v4496 = vadd.f32 %v4268, %v4368
          %v4497 = vadd.f32 %v4003, %v4369
          %v4498 = vadd.f32 %v4092, %v4370
          %v4499 = vadd.f32 %v4181, %v4371
          %v4500 = vadd.f32 %v4270, %v4372
          %v4501 = vadd.f32 %v4006, %v4373
          %v4502 = vadd.f32 %v4095, %v4374
          %v4503 = vadd.f32 %v4184, %v4375
          %v4504 = vadd.f32 %v4273, %v4376
          %v4505 = vadd.f32 %v4008, %v4377
          %v4506 = vadd.f32 %v4097, %v4378
          %v4507 = vadd.f32 %v4186, %v4379
          %v4508 = vadd.f32 %v4275, %v4380
          %v4509 = vadd.f32 %v4011, %v4381
          %v4510 = vadd.f32 %v4100, %v4382
          %v4511 = vadd.f32 %v4189, %v4383
          %v4512 = vadd.f32 %v4278, %v4384
          %v4513 = vadd.f32 %v4013, %v4385
          %v4514 = vadd.f32 %v4102, %v4386
          %v4515 = vadd.f32 %v4191, %v4387
          %v4516 = vadd.f32 %v4280, %v4388
          %v4517 = vadd.f32 %v4016, %v4389
          %v4518 = vadd.f32 %v4105, %v4390
          %v4519 = vadd.f32 %v4194, %v4391
          %v4520 = vadd.f32 %v4283, %v4392
          %v4521 = vadd.f32 %v4018, %v4393
          %v4522 = vadd.f32 %v4107, %v4394
          %v4523 = vadd.f32 %v4196, %v4395
          %v4524 = vadd.f32 %v4285, %v4396
          %v4525 = vadd.f32 %v4021, %v4397
          %v4526 = vadd.f32 %v4110, %v4398
          %v4527 = vadd.f32 %v4199, %v4399
          %v4528 = vadd.f32 %v4288, %v4400
          %v4529 = vadd.f32 %v4023, %v4401
          %v4530 = vadd.f32 %v4112, %v4402
          %v4531 = vadd.f32 %v4201, %v4403
          %v4532 = vadd.f32 %v4290, %v4404
          %v4533 = vadd.f32 %v4026, %v4405
          %v4534 = vadd.f32 %v4115, %v4406
          %v4535 = vadd.f32 %v4204, %v4407
          %v4536 = vadd.f32 %v4293, %v4408
          %v4537 = vadd.f32 %v4028, %v4409
          %v4538 = vadd.f32 %v4117, %v4410
          %v4539 = vadd.f32 %v4206, %v4411
          %v4540 = vadd.f32 %v4295, %v4412
          %v4541 = vadd.f32 %v4031, %v4413
          %v4542 = vadd.f32 %v4120, %v4414
          %v4543 = vadd.f32 %v4209, %v4415
          %v4544 = vadd.f32 %v4298, %v4416
          %v4545 = vadd.f32 %v4033, %v4417
          %v4546 = vadd.f32 %v4122, %v4418
          %v4547 = vadd.f32 %v4211, %v4419
          %v4548 = vadd.f32 %v4300, %v4420
          %v4549 = vadd.f32 %v4036, %v4421
          %v4550 = vadd.f32 %v4125, %v4422
          %v4551 = vadd.f32 %v4214, %v4423
          %v4552 = vadd.f32 %v4303, %v4424
          %v4553 = vadd.f32 %v4038, %v4425
          %v4554 = vadd.f32 %v4127, %v4426
          %v4555 = vadd.f32 %v4216, %v4427
          %v4556 = vadd.f32 %v4305, %v4428
          %v4557 = vadd.f32 %v4041, %v4429
          %v4558 = vadd.f32 %v4130, %v4430
          %v4559 = vadd.f32 %v4219, %v4431
          %v4560 = vadd.f32 %v4308, %v4432
          %v4561 = vadd.f32 %v4043, %v4433
          %v4562 = vadd.f32 %v4132, %v4434
          %v4563 = vadd.f32 %v4221, %v4435
          %v4564 = vadd.f32 %v4310, %v4436
          %v4565 = vadd.f32 %v4046, %v4437
          %v4566 = vadd.f32 %v4135, %v4438
          %v4567 = vadd.f32 %v4224, %v4439
          %v4568 = vadd.f32 %v4313, %v4440
          %v4569 = vadd.f32 %v4048, %v4441
          %v4570 = vadd.f32 %v4137, %v4442
          %v4571 = vadd.f32 %v4226, %v4443
          %v4572 = vadd.f32 %v4315, %v4444
          %v4573 = vmax.f32 %v4445, 0.0
          %v4574 = vmax.f32 %v4446, 0.0
          %v4575 = vmax.f32 %v4447, 0.0
          %v4576 = vmax.f32 %v4448, 0.0
          %v4577 = vmax.f32 %v4449, 0.0
          %v4578 = vmax.f32 %v4450, 0.0
          %v4579 = vmax.f32 %v4451, 0.0
          %v4580 = vmax.f32 %v4452, 0.0
          %v4581 = vmax.f32 %v4453, 0.0
          %v4582 = vmax.f32 %v4454, 0.0
          %v4583 = vmax.f32 %v4455, 0.0
          %v4584 = vmax.f32 %v4456, 0.0
          %v4585 = vmax.f32 %v4457, 0.0
          %v4586 = vmax.f32 %v4458, 0.0
          %v4587 = vmax.f32 %v4459, 0.0
          %v4588 = vmax.f32 %v4460, 0.0
          %v4589 = vmax.f32 %v4461, 0.0
          %v4590 = vmax.f32 %v4462, 0.0
          %v4591 = vmax.f32 %v4463, 0.0
          %v4592 = vmax.f32 %v4464, 0.0
          %v4593 = vmax.f32 %v4465, 0.0
          %v4594 = vmax.f32 %v4466, 0.0
          %v4595 = vmax.f32 %v4467, 0.0
          %v4596 = vmax.f32 %v4468, 0.0
          %v4597 = vmax.f32 %v4469, 0.0
          %v4598 = vmax.f32 %v4470, 0.0
          %v4599 = vmax.f32 %v4471, 0.0
          %v4600 = vmax.f32 %v4472, 0.0
          %v4601 = vmax.f32 %v4473, 0.0
          %v4602 = vmax.f32 %v4474, 0.0
          %v4603 = vmax.f32 %v4475, 0.0
          %v4604 = vmax.f32 %v4476, 0.0
          %v4605 = vmax.f32 %v4477, 0.0
          %v4606 = vmax.f32 %v4478, 0.0
          %v4607 = vmax.f32 %v4479, 0.0
          %v4608 = vmax.f32 %v4480, 0.0
          %v4609 = vmax.f32 %v4481, 0.0
          %v4610 = vmax.f32 %v4482, 0.0
          %v4611 = vmax.f32 %v4483, 0.0
          %v4612 = vmax.f32 %v4484, 0.0
          %v4613 = vmax.f32 %v4485, 0.0
          %v4614 = vmax.f32 %v4486, 0.0
          %v4615 = vmax.f32 %v4487, 0.0
          %v4616 = vmax.f32 %v4488, 0.0
          %v4617 = vmax.f32 %v4489, 0.0
          %v4618 = vmax.f32 %v4490, 0.0
          %v4619 = vmax.f32 %v4491, 0.0
          %v4620 = vmax.f32 %v4492, 0.0
          %v4621 = vmax.f32 %v4493, 0.0
          %v4622 = vmax.f32 %v4494, 0.0
          %v4623 = vmax.f32 %v4495, 0.0
          %v4624 = vmax.f32 %v4496, 0.0
          %v4625 = vmax.f32 %v4497, 0.0
          %v4626 = vmax.f32 %v4498, 0.0
          %v4627 = vmax.f32 %v4499, 0.0
          %v4628 = vmax.f32 %v4500, 0.0
          %v4629 = vmax.f32 %v4501, 0.0
          %v4630 = vmax.f32 %v4502, 0.0
          %v4631 = vmax.f32 %v4503, 0.0
          %v4632 = vmax.f32 %v4504, 0.0
          %v4633 = vmax.f32 %v4505, 0.0
          %v4634 = vmax.f32 %v4506, 0.0
          %v4635 = vmax.f32 %v4507, 0.0
          %v4636 = vmax.f32 %v4508, 0.0
          %v4637 = vmax.f32 %v4509, 0.0
          %v4638 = vmax.f32 %v4510, 0.0
          %v4639 = vmax.f32 %v4511, 0.0
          %v4640 = vmax.f32 %v4512, 0.0
          %v4641 = vmax.f32 %v4513, 0.0
          %v4642 = vmax.f32 %v4514, 0.0
          %v4643 = vmax.f32 %v4515, 0.0
          %v4644 = vmax.f32 %v4516, 0.0
          %v4645 = vmax.f32 %v4517, 0.0
          %v4646 = vmax.f32 %v4518, 0.0
          %v4647 = vmax.f32 %v4519, 0.0
          %v4648 = vmax.f32 %v4520, 0.0
          %v4649 = vmax.f32 %v4521, 0.0
          %v4650 = vmax.f32 %v4522, 0.0
          %v4651 = vmax.f32 %v4523, 0.0
          %v4652 = vmax.f32 %v4524, 0.0
          %v4653 = vmax.f32 %v4525, 0.0
          %v4654 = vmax.f32 %v4526, 0.0
          %v4655 = vmax.f32 %v4527, 0.0
          %v4656 = vmax.f32 %v4528, 0.0
          %v4657 = vmax.f32 %v4529, 0.0
          %v4658 = vmax.f32 %v4530, 0.0
          %v4659 = vmax.f32 %v4531, 0.0
          %v4660 = vmax.f32 %v4532, 0.0
          %v4661 = vmax.f32 %v4533, 0.0
          %v4662 = vmax.f32 %v4534, 0.0
          %v4663 = vmax.f32 %v4535, 0.0
          %v4664 = vmax.f32 %v4536, 0.0
          %v4665 = vmax.f32 %v4537, 0.0
          %v4666 = vmax.f32 %v4538, 0.0
          %v4667 = vmax.f32 %v4539, 0.0
          %v4668 = vmax.f32 %v4540, 0.0
          %v4669 = vmax.f32 %v4541, 0.0
          %v4670 = vmax.f32 %v4542, 0.0
          %v4671 = vmax.f32 %v4543, 0.0
          %v4672 = vmax.f32 %v4544, 0.0
          %v4673 = vmax.f32 %v4545, 0.0
          %v4674 = vmax.f32 %v4546, 0.0
          %v4675 = vmax.f32 %v4547, 0.0
          %v4676 = vmax.f32 %v4548, 0.0
          %v4677 = vmax.f32 %v4549, 0.0
          %v4678 = vmax.f32 %v4550, 0.0
          %v4679 = vmax.f32 %v4551, 0.0
          %v4680 = vmax.f32 %v4552, 0.0
          %v4681 = vmax.f32 %v4553, 0.0
          %v4682 = vmax.f32 %v4554, 0.0
          %v4683 = vmax.f32 %v4555, 0.0
          %v4684 = vmax.f32 %v4556, 0.0
          %v4685 = vmax.f32 %v4557, 0.0
          %v4686 = vmax.f32 %v4558, 0.0
          %v4687 = vmax.f32 %v4559, 0.0
          %v4688 = vmax.f32 %v4560, 0.0
          %v4689 = vmax.f32 %v4561, 0.0
          %v4690 = vmax.f32 %v4562, 0.0
          %v4691 = vmax.f32 %v4563, 0.0
          %v4692 = vmax.f32 %v4564, 0.0
          %v4693 = vmax.f32 %v4565, 0.0
          %v4694 = vmax.f32 %v4566, 0.0
          %v4695 = vmax.f32 %v4567, 0.0
          %v4696 = vmax.f32 %v4568, 0.0
          %v4697 = vmax.f32 %v4569, 0.0
          %v4698 = vmax.f32 %v4570, 0.0
          %v4699 = vmax.f32 %v4571, 0.0
          %v4700 = vmax.f32 %v4572, 0.0
          %v4701 = vpack.c.bf16 %v4574, %v4573
          %v4702 = vpack.c.bf16 %v4576, %v4575
          %v4703 = vpack.c.bf16 %v4578, %v4577
          %v4704 = vpack.c.bf16 %v4580, %v4579
          %v4705 = vpack.c.bf16 %v4582, %v4581
          %v4706 = vpack.c.bf16 %v4584, %v4583
          %v4707 = vpack.c.bf16 %v4586, %v4585
          %v4708 = vpack.c.bf16 %v4588, %v4587
          %v4709 = vpack.c.bf16 %v4590, %v4589
          %v4710 = vpack.c.bf16 %v4592, %v4591
          %v4711 = vpack.c.bf16 %v4594, %v4593
          %v4712 = vpack.c.bf16 %v4596, %v4595
          %v4713 = vpack.c.bf16 %v4598, %v4597
          %v4714 = vpack.c.bf16 %v4600, %v4599
          %v4715 = vpack.c.bf16 %v4602, %v4601
          %v4716 = vpack.c.bf16 %v4604, %v4603
          %v4717 = vpack.c.bf16 %v4606, %v4605
          %v4718 = vpack.c.bf16 %v4608, %v4607
          %v4719 = vpack.c.bf16 %v4610, %v4609
          %v4720 = vpack.c.bf16 %v4612, %v4611
          %v4721 = vpack.c.bf16 %v4614, %v4613
          %v4722 = vpack.c.bf16 %v4616, %v4615
          %v4723 = vpack.c.bf16 %v4618, %v4617
          %v4724 = vpack.c.bf16 %v4620, %v4619
          %v4725 = vpack.c.bf16 %v4622, %v4621
          %v4726 = vpack.c.bf16 %v4624, %v4623
          %v4727 = vpack.c.bf16 %v4626, %v4625
          %v4728 = vpack.c.bf16 %v4628, %v4627
          %v4729 = vpack.c.bf16 %v4630, %v4629
          %v4730 = vpack.c.bf16 %v4632, %v4631
          %v4731 = vpack.c.bf16 %v4634, %v4633
          %v4732 = vpack.c.bf16 %v4636, %v4635
          %v4733 = vpack.c.bf16 %v4638, %v4637
          %v4734 = vpack.c.bf16 %v4640, %v4639
          %v4735 = vpack.c.bf16 %v4642, %v4641
          %v4736 = vpack.c.bf16 %v4644, %v4643
          %v4737 = vpack.c.bf16 %v4646, %v4645
          %v4738 = vpack.c.bf16 %v4648, %v4647
          %v4739 = vpack.c.bf16 %v4650, %v4649
          %v4740 = vpack.c.bf16 %v4652, %v4651
          %v4741 = vpack.c.bf16 %v4654, %v4653
          %v4742 = vpack.c.bf16 %v4656, %v4655
          %v4743 = vpack.c.bf16 %v4658, %v4657
          %v4744 = vpack.c.bf16 %v4660, %v4659
          %v4745 = vpack.c.bf16 %v4662, %v4661
          %v4746 = vpack.c.bf16 %v4664, %v4663
          %v4747 = vpack.c.bf16 %v4666, %v4665
          %v4748 = vpack.c.bf16 %v4668, %v4667
          %v4749 = vpack.c.bf16 %v4670, %v4669
          %v4750 = vpack.c.bf16 %v4672, %v4671
          %v4751 = vpack.c.bf16 %v4674, %v4673
          %v4752 = vpack.c.bf16 %v4676, %v4675
          %v4753 = vpack.c.bf16 %v4678, %v4677
          %v4754 = vpack.c.bf16 %v4680, %v4679
          %v4755 = vpack.c.bf16 %v4682, %v4681
          %v4756 = vpack.c.bf16 %v4684, %v4683
          %v4757 = vpack.c.bf16 %v4686, %v4685
          %v4758 = vpack.c.bf16 %v4688, %v4687
          %v4759 = vpack.c.bf16 %v4690, %v4689
          %v4760 = vpack.c.bf16 %v4692, %v4691
          %v4761 = vpack.c.bf16 %v4694, %v4693
          %v4762 = vpack.c.bf16 %v4696, %v4695
          %v4763 = vpack.c.bf16 %v4698, %v4697
          %v4764 = vpack.c.bf16 %v4700, %v4699
          %4765 = vst [vmem:[%s426] sm:$0xff] %v4701
          %4766 = vst [vmem:[%s426 + $0x8] sm:$0xff] %v4702
          %4767 = vst [vmem:[%s426 + $0x10] sm:$0xff] %v4703
          %4768 = vst [vmem:[%s426 + $0x18] sm:$0xff] %v4704
          %4769 = vst [vmem:[%s426 + $0x20] sm:$0xff] %v4705
          %4770 = vst [vmem:[%s426 + $0x28] sm:$0xff] %v4706
          %4771 = vst [vmem:[%s426 + $0x30] sm:$0xff] %v4707
          %4772 = vst [vmem:[%s426 + $0x38] sm:$0xff] %v4708
          %4773 = vst [vmem:[%s426 + $0x40] sm:$0xff] %v4709
          %4774 = vst [vmem:[%s426 + $0x48] sm:$0xff] %v4710
          %4775 = vst [vmem:[%s426 + $0x50] sm:$0xff] %v4711
          %4776 = vst [vmem:[%s426 + $0x58] sm:$0xff] %v4712
          %4777 = vst [vmem:[%s426 + $0x60] sm:$0xff] %v4713
          %4778 = vst [vmem:[%s426 + $0x68] sm:$0xff] %v4714
          %4779 = vst [vmem:[%s426 + $0x70] sm:$0xff] %v4715
          %4780 = vst [vmem:[%s426 + $0x78] sm:$0xff] %v4716
          %4781 = vst [vmem:[%s426 + $0x80] sm:$0xff] %v4717
          %4782 = vst [vmem:[%s426 + $0x88] sm:$0xff] %v4718
          %4783 = vst [vmem:[%s426 + $0x90] sm:$0xff] %v4719
          %4784 = vst [vmem:[%s426 + $0x98] sm:$0xff] %v4720
          %4785 = vst [vmem:[%s426 + $0xa0] sm:$0xff] %v4721
          %4786 = vst [vmem:[%s426 + $0xa8] sm:$0xff] %v4722
          %4787 = vst [vmem:[%s426 + $0xb0] sm:$0xff] %v4723
          %4788 = vst [vmem:[%s426 + $0xb8] sm:$0xff] %v4724
          %4789 = vst [vmem:[%s426 + $0xc0] sm:$0xff] %v4725
          %4790 = vst [vmem:[%s426 + $0xc8] sm:$0xff] %v4726
          %4791 = vst [vmem:[%s426 + $0xd0] sm:$0xff] %v4727
          %4792 = vst [vmem:[%s426 + $0xd8] sm:$0xff] %v4728
          %4793 = vst [vmem:[%s426 + $0xe0] sm:$0xff] %v4729
          %4794 = vst [vmem:[%s426 + $0xe8] sm:$0xff] %v4730
          %4795 = vst [vmem:[%s426 + $0xf0] sm:$0xff] %v4731
          %4796 = vst [vmem:[%s426 + $0xf8] sm:$0xff] %v4732
          %4797 = vst [vmem:[%s426 + $0x100] sm:$0xff] %v4733
          %4798 = vst [vmem:[%s426 + $0x108] sm:$0xff] %v4734
          %4799 = vst [vmem:[%s426 + $0x110] sm:$0xff] %v4735
          %4800 = vst [vmem:[%s426 + $0x118] sm:$0xff] %v4736
          %4801 = vst [vmem:[%s426 + $0x120] sm:$0xff] %v4737
          %4802 = vst [vmem:[%s426 + $0x128] sm:$0xff] %v4738
          %4803 = vst [vmem:[%s426 + $0x130] sm:$0xff] %v4739
          %4804 = vst [vmem:[%s426 + $0x138] sm:$0xff] %v4740
          %4805 = vst [vmem:[%s426 + $0x140] sm:$0xff] %v4741
          %4806 = vst [vmem:[%s426 + $0x148] sm:$0xff] %v4742
          %4807 = vst [vmem:[%s426 + $0x150] sm:$0xff] %v4743
          %4808 = vst [vmem:[%s426 + $0x158] sm:$0xff] %v4744
          %4809 = vst [vmem:[%s426 + $0x160] sm:$0xff] %v4745
          %4810 = vst [vmem:[%s426 + $0x168] sm:$0xff] %v4746
          %4811 = vst [vmem:[%s426 + $0x170] sm:$0xff] %v4747
          %4812 = vst [vmem:[%s426 + $0x178] sm:$0xff] %v4748
          %4813 = vst [vmem:[%s426 + $0x180] sm:$0xff] %v4749
          %4814 = vst [vmem:[%s426 + $0x188] sm:$0xff] %v4750
          %4815 = vst [vmem:[%s426 + $0x190] sm:$0xff] %v4751
          %4816 = vst [vmem:[%s426 + $0x198] sm:$0xff] %v4752
          %4817 = vst [vmem:[%s426 + $0x1a0] sm:$0xff] %v4753
          %4818 = vst [vmem:[%s426 + $0x1a8] sm:$0xff] %v4754
          %4819 = vst [vmem:[%s426 + $0x1b0] sm:$0xff] %v4755
          %4820 = vst [vmem:[%s426 + $0x1b8] sm:$0xff] %v4756
          %4821 = vst [vmem:[%s426 + $0x1c0] sm:$0xff] %v4757
          %4822 = vst [vmem:[%s426 + $0x1c8] sm:$0xff] %v4758
          %4823 = vst [vmem:[%s426 + $0x1d0] sm:$0xff] %v4759
          %4824 = vst [vmem:[%s426 + $0x1d8] sm:$0xff] %v4760
          %4825 = vst [vmem:[%s426 + $0x1e0] sm:$0xff] %v4761
          %4826 = vst [vmem:[%s426 + $0x1e8] sm:$0xff] %v4762
          %4827 = vst [vmem:[%s426 + $0x1f0] sm:$0xff] %v4763
          %4828 = vst [vmem:[%s426 + $0x1f8] sm:$0xff] %v4764
        $region80: #{tpu_custom_call.1} parent=47 // pred_fallthru
          _
        %s4829 = scalar_lea.vmem [#allocation2], 96
        %v4830 = vld [vmem:[%s4829] sm:$0xf]
        %v4831 = vld [vmem:[%s4829 + $0x4] sm:$0xf]
        %v4832 = vld [vmem:[%s4829 + $0x8] sm:$0xf]
        %v4833 = vld [vmem:[%s4829 + $0xc] sm:$0xf]
        %v4834 = vld [vmem:[%s4829 + $0x10] sm:$0xf]
        %v4835 = vld [vmem:[%s4829 + $0x14] sm:$0xf]
        %v4836 = vld [vmem:[%s4829 + $0x18] sm:$0xf]
        %v4837 = vld [vmem:[%s4829 + $0x1c] sm:$0xf]
        %4838 = vst [vmem:[#allocation3] sm:$0xf] %v4830
        %4839 = vst [vmem:[#allocation3 + $0x4] sm:$0xf] %v4831
        %4840 = vst [vmem:[#allocation3 + $0x8] sm:$0xf] %v4832
        %4841 = vst [vmem:[#allocation3 + $0xc] sm:$0xf] %v4833
        %4842 = vst [vmem:[#allocation3 + $0x10] sm:$0xf] %v4834
        %4843 = vst [vmem:[#allocation3 + $0x14] sm:$0xf] %v4835
        %4844 = vst [vmem:[#allocation3 + $0x18] sm:$0xf] %v4836
        %4845 = vst [vmem:[#allocation3 + $0x1c] sm:$0xf] %v4837
        %4846 = vst [vmem:[#allocation2] sm:$0xf] %v1279
        %4847 = vst [vmem:[#allocation2 + $0x4] sm:$0xf] %v1280
        %4848 = vst [vmem:[#allocation2 + $0x8] sm:$0xf] %v1281
        %4849 = vst [vmem:[#allocation2 + $0xc] sm:$0xf] %v1282
        %4850 = vst [vmem:[#allocation2 + $0x10] sm:$0xf] %v1283
        %4851 = vst [vmem:[#allocation2 + $0x14] sm:$0xf] %v1284
        %4852 = vst [vmem:[#allocation2 + $0x18] sm:$0xf] %v1285
        %4853 = vst [vmem:[#allocation2 + $0x1c] sm:$0xf] %v1286
        %4854 = vst [vmem:[#allocation2 + $0x20] sm:$0xf] %v1287
        %4855 = vst [vmem:[#allocation2 + $0x24] sm:$0xf] %v1288
        %4856 = vst [vmem:[#allocation2 + $0x28] sm:$0xf] %v1289
        %4857 = vst [vmem:[#allocation2 + $0x2c] sm:$0xf] %v1290
        %4858 = vst [vmem:[#allocation2 + $0x30] sm:$0xf] %v1291
        %4859 = vst [vmem:[#allocation2 + $0x34] sm:$0xf] %v1292
        %4860 = vst [vmem:[#allocation2 + $0x38] sm:$0xf] %v1293
        %4861 = vst [vmem:[#allocation2 + $0x3c] sm:$0xf] %v1294
        %4862 = vst [vmem:[#allocation2 + $0x40] sm:$0xf] %v1295
        %4863 = vst [vmem:[#allocation2 + $0x44] sm:$0xf] %v1296
        %4864 = vst [vmem:[#allocation2 + $0x48] sm:$0xf] %v1297
        %4865 = vst [vmem:[#allocation2 + $0x4c] sm:$0xf] %v1298
        %4866 = vst [vmem:[#allocation2 + $0x50] sm:$0xf] %v1299
        %4867 = vst [vmem:[#allocation2 + $0x54] sm:$0xf] %v1300
        %4868 = vst [vmem:[#allocation2 + $0x58] sm:$0xf] %v1301
        %4869 = vst [vmem:[#allocation2 + $0x5c] sm:$0xf] %v1302
        %4870 = vst [vmem:[#allocation2 + $0x60] sm:$0xf] %v1303
        %4871 = vst [vmem:[#allocation2 + $0x64] sm:$0xf] %v1304
        %4872 = vst [vmem:[#allocation2 + $0x68] sm:$0xf] %v1305
        %4873 = vst [vmem:[#allocation2 + $0x6c] sm:$0xf] %v1306
        %4874 = vst [vmem:[#allocation2 + $0x70] sm:$0xf] %v1307
        %4875 = vst [vmem:[#allocation2 + $0x74] sm:$0xf] %v1308
        %4876 = vst [vmem:[#allocation2 + $0x78] sm:$0xf] %v1309
        %4877 = vst [vmem:[#allocation2 + $0x7c] sm:$0xf] %v1310
        %4878 = vst [vmem:[#allocation4] sm:$0xff] %v439
        %4879 = vst [vmem:[#allocation4 + $0x8] sm:$0xff] %v440
        %4880 = vst [vmem:[#allocation4 + $0x10] sm:$0xff] %v441
        %4881 = vst [vmem:[#allocation4 + $0x18] sm:$0xff] %v442
        %4882 = vst [vmem:[#allocation4 + $0x20] sm:$0xff] %v443
        %4883 = vst [vmem:[#allocation4 + $0x28] sm:$0xff] %v444
        %4884 = vst [vmem:[#allocation4 + $0x30] sm:$0xff] %v445
        %4885 = vst [vmem:[#allocation4 + $0x38] sm:$0xff] %v446
        %4886 = vst [vmem:[#allocation4 + $0x40] sm:$0xff] %v447
        %4887 = vst [vmem:[#allocation4 + $0x48] sm:$0xff] %v448
        %4888 = vst [vmem:[#allocation4 + $0x50] sm:$0xff] %v449
        %4889 = vst [vmem:[#allocation4 + $0x58] sm:$0xff] %v450
        %4890 = vst [vmem:[#allocation4 + $0x60] sm:$0xff] %v451
        %4891 = vst [vmem:[#allocation4 + $0x68] sm:$0xff] %v452
        %4892 = vst [vmem:[#allocation4 + $0x70] sm:$0xff] %v453
        %4893 = vst [vmem:[#allocation4 + $0x78] sm:$0xff] %v454
        %4894 = vst [vmem:[#allocation4 + $0x80] sm:$0xff] %v455
        %4895 = vst [vmem:[#allocation4 + $0x88] sm:$0xff] %v456
        %4896 = vst [vmem:[#allocation4 + $0x90] sm:$0xff] %v457
        %4897 = vst [vmem:[#allocation4 + $0x98] sm:$0xff] %v458
        %4898 = vst [vmem:[#allocation4 + $0xa0] sm:$0xff] %v459
        %4899 = vst [vmem:[#allocation4 + $0xa8] sm:$0xff] %v460
        %4900 = vst [vmem:[#allocation4 + $0xb0] sm:$0xff] %v461
        %4901 = vst [vmem:[#allocation4 + $0xb8] sm:$0xff] %v462
        %4902 = vst [vmem:[#allocation4 + $0xc0] sm:$0xff] %v463
        %4903 = vst [vmem:[#allocation4 + $0xc8] sm:$0xff] %v464
        %4904 = vst [vmem:[#allocation4 + $0xd0] sm:$0xff] %v465
        %4905 = vst [vmem:[#allocation4 + $0xd8] sm:$0xff] %v466
        %4906 = vst [vmem:[#allocation4 + $0xe0] sm:$0xff] %v467
        %4907 = vst [vmem:[#allocation4 + $0xe8] sm:$0xff] %v468
        %4908 = vst [vmem:[#allocation4 + $0xf0] sm:$0xff] %v469
        %4909 = vst [vmem:[#allocation4 + $0xf8] sm:$0xff] %v470
        %4910 = vst [vmem:[#allocation4 + $0x100] sm:$0xff] %v471
        %4911 = vst [vmem:[#allocation4 + $0x108] sm:$0xff] %v472
        %4912 = vst [vmem:[#allocation4 + $0x110] sm:$0xff] %v473
        %4913 = vst [vmem:[#allocation4 + $0x118] sm:$0xff] %v474
        %4914 = vst [vmem:[#allocation4 + $0x120] sm:$0xff] %v475
        %4915 = vst [vmem:[#allocation4 + $0x128] sm:$0xff] %v476
        %4916 = vst [vmem:[#allocation4 + $0x130] sm:$0xff] %v477
        %4917 = vst [vmem:[#allocation4 + $0x138] sm:$0xff] %v478
        %4918 = vst [vmem:[#allocation4 + $0x140] sm:$0xff] %v479
        %4919 = vst [vmem:[#allocation4 + $0x148] sm:$0xff] %v480
        %4920 = vst [vmem:[#allocation4 + $0x150] sm:$0xff] %v481
        %4921 = vst [vmem:[#allocation4 + $0x158] sm:$0xff] %v482
        %4922 = vst [vmem:[#allocation4 + $0x160] sm:$0xff] %v483
        %4923 = vst [vmem:[#allocation4 + $0x168] sm:$0xff] %v484
        %4924 = vst [vmem:[#allocation4 + $0x170] sm:$0xff] %v485
        %4925 = vst [vmem:[#allocation4 + $0x178] sm:$0xff] %v486
        %4926 = vst [vmem:[#allocation4 + $0x180] sm:$0xff] %v487
        %4927 = vst [vmem:[#allocation4 + $0x188] sm:$0xff] %v488
        %4928 = vst [vmem:[#allocation4 + $0x190] sm:$0xff] %v489
        %4929 = vst [vmem:[#allocation4 + $0x198] sm:$0xff] %v490
        %4930 = vst [vmem:[#allocation4 + $0x1a0] sm:$0xff] %v491
        %4931 = vst [vmem:[#allocation4 + $0x1a8] sm:$0xff] %v492
        %4932 = vst [vmem:[#allocation4 + $0x1b0] sm:$0xff] %v493
        %4933 = vst [vmem:[#allocation4 + $0x1b8] sm:$0xff] %v494
        %4934 = vst [vmem:[#allocation4 + $0x1c0] sm:$0xff] %v495
        %4935 = vst [vmem:[#allocation4 + $0x1c8] sm:$0xff] %v496
        %4936 = vst [vmem:[#allocation4 + $0x1d0] sm:$0xff] %v497
        %4937 = vst [vmem:[#allocation4 + $0x1d8] sm:$0xff] %v498
        %4938 = vst [vmem:[#allocation4 + $0x1e0] sm:$0xff] %v499
        %4939 = vst [vmem:[#allocation4 + $0x1e8] sm:$0xff] %v500
        %4940 = vst [vmem:[#allocation4 + $0x1f0] sm:$0xff] %v501
        %4941 = vst [vmem:[#allocation4 + $0x1f8] sm:$0xff] %v502
        %4942 = vst [vmem:[#allocation4 + $0x200] sm:$0xff] %v503
        %4943 = vst [vmem:[#allocation4 + $0x208] sm:$0xff] %v504
        %4944 = vst [vmem:[#allocation4 + $0x210] sm:$0xff] %v505
        %4945 = vst [vmem:[#allocation4 + $0x218] sm:$0xff] %v506
        %4946 = vst [vmem:[#allocation4 + $0x220] sm:$0xff] %v507
        %4947 = vst [vmem:[#allocation4 + $0x228] sm:$0xff] %v508
        %4948 = vst [vmem:[#allocation4 + $0x230] sm:$0xff] %v509
        %4949 = vst [vmem:[#allocation4 + $0x238] sm:$0xff] %v510
        %4950 = vst [vmem:[#allocation4 + $0x240] sm:$0xff] %v511
        %4951 = vst [vmem:[#allocation4 + $0x248] sm:$0xff] %v512
        %4952 = vst [vmem:[#allocation4 + $0x250] sm:$0xff] %v513
        %4953 = vst [vmem:[#allocation4 + $0x258] sm:$0xff] %v514
        %4954 = vst [vmem:[#allocation4 + $0x260] sm:$0xff] %v515
        %4955 = vst [vmem:[#allocation4 + $0x268] sm:$0xff] %v516
        %4956 = vst [vmem:[#allocation4 + $0x270] sm:$0xff] %v517
        %4957 = vst [vmem:[#allocation4 + $0x278] sm:$0xff] %v518
        %4958 = vst [vmem:[#allocation4 + $0x280] sm:$0xff] %v519
        %4959 = vst [vmem:[#allocation4 + $0x288] sm:$0xff] %v520
        %4960 = vst [vmem:[#allocation4 + $0x290] sm:$0xff] %v521
        %4961 = vst [vmem:[#allocation4 + $0x298] sm:$0xff] %v522
        %4962 = vst [vmem:[#allocation4 + $0x2a0] sm:$0xff] %v523
        %4963 = vst [vmem:[#allocation4 + $0x2a8] sm:$0xff] %v524
        %4964 = vst [vmem:[#allocation4 + $0x2b0] sm:$0xff] %v525
        %4965 = vst [vmem:[#allocation4 + $0x2b8] sm:$0xff] %v526
        %4966 = vst [vmem:[#allocation4 + $0x2c0] sm:$0xff] %v527
        %4967 = vst [vmem:[#allocation4 + $0x2c8] sm:$0xff] %v528
        %4968 = vst [vmem:[#allocation4 + $0x2d0] sm:$0xff] %v529
        %4969 = vst [vmem:[#allocation4 + $0x2d8] sm:$0xff] %v530
        %4970 = vst [vmem:[#allocation4 + $0x2e0] sm:$0xff] %v531
        %4971 = vst [vmem:[#allocation4 + $0x2e8] sm:$0xff] %v532
        %4972 = vst [vmem:[#allocation4 + $0x2f0] sm:$0xff] %v533
        %4973 = vst [vmem:[#allocation4 + $0x2f8] sm:$0xff] %v534
        %4974 = vst [vmem:[#allocation4 + $0x300] sm:$0xff] %v535
        %4975 = vst [vmem:[#allocation4 + $0x308] sm:$0xff] %v536
        %4976 = vst [vmem:[#allocation4 + $0x310] sm:$0xff] %v537
        %4977 = vst [vmem:[#allocation4 + $0x318] sm:$0xff] %v538
        %4978 = vst [vmem:[#allocation4 + $0x320] sm:$0xff] %v539
        %4979 = vst [vmem:[#allocation4 + $0x328] sm:$0xff] %v540
        %4980 = vst [vmem:[#allocation4 + $0x330] sm:$0xff] %v541
        %4981 = vst [vmem:[#allocation4 + $0x338] sm:$0xff] %v542
        %4982 = vst [vmem:[#allocation4 + $0x340] sm:$0xff] %v543
        %4983 = vst [vmem:[#allocation4 + $0x348] sm:$0xff] %v544
        %4984 = vst [vmem:[#allocation4 + $0x350] sm:$0xff] %v545
        %4985 = vst [vmem:[#allocation4 + $0x358] sm:$0xff] %v546
        %4986 = vst [vmem:[#allocation4 + $0x360] sm:$0xff] %v547
        %4987 = vst [vmem:[#allocation4 + $0x368] sm:$0xff] %v548
        %4988 = vst [vmem:[#allocation4 + $0x370] sm:$0xff] %v549
        %4989 = vst [vmem:[#allocation4 + $0x378] sm:$0xff] %v550
        %4990 = vst [vmem:[#allocation4 + $0x380] sm:$0xff] %v551
        %4991 = vst [vmem:[#allocation4 + $0x388] sm:$0xff] %v552
        %4992 = vst [vmem:[#allocation4 + $0x390] sm:$0xff] %v553
        %4993 = vst [vmem:[#allocation4 + $0x398] sm:$0xff] %v554
        %4994 = vst [vmem:[#allocation4 + $0x3a0] sm:$0xff] %v555
        %4995 = vst [vmem:[#allocation4 + $0x3a8] sm:$0xff] %v556
        %4996 = vst [vmem:[#allocation4 + $0x3b0] sm:$0xff] %v557
        %4997 = vst [vmem:[#allocation4 + $0x3b8] sm:$0xff] %v558
        %4998 = vst [vmem:[#allocation4 + $0x3c0] sm:$0xff] %v559
        %4999 = vst [vmem:[#allocation4 + $0x3c8] sm:$0xff] %v560
        %5000 = vst [vmem:[#allocation4 + $0x3d0] sm:$0xff] %v561
        %5001 = vst [vmem:[#allocation4 + $0x3d8] sm:$0xff] %v562
        %5002 = vst [vmem:[#allocation4 + $0x3e0] sm:$0xff] %v563
        %5003 = vst [vmem:[#allocation4 + $0x3e8] sm:$0xff] %v564
        %5004 = vst [vmem:[#allocation4 + $0x3f0] sm:$0xff] %v565
        %5005 = vst [vmem:[#allocation4 + $0x3f8] sm:$0xff] %v566
        %s5006 = sand.u32 %s217, 1
        %s5007 = scalar_lea.sflag [#allocation8], %s5006
        %s5008 = sand.u32 %s217, 1
        %s5009 = smul.addr %s5008, 512
        %s5010 = scalar_lea.vmem [#allocation18], %s5009
        // Predicated region
        $region81: #{tpu_custom_call.1} parent=47 // pred_check
          %p5011 = pneg %p227
        $region82: #{tpu_custom_call.1} parent=47 // pred_check_branch
          %5013 = sbr.rel (%p5011) target = $region84
        $region83: #{tpu_custom_call.1} parent=47 // pred_region
          %s5014 = smul.u32 %s31, 4
          %s5015 = ssub.s32 %s32, 1
          %p5016 = scmp.gt.s32.totalorder %s5015, 0
          %s5017 = scalar_select %p5016, %s5015, 0
          %s5018 = sadd.s32 %s5014, %s5017
          %s5019 = smul.u32 32, %s5018
          %5021 = vsyncadd %s5007, 0
          %s5022 = smul.addr %s5019, 4
          %s5023 = smul.addr %s5022, 4
          %s5024 = scalar_lea.hbm %s7, %s5023
          %s5025 = sshll.u32 %s5010, 4
          %s5026 = int_to_ptr.vmem [resolvable:$true] %s5025
          %s5027 = sshll.u32 %s5024, 4
          %s5028 = int_to_ptr.hbm [resolvable:$true] %s5027
          %5033 = dma.vmem_to_hbm [thread:$0]  %s5026, 8192, %s5028, %s5007, 256, 256, 16
        $region84: #{tpu_custom_call.1} parent=47 // pred_fallthru
          _
      $region48: #{tpu_custom_call.1} parent=5 // pred_fallthru
        _
      %p5034 = scmp.le.s32.totalorder 2, %s22
      // Predicated region
      $region85: #{tpu_custom_call.1} parent=5 // pred_check
        %p5035 = pneg %p5034
      $region86: #{tpu_custom_call.1} parent=5 // pred_check_branch
        %5037 = sbr.rel (%p5035) target = $region88
      $region87: #{tpu_custom_call.1} parent=5 // pred_region
        %s5038 = ssub.s32 %s22, 2
        // Predicated region
        $region89: #{tpu_custom_call.1} parent=87 // pred_check
          %p5039 = pneg %p233
        $region90: #{tpu_custom_call.1} parent=87 // pred_check_branch
          %5041 = sbr.rel (%p5039) target = $region92
        $region91: #{tpu_custom_call.1} parent=87 // pred_region
          %s5042 = sand.u32 %s218, 1
          %s5043 = scalar_lea.sflag [#allocation8], %s5042
          %s5044 = sand.u32 %s218, 1
          %s5045 = smul.addr %s5044, 512
          %s5046 = scalar_lea.vmem [#allocation18], %s5045
          %5048 = dma.done %s5043, 8192
        $region92: #{tpu_custom_call.1} parent=87 // pred_fallthru
          _
      $region88: #{tpu_custom_call.1} parent=5 // pred_fallthru
        _
    $region6: #{tpu_custom_call.1} parent=1 // loop_footer
      %s26 = sadd.s32 1, %s22
    $region7: #{tpu_custom_call.1} parent=1 // loop_footer_branch
      %21 = sbr.rel target = $region3
    $region8: #{tpu_custom_call.1} parent=1 // loop_exit
      _
    %5049 = vsyncpa [#allocation7], 1
    %s5050 = scalar_lea.sflag [#allocation7], 1
    %5051 = vsyncpa %s5050, 1
    %5052 = vsyncpa [#allocation10], 1
    %5053 = vsyncpa [#allocation13], 1
    %5054 = vsyncpa [#allocation16], 1
    %5055 = vsyncpa [#allocation8], 1
    %s5056 = scalar_lea.sflag [#allocation8], 1
    %5057 = vsyncpa %s5056, 1

</llo_original>
